<compile_context>
chip_gen: v7x
topology: tpu7x:2x2x1
jax: 0.10.0
libtpu: 0.0.40
codegen_flags: <defaults>
</compile_context>

<pallas_src>
import jax
import jax.numpy as jnp
from jax import lax
from jax.experimental import pallas as pl
from jax.experimental.pallas import tpu as pltpu

# TabNet hyper-parameters from the module's __init__
N_D = 32
N_A = 32
N_STEPS = 5
GAMMA = 1.3
N_IND = 2
N_SHARED = 2
SPLIT = N_D + N_A          # 64  (GLU output width)
HID = 2 * SPLIT            # 128 (GLU pre-activation width)
SQRT_HALF = 0.7071067811865476
N_FT = N_STEPS + 1         # initial splitter + one per step

_PARAM_ORDER = (
    "bn0_s", "bn0_b",
    "ft_w_sh0", "ft_b_sh0", "ft_w_sh1", "ft_b_sh1",
    "ft_w_ind", "ft_b_ind",
    "att_w", "att_b",
    "w_final", "w_fc", "b_fc",
)


def _elementwise_dtype():
    """bf16 elementwise math only on chips with a bf16 VALU/EUP (v6e and later)."""
    kind = jax.devices()[0].device_kind.lower()
    if any(tag in kind for tag in ("v2", "v3", "v4", "v5")):
        return jnp.float32
    return jnp.bfloat16


def _sparsemax_t(z):
    """Sparsemax along axis 0 of a (D, Bt) f32 array (batch on lanes -> lane-dense).

    Sort-free O(D^2) formulation; D=16 so the loop is unrolled. k >= 1 always (the max
    element is always in the support), so no divide-by-zero.
    NOTE: under exact ties this can differ negligibly from a sorted reference (reviewer note).
    """
    d = z.shape[0]
    rank = jnp.zeros_like(z)
    csum = jnp.zeros_like(z)
    for j in range(d):
        zj = z[j:j + 1, :]                       # (1, Bt) sublane slice
        ge = (zj >= z).astype(z.dtype)           # [z_j >= z_i] per sample
        rank = rank + ge                         # rank_i = #{j : z_j >= z_i}
        csum = csum + zj * ge                    # csum_i = sum of elements >= z_i
    supp = (1.0 + rank * z) > csum
    k = jnp.max(jnp.where(supp, rank, 0.0), axis=0, keepdims=True)     # (1, Bt)
    s = jnp.sum(jnp.where(rank <= k, z, 0.0), axis=0, keepdims=True)   # (1, Bt)
    tau = (s - 1.0) / k
    return jnp.maximum(z - tau, 0.0)


def _make_kernel(cdtype):
    """cdtype: dtype for GLU elementwise math (bf16 on v6e/v7x, f32 on v5e and older)."""

    def kernel(x_ref, bn0_s_ref, bn0_b_ref,
               ft_w_sh0_ref, ft_b_sh0_ref,
               ft_w_sh1_ref, ft_b_sh1_ref,
               ft_w_ind_ref, ft_b_ind_ref,
               att_w_ref, att_b_ref,
               w_final_ref, w_fc_ref, b_fc_ref,
               out_ref):
        # Everything below is feature-major: activations are (features, Bt).
        xb_t = x_ref[...].astype(jnp.float32) * bn0_s_ref[...] + bn0_b_ref[...]   # (D, Bt)

        def glu_t(h_in_t, wt, b):
            # wt: (HID, in) bf16 (BN scale pre-folded); b: (HID, 1) f32.
            # bf16 MXU operands, f32 accumulation; elementwise in cdtype.
            h = jnp.dot(wt, h_in_t.astype(jnp.bfloat16),
                        preferred_element_type=jnp.float32)
            h = h.astype(cdtype) + b.astype(cdtype)                    # (HID, Bt)
            # rows 64:128 is a sublane-tile-aligned selection -> no lane relayout
            return h[:SPLIT, :] * jax.nn.sigmoid(h[SPLIT:, :])         # (SPLIT, Bt)

        def feat_transformer_t(inp_t, t):
            # shared GLU block (first=True) with per-transformer folded BN, then independent.
            h = glu_t(inp_t, ft_w_sh0_ref[t], ft_b_sh0_ref[t])
            g = glu_t(h, ft_w_sh1_ref[t], ft_b_sh1_ref[t])
            h = (h + g) * SQRT_HALF
            for l in range(N_IND):                                     # 2 iters, kept unrolled
                g = glu_t(h, ft_w_ind_ref[N_IND * t + l], ft_b_ind_ref[N_IND * t + l])
                h = (h + g) * SQRT_HALF
            return h                                                   # (SPLIT, Bt)

        # initial splitter -> attention features (rows N_D:SPLIT, aligned selection)
        out0_t = feat_transformer_t(xb_t, 0)
        att0_t = out0_t[N_D:, :]                                       # (N_A, Bt) cdtype
        prior0 = jnp.ones_like(xb_t)                                   # (D, Bt) f32
        res0 = jnp.zeros((N_D, xb_t.shape[1]), jnp.float32)            # (N_D, Bt) f32

        def step_body(step, carry):
            prior_t, res_t, att_t = carry
            # attentive transformer: (D, N_A) @ (N_A, Bt) -> (D, Bt), BN scale folded, +bias
            m_t = jnp.dot(att_w_ref[step], att_t.astype(jnp.bfloat16),
                          preferred_element_type=jnp.float32) + att_b_ref[step]
            mask_t = _sparsemax_t(m_t * prior_t)                       # f32, lane-dense
            prior_t = (GAMMA - mask_t) * prior_t
            out_t = feat_transformer_t(mask_t * xb_t, step + 1)        # (SPLIT, Bt)
            res_t = res_t + jnp.maximum(out_t[:N_D, :], 0.0).astype(jnp.float32)
            return prior_t, res_t, out_t[N_D:, :]

        # rolled step loop: bounds live ranges (vreg spills) vs. a fully unrolled Python loop
        _, res_t, _ = lax.fori_loop(0, N_STEPS, step_body, (prior0, res0, att0_t))

        # final_mapping (n_d -> emb) and classifier fc, both feature-major and lane-dense
        emb_t = jnp.dot(w_final_ref[...], res_t.astype(jnp.bfloat16),
                        preferred_element_type=jnp.float32)            # (emb, Bt)
        y_t = jnp.dot(w_fc_ref[...], emb_t.astype(jnp.bfloat16),
                      preferred_element_type=jnp.float32) + b_fc_ref[...]  # (OUT_PAD, Bt)
        out_ref[...] = y_t.astype(out_ref.dtype)                       # lane-dense store

    return kernel


def classifier_forward(x, prep, *, block_b=256):
    """x: (B, input_dim) f32. prep: output of prepare_params(). Returns (B, out_dim) f32.

    block_b: batch columns per grid step (batch lives on the lane axis inside the kernel).
    Default 256; with B=512 this gives grid=(2,), which shards across both v7x TensorCores.
    VMEM is not a constraint for this working set, so block_b can be swept upward for larger B.
    """
    B, D = x.shape
    out_dim = prep["out_dim"]
    out_pad = prep["w_fc"].shape[0]
    emb_dim = prep["w_final"].shape[0]
    block_b = min(block_b, B)
    assert B % block_b == 0, "batch must be divisible by block_b"
    assert block_b % 128 == 0, "block_b must be a multiple of 128 (lane-dense batch axis)"
    grid = (B // block_b,)

    cdtype = _elementwise_dtype()
    ordered = [prep[k] for k in _PARAM_ORDER]
    x_t = x.T                                            # feature-major input layout

    def full_spec(arr):
        nd = arr.ndim
        return pl.BlockSpec(arr.shape, lambda i, _nd=nd: (0,) * _nd)

    in_specs = [pl.BlockSpec((D, block_b), lambda i: (0, i))] + [full_spec(a) for a in ordered]

    # Advisory cost for XLA scheduling around the custom call.
    flops = int(2 * B * (N_FT * (D + (N_SHARED - 1 + N_IND) * SPLIT) * HID
                         + N_STEPS * N_A * D + N_D * emb_dim + emb_dim * out_pad))
    transcendentals = int(B * N_FT * (N_SHARED + N_IND) * SPLIT)
    bytes_accessed = int(x.size * x.dtype.itemsize + B * out_pad * 4
                         + sum(int(a.size) * a.dtype.itemsize for a in ordered))

    y_pad_t = pl.pallas_call(
        _make_kernel(cdtype),
        out_shape=jax.ShapeDtypeStruct((out_pad, B), jnp.float32),
        grid=grid,
        in_specs=in_specs,
        out_specs=pl.BlockSpec((out_pad, block_b), lambda i: (0, i)),
        compiler_params=pltpu.CompilerParams(
            # batch tiles are independent -> shard across both TensorCores on v7x
            dimension_semantics=("parallel",)),
        cost_estimate=pl.CostEstimate(flops=flops, transcendentals=transcendentals,
                                      bytes_accessed=bytes_accessed),
    )(x_t, *ordered)
    return y_pad_t[:out_dim, :].T


def prepare_params(p):
    """Glue (runs once, outside the kernel):
      * fold eval-mode BN scales into the matmul weights (per-transformer copies of the shared
        GLU weights are materialized, ~0.1 MB),
      * pre-transpose every weight to (out, in) so the kernel's feature-major matmuls are all
        standard W_t @ h_t,
      * cast matmul weights to bf16 (MXU operands); biases stay f32 as (out, 1) columns,
      * pad the classifier fc to a lane-dense (multiple of 128) output width.
    """
    f32 = jnp.float32
    bf16 = jnp.bfloat16
    q = {}
    q["bn0_s"] = p["bn0_s"].T.astype(f32)                                  # (D, 1)
    q["bn0_b"] = p["bn0_b"].T.astype(f32)

    sh_s, sh_b = p["ft_bn_sh_s"], p["ft_bn_sh_b"]                          # (N_FT*2, 1, HID)
    q["ft_w_sh0"] = jnp.transpose(p["w_sh0"][None] * sh_s[0::2], (0, 2, 1)).astype(bf16)  # (N_FT, HID, D)
    q["ft_b_sh0"] = jnp.transpose(sh_b[0::2], (0, 2, 1)).astype(f32)                      # (N_FT, HID, 1)
    q["ft_w_sh1"] = jnp.transpose(p["w_sh1"][None] * sh_s[1::2], (0, 2, 1)).astype(bf16)  # (N_FT, HID, SPLIT)
    q["ft_b_sh1"] = jnp.transpose(sh_b[1::2], (0, 2, 1)).astype(f32)

    q["ft_w_ind"] = jnp.transpose(p["ft_w_ind"] * p["ft_bn_ind_s"], (0, 2, 1)).astype(bf16)  # (N_FT*N_IND, HID, SPLIT)
    q["ft_b_ind"] = jnp.transpose(p["ft_bn_ind_b"], (0, 2, 1)).astype(f32)                   # (N_FT*N_IND, HID, 1)

    q["att_w"] = jnp.transpose(p["att_w"] * p["att_bn_s"], (0, 2, 1)).astype(bf16)           # (steps, D, n_a)
    q["att_b"] = jnp.transpose(p["att_bn_b"], (0, 2, 1)).astype(f32)                         # (steps, D, 1)

    q["w_final"] = p["w_final"].T.astype(bf16)                                               # (emb, n_d)

    emb_dim, out_dim = p["w_fc"].shape
    out_pad = max(128, ((out_dim + 127) // 128) * 128)                   # lane-dense width
    w_fc = jnp.zeros((emb_dim, out_pad), f32).at[:, :out_dim].set(p["w_fc"])
    b_fc = jnp.zeros((out_pad, 1), f32).at[:out_dim, 0].set(p["b_fc"][0])
    q["w_fc"] = w_fc.T.astype(bf16)                                       # (out_pad, emb)
    q["b_fc"] = b_fc                                                      # (out_pad, 1)
    q["out_dim"] = out_dim
    return q


def init_params(key, input_dim, embedding_dim, out_dim):
    """Raw f32 parameters mirroring the PyTorch module (BN already folded to eval affine)."""
    keys = iter(jax.random.split(key, 64))

    def nrm(shape, fan_in, fan_out):
        scale = (2.0 / (fan_in + fan_out)) ** 0.5
        return scale * jax.random.normal(next(keys), shape, jnp.float32)

    def bn_fold(shape):
        # BatchNorm1d eval mode folded: scale = gamma / sqrt(var + eps), bias = beta - mean*scale
        gamma = 1.0 + 0.1 * jax.random.normal(next(keys), shape, jnp.float32)
        beta = 0.1 * jax.random.normal(next(keys), shape, jnp.float32)
        mean = 0.1 * jax.random.normal(next(keys), shape, jnp.float32)
        var = jnp.abs(1.0 + 0.1 * jax.random.normal(next(keys), shape, jnp.float32))
        scale = gamma * jax.lax.rsqrt(var + 1e-5)
        bias = beta - mean * scale
        return scale, bias

    p = {}
    p["bn0_s"], p["bn0_b"] = bn_fold((1, input_dim))
    # shared GLU linears (reused by all 6 feature transformers)
    p["w_sh0"] = nrm((input_dim, HID), input_dim, HID)
    p["w_sh1"] = nrm((SPLIT, HID), SPLIT, HID)
    # per-transformer BN for the 2 shared GLU layers: (6*2, 1, 128)
    p["ft_bn_sh_s"], p["ft_bn_sh_b"] = bn_fold((N_FT * N_SHARED, 1, HID))
    # per-transformer independent GLU linears + BN: (6*2, 64, 128) / (6*2, 1, 128)
    p["ft_w_ind"] = nrm((N_FT * N_IND, SPLIT, HID), SPLIT, HID)
    p["ft_bn_ind_s"], p["ft_bn_ind_b"] = bn_fold((N_FT * N_IND, 1, HID))
    # attentive transformers: Linear(n_a, input_dim, no bias) + BN, one per step
    p["att_w"] = nrm((N_STEPS, N_A, input_dim), N_A, input_dim)
    p["att_bn_s"], p["att_bn_b"] = bn_fold((N_STEPS, 1, input_dim))
    # TabNet final mapping (n_d -> embedding_dim, no bias) and classifier fc
    p["w_final"] = nrm((N_D, embedding_dim), N_D, embedding_dim)
    p["w_fc"] = nrm((embedding_dim, out_dim), embedding_dim, out_dim)
    p["b_fc"] = 0.1 * jax.random.normal(next(keys), (1, out_dim), jnp.float32)
    return p


if __name__ == "__main__":
    input_dim, embedding_dim, out_dim = 16, 32, 8
    batch = 512            # 2 batch tiles of 256 -> grid=(2,), keeps both v7x TCs busy

    key = jax.random.PRNGKey(0)
    kx, kp = jax.random.split(key)
    x = jax.random.normal(kx, (batch, input_dim), jnp.float32)
    raw_params = init_params(kp, input_dim, embedding_dim, out_dim)
    prep = prepare_params(raw_params)

    y = classifier_forward(x, prep, block_b=256)
    y = jax.block_until_ready(y)

    assert y.shape == (batch, out_dim), y.shape
    assert bool(jnp.all(jnp.isfinite(y)))
    print("KERNEL_OK")
</pallas_src>

<mosaic_0001>
module attributes {stable_mosaic.version = 11 : i64} {
  func.func @kernel(%arg0: i32, %arg1: memref<16x256xf32, #tpu.memory_space<vmem>>, %arg2: memref<16x1xf32, #tpu.memory_space<vmem>>, %arg3: memref<16x1xf32, #tpu.memory_space<vmem>>, %arg4: memref<6x128x16xbf16, #tpu.memory_space<vmem>>, %arg5: memref<6x128x1xf32, #tpu.memory_space<vmem>>, %arg6: memref<6x128x64xbf16, #tpu.memory_space<vmem>>, %arg7: memref<6x128x1xf32, #tpu.memory_space<vmem>>, %arg8: memref<12x128x64xbf16, #tpu.memory_space<vmem>>, %arg9: memref<12x128x1xf32, #tpu.memory_space<vmem>>, %arg10: memref<5x16x32xbf16, #tpu.memory_space<vmem>>, %arg11: memref<5x16x1xf32, #tpu.memory_space<vmem>>, %arg12: memref<32x32xbf16, #tpu.memory_space<vmem>>, %arg13: memref<128x32xbf16, #tpu.memory_space<vmem>>, %arg14: memref<128x1xf32, #tpu.memory_space<vmem>>, %arg15: memref<128x256xf32, #tpu.memory_space<vmem>>) attributes {dimension_semantics = [#tpu.dimension_semantics<parallel>], iteration_bounds = array<i64: 2>, scalar_prefetch = 0 : i64, scratch_operands = 0 : i64, tpu.core_type = #tpu.core_type<tc>, window_params = [{transform_indices = @transform_0, window_bounds = array<i64: 16, 256>}, {pipeline_mode = #tpu.pipeline_mode<synchronous>, transform_indices = @transform_1, window_bounds = array<i64: 16, 1>}, {pipeline_mode = #tpu.pipeline_mode<synchronous>, transform_indices = @transform_2, window_bounds = array<i64: 16, 1>}, {pipeline_mode = #tpu.pipeline_mode<synchronous>, transform_indices = @transform_3, window_bounds = array<i64: 6, 128, 16>}, {pipeline_mode = #tpu.pipeline_mode<synchronous>, transform_indices = @transform_4, window_bounds = array<i64: 6, 128, 1>}, {pipeline_mode = #tpu.pipeline_mode<synchronous>, transform_indices = @transform_5, window_bounds = array<i64: 6, 128, 64>}, {pipeline_mode = #tpu.pipeline_mode<synchronous>, transform_indices = @transform_6, window_bounds = array<i64: 6, 128, 1>}, {pipeline_mode = #tpu.pipeline_mode<synchronous>, transform_indices = @transform_7, window_bounds = array<i64: 12, 128, 64>}, {pipeline_mode = #tpu.pipeline_mode<synchronous>, transform_indices = @transform_8, window_bounds = array<i64: 12, 128, 1>}, {pipeline_mode = #tpu.pipeline_mode<synchronous>, transform_indices = @transform_9, window_bounds = array<i64: 5, 16, 32>}, {pipeline_mode = #tpu.pipeline_mode<synchronous>, transform_indices = @transform_10, window_bounds = array<i64: 5, 16, 1>}, {pipeline_mode = #tpu.pipeline_mode<synchronous>, transform_indices = @transform_11, window_bounds = array<i64: 32, 32>}, {pipeline_mode = #tpu.pipeline_mode<synchronous>, transform_indices = @transform_12, window_bounds = array<i64: 128, 32>}, {pipeline_mode = #tpu.pipeline_mode<synchronous>, transform_indices = @transform_13, window_bounds = array<i64: 128, 1>}, {transform_indices = @transform_14, window_bounds = array<i64: 128, 256>}]} {
    %c0 = arith.constant 0 : index
    %c0_0 = arith.constant 0 : index
    %0 = vector.load %arg1[%c0, %c0_0] : memref<16x256xf32, #tpu.memory_space<vmem>>, vector<16x256xf32>
    %c0_1 = arith.constant 0 : index
    %c0_2 = arith.constant 0 : index
    %1 = vector.load %arg2[%c0_1, %c0_2] : memref<16x1xf32, #tpu.memory_space<vmem>>, vector<16x1xf32>
    %2 = vector.broadcast %1 : vector<16x1xf32> to vector<16x256xf32>
    %3 = arith.mulf %0, %2 : vector<16x256xf32>
    %c0_3 = arith.constant 0 : index
    %c0_4 = arith.constant 0 : index
    %4 = vector.load %arg3[%c0_3, %c0_4] : memref<16x1xf32, #tpu.memory_space<vmem>>, vector<16x1xf32>
    %5 = vector.broadcast %4 : vector<16x1xf32> to vector<16x256xf32>
    %6 = arith.addf %3, %5 : vector<16x256xf32>
    %c0_5 = arith.constant 0 : index
    %c0_6 = arith.constant 0 : index
    %c0_7 = arith.constant 0 : index
    %7 = vector.load %arg4[%c0_5, %c0_6, %c0_7] : memref<6x128x16xbf16, #tpu.memory_space<vmem>>, vector<1x128x16xbf16>
    %8 = vector.shape_cast %7 : vector<1x128x16xbf16> to vector<128x16xbf16>
    %c0_8 = arith.constant 0 : index
    %c0_9 = arith.constant 0 : index
    %c0_10 = arith.constant 0 : index
    %9 = vector.load %arg5[%c0_8, %c0_9, %c0_10] : memref<6x128x1xf32, #tpu.memory_space<vmem>>, vector<1x128x1xf32>
    %10 = vector.shape_cast %9 : vector<1x128x1xf32> to vector<128x1xf32>
    %11 = arith.truncf %6 : vector<16x256xf32> to vector<16x256xbf16>
    %cst = arith.constant dense<0.000000e+00> : vector<128x256xf32>
    %12 = tpu.matmul %8, %11, %cst {dimension_numbers = #tpu.dot_dimension_numbers<[1], [0], [0], [1], [0, 0, 1, 1], [], []>} : vector<128x16xbf16>, vector<16x256xbf16>, vector<128x256xf32> -> vector<128x256xf32>
    %13 = arith.truncf %12 : vector<128x256xf32> to vector<128x256xbf16>
    %14 = arith.truncf %10 : vector<128x1xf32> to vector<128x1xbf16>
    %15 = vector.broadcast %14 : vector<128x1xbf16> to vector<128x256xbf16>
    %16 = arith.addf %13, %15 : vector<128x256xbf16>
    %17 = vector.extract_strided_slice %16 {offsets = [0, 0], sizes = [64, 256], strides = [1, 1]} : vector<128x256xbf16> to vector<64x256xbf16>
    %18 = vector.extract_strided_slice %16 {offsets = [64, 0], sizes = [64, 256], strides = [1, 1]} : vector<128x256xbf16> to vector<64x256xbf16>
    %19 = arith.negf %18 : vector<64x256xbf16>
    %20 = math.exp %19 : vector<64x256xbf16>
    %cst_11 = arith.constant 1.000000e+00 : bf16
    %21 = vector.broadcast %cst_11 : bf16 to vector<64x256xbf16>
    %22 = arith.addf %21, %20 : vector<64x256xbf16>
    %23 = arith.divf %21, %22 : vector<64x256xbf16>
    %24 = arith.mulf %17, %23 : vector<64x256xbf16>
    %c0_12 = arith.constant 0 : index
    %c0_13 = arith.constant 0 : index
    %c0_14 = arith.constant 0 : index
    %25 = vector.load %arg6[%c0_12, %c0_13, %c0_14] : memref<6x128x64xbf16, #tpu.memory_space<vmem>>, vector<1x128x64xbf16>
    %26 = vector.shape_cast %25 : vector<1x128x64xbf16> to vector<128x64xbf16>
    %c0_15 = arith.constant 0 : index
    %c0_16 = arith.constant 0 : index
    %c0_17 = arith.constant 0 : index
    %27 = vector.load %arg7[%c0_15, %c0_16, %c0_17] : memref<6x128x1xf32, #tpu.memory_space<vmem>>, vector<1x128x1xf32>
    %28 = vector.shape_cast %27 : vector<1x128x1xf32> to vector<128x1xf32>
    %cst_18 = arith.constant dense<0.000000e+00> : vector<128x256xf32>
    %29 = tpu.matmul %26, %24, %cst_18 {dimension_numbers = #tpu.dot_dimension_numbers<[1], [0], [0], [1], [0, 0, 1, 1], [], []>} : vector<128x64xbf16>, vector<64x256xbf16>, vector<128x256xf32> -> vector<128x256xf32>
    %30 = arith.truncf %29 : vector<128x256xf32> to vector<128x256xbf16>
    %31 = arith.truncf %28 : vector<128x1xf32> to vector<128x1xbf16>
    %32 = vector.broadcast %31 : vector<128x1xbf16> to vector<128x256xbf16>
    %33 = arith.addf %30, %32 : vector<128x256xbf16>
    %34 = vector.extract_strided_slice %33 {offsets = [0, 0], sizes = [64, 256], strides = [1, 1]} : vector<128x256xbf16> to vector<64x256xbf16>
    %35 = vector.extract_strided_slice %33 {offsets = [64, 0], sizes = [64, 256], strides = [1, 1]} : vector<128x256xbf16> to vector<64x256xbf16>
    %36 = arith.negf %35 : vector<64x256xbf16>
    %37 = math.exp %36 : vector<64x256xbf16>
    %cst_19 = arith.constant 1.000000e+00 : bf16
    %38 = vector.broadcast %cst_19 : bf16 to vector<64x256xbf16>
    %39 = arith.addf %38, %37 : vector<64x256xbf16>
    %40 = arith.divf %38, %39 : vector<64x256xbf16>
    %41 = arith.mulf %34, %40 : vector<64x256xbf16>
    %42 = arith.addf %24, %41 : vector<64x256xbf16>
    %cst_20 = arith.constant 7.070310e-01 : bf16
    %43 = vector.broadcast %cst_20 : bf16 to vector<64x256xbf16>
    %44 = arith.mulf %42, %43 : vector<64x256xbf16>
    %c0_21 = arith.constant 0 : index
    %c0_22 = arith.constant 0 : index
    %c0_23 = arith.constant 0 : index
    %45 = vector.load %arg8[%c0_21, %c0_22, %c0_23] : memref<12x128x64xbf16, #tpu.memory_space<vmem>>, vector<1x128x64xbf16>
    %46 = vector.shape_cast %45 : vector<1x128x64xbf16> to vector<128x64xbf16>
    %c0_24 = arith.constant 0 : index
    %c0_25 = arith.constant 0 : index
    %c0_26 = arith.constant 0 : index
    %47 = vector.load %arg9[%c0_24, %c0_25, %c0_26] : memref<12x128x1xf32, #tpu.memory_space<vmem>>, vector<1x128x1xf32>
    %48 = vector.shape_cast %47 : vector<1x128x1xf32> to vector<128x1xf32>
    %cst_27 = arith.constant dense<0.000000e+00> : vector<128x256xf32>
    %49 = tpu.matmul %46, %44, %cst_27 {dimension_numbers = #tpu.dot_dimension_numbers<[1], [0], [0], [1], [0, 0, 1, 1], [], []>} : vector<128x64xbf16>, vector<64x256xbf16>, vector<128x256xf32> -> vector<128x256xf32>
    %50 = arith.truncf %49 : vector<128x256xf32> to vector<128x256xbf16>
    %51 = arith.truncf %48 : vector<128x1xf32> to vector<128x1xbf16>
    %52 = vector.broadcast %51 : vector<128x1xbf16> to vector<128x256xbf16>
    %53 = arith.addf %50, %52 : vector<128x256xbf16>
    %54 = vector.extract_strided_slice %53 {offsets = [0, 0], sizes = [64, 256], strides = [1, 1]} : vector<128x256xbf16> to vector<64x256xbf16>
    %55 = vector.extract_strided_slice %53 {offsets = [64, 0], sizes = [64, 256], strides = [1, 1]} : vector<128x256xbf16> to vector<64x256xbf16>
    %56 = arith.negf %55 : vector<64x256xbf16>
    %57 = math.exp %56 : vector<64x256xbf16>
    %cst_28 = arith.constant 1.000000e+00 : bf16
    %58 = vector.broadcast %cst_28 : bf16 to vector<64x256xbf16>
    %59 = arith.addf %58, %57 : vector<64x256xbf16>
    %60 = arith.divf %58, %59 : vector<64x256xbf16>
    %61 = arith.mulf %54, %60 : vector<64x256xbf16>
    %62 = arith.addf %44, %61 : vector<64x256xbf16>
    %cst_29 = arith.constant 7.070310e-01 : bf16
    %63 = vector.broadcast %cst_29 : bf16 to vector<64x256xbf16>
    %64 = arith.mulf %62, %63 : vector<64x256xbf16>
    %c1 = arith.constant 1 : index
    %c0_30 = arith.constant 0 : index
    %c0_31 = arith.constant 0 : index
    %65 = vector.load %arg8[%c1, %c0_30, %c0_31] : memref<12x128x64xbf16, #tpu.memory_space<vmem>>, vector<1x128x64xbf16>
    %66 = vector.shape_cast %65 : vector<1x128x64xbf16> to vector<128x64xbf16>
    %c1_32 = arith.constant 1 : index
    %c0_33 = arith.constant 0 : index
    %c0_34 = arith.constant 0 : index
    %67 = vector.load %arg9[%c1_32, %c0_33, %c0_34] : memref<12x128x1xf32, #tpu.memory_space<vmem>>, vector<1x128x1xf32>
    %68 = vector.shape_cast %67 : vector<1x128x1xf32> to vector<128x1xf32>
    %cst_35 = arith.constant dense<0.000000e+00> : vector<128x256xf32>
    %69 = tpu.matmul %66, %64, %cst_35 {dimension_numbers = #tpu.dot_dimension_numbers<[1], [0], [0], [1], [0, 0, 1, 1], [], []>} : vector<128x64xbf16>, vector<64x256xbf16>, vector<128x256xf32> -> vector<128x256xf32>
    %70 = arith.truncf %69 : vector<128x256xf32> to vector<128x256xbf16>
    %71 = arith.truncf %68 : vector<128x1xf32> to vector<128x1xbf16>
    %72 = vector.broadcast %71 : vector<128x1xbf16> to vector<128x256xbf16>
    %73 = arith.addf %70, %72 : vector<128x256xbf16>
    %74 = vector.extract_strided_slice %73 {offsets = [0, 0], sizes = [64, 256], strides = [1, 1]} : vector<128x256xbf16> to vector<64x256xbf16>
    %75 = vector.extract_strided_slice %73 {offsets = [64, 0], sizes = [64, 256], strides = [1, 1]} : vector<128x256xbf16> to vector<64x256xbf16>
    %76 = arith.negf %75 : vector<64x256xbf16>
    %77 = math.exp %76 : vector<64x256xbf16>
    %cst_36 = arith.constant 1.000000e+00 : bf16
    %78 = vector.broadcast %cst_36 : bf16 to vector<64x256xbf16>
    %79 = arith.addf %78, %77 : vector<64x256xbf16>
    %80 = arith.divf %78, %79 : vector<64x256xbf16>
    %81 = arith.mulf %74, %80 : vector<64x256xbf16>
    %82 = arith.addf %64, %81 : vector<64x256xbf16>
    %cst_37 = arith.constant 7.070310e-01 : bf16
    %83 = vector.broadcast %cst_37 : bf16 to vector<64x256xbf16>
    %84 = arith.mulf %82, %83 : vector<64x256xbf16>
    %85 = vector.extract_strided_slice %84 {offsets = [32, 0], sizes = [32, 256], strides = [1, 1]} : vector<64x256xbf16> to vector<32x256xbf16>
    %cst_38 = arith.constant 1.000000e+00 : f32
    %86 = vector.broadcast %cst_38 : f32 to vector<16x256xf32>
    %cst_39 = arith.constant 0.000000e+00 : f32
    %87 = vector.broadcast %cst_39 : f32 to vector<32x256xf32>
    %c0_i32 = arith.constant 0 : i32
    %c5_i32 = arith.constant 5 : i32
    %88 = arith.addi %c0_i32, %c5_i32 : i32
    %c1_i32 = arith.constant 1 : i32
    %89:3 = scf.for %arg16 = %c0_i32 to %88 step %c1_i32 iter_args(%arg17 = %86, %arg18 = %87, %arg19 = %85) -> (vector<16x256xf32>, vector<32x256xf32>, vector<32x256xbf16>)  : i32 {
      %100 = arith.index_cast %arg16 : i32 to index
      %c0_51 = arith.constant 0 : index
      %c0_52 = arith.constant 0 : index
      %101 = vector.load %arg10[%100, %c0_51, %c0_52] : memref<5x16x32xbf16, #tpu.memory_space<vmem>>, vector<1x16x32xbf16>
      %102 = vector.shape_cast %101 : vector<1x16x32xbf16> to vector<16x32xbf16>
      %cst_53 = arith.constant dense<0.000000e+00> : vector<16x256xf32>
      %103 = tpu.matmul %102, %arg19, %cst_53 {dimension_numbers = #tpu.dot_dimension_numbers<[1], [0], [0], [1], [0, 0, 1, 1], [], []>} : vector<16x32xbf16>, vector<32x256xbf16>, vector<16x256xf32> -> vector<16x256xf32>
      %104 = arith.index_cast %arg16 : i32 to index
      %c0_54 = arith.constant 0 : index
      %c0_55 = arith.constant 0 : index
      %105 = vector.load %arg11[%104, %c0_54, %c0_55] : memref<5x16x1xf32, #tpu.memory_space<vmem>>, vector<1x16x1xf32>
      %106 = vector.shape_cast %105 : vector<1x16x1xf32> to vector<16x1xf32>
      %107 = vector.broadcast %106 : vector<16x1xf32> to vector<16x256xf32>
      %108 = arith.addf %103, %107 : vector<16x256xf32>
      %109 = arith.mulf %108, %arg17 : vector<16x256xf32>
      %cst_56 = arith.constant 0.000000e+00 : f32
      %110 = vector.broadcast %cst_56 : f32 to vector<16x256xf32>
      %cst_57 = arith.constant 0.000000e+00 : f32
      %111 = vector.broadcast %cst_57 : f32 to vector<16x256xf32>
      %112 = vector.extract_strided_slice %109 {offsets = [0, 0], sizes = [1, 256], strides = [1, 1]} : vector<16x256xf32> to vector<1x256xf32>
      %113 = vector.broadcast %112 : vector<1x256xf32> to vector<16x256xf32>
      %114 = arith.cmpf oge, %113, %109 : vector<16x256xf32>
      %115 = arith.extui %114 : vector<16x256xi1> to vector<16x256xi32>
      %116 = arith.sitofp %115 : vector<16x256xi32> to vector<16x256xf32>
      %117 = arith.addf %110, %116 : vector<16x256xf32>
      %118 = vector.broadcast %112 : vector<1x256xf32> to vector<16x256xf32>
      %119 = arith.mulf %118, %116 : vector<16x256xf32>
      %120 = arith.addf %111, %119 : vector<16x256xf32>
      %121 = vector.extract_strided_slice %109 {offsets = [1, 0], sizes = [1, 256], strides = [1, 1]} : vector<16x256xf32> to vector<1x256xf32>
      %122 = vector.broadcast %121 : vector<1x256xf32> to vector<16x256xf32>
      %123 = arith.cmpf oge, %122, %109 : vector<16x256xf32>
      %124 = arith.extui %123 : vector<16x256xi1> to vector<16x256xi32>
      %125 = arith.sitofp %124 : vector<16x256xi32> to vector<16x256xf32>
      %126 = arith.addf %117, %125 : vector<16x256xf32>
      %127 = vector.broadcast %121 : vector<1x256xf32> to vector<16x256xf32>
      %128 = arith.mulf %127, %125 : vector<16x256xf32>
      %129 = arith.addf %120, %128 : vector<16x256xf32>
      %130 = vector.extract_strided_slice %109 {offsets = [2, 0], sizes = [1, 256], strides = [1, 1]} : vector<16x256xf32> to vector<1x256xf32>
      %131 = vector.broadcast %130 : vector<1x256xf32> to vector<16x256xf32>
      %132 = arith.cmpf oge, %131, %109 : vector<16x256xf32>
      %133 = arith.extui %132 : vector<16x256xi1> to vector<16x256xi32>
      %134 = arith.sitofp %133 : vector<16x256xi32> to vector<16x256xf32>
      %135 = arith.addf %126, %134 : vector<16x256xf32>
      %136 = vector.broadcast %130 : vector<1x256xf32> to vector<16x256xf32>
      %137 = arith.mulf %136, %134 : vector<16x256xf32>
      %138 = arith.addf %129, %137 : vector<16x256xf32>
      %139 = vector.extract_strided_slice %109 {offsets = [3, 0], sizes = [1, 256], strides = [1, 1]} : vector<16x256xf32> to vector<1x256xf32>
      %140 = vector.broadcast %139 : vector<1x256xf32> to vector<16x256xf32>
      %141 = arith.cmpf oge, %140, %109 : vector<16x256xf32>
      %142 = arith.extui %141 : vector<16x256xi1> to vector<16x256xi32>
      %143 = arith.sitofp %142 : vector<16x256xi32> to vector<16x256xf32>
      %144 = arith.addf %135, %143 : vector<16x256xf32>
      %145 = vector.broadcast %139 : vector<1x256xf32> to vector<16x256xf32>
      %146 = arith.mulf %145, %143 : vector<16x256xf32>
      %147 = arith.addf %138, %146 : vector<16x256xf32>
      %148 = vector.extract_strided_slice %109 {offsets = [4, 0], sizes = [1, 256], strides = [1, 1]} : vector<16x256xf32> to vector<1x256xf32>
      %149 = vector.broadcast %148 : vector<1x256xf32> to vector<16x256xf32>
      %150 = arith.cmpf oge, %149, %109 : vector<16x256xf32>
      %151 = arith.extui %150 : vector<16x256xi1> to vector<16x256xi32>
      %152 = arith.sitofp %151 : vector<16x256xi32> to vector<16x256xf32>
      %153 = arith.addf %144, %152 : vector<16x256xf32>
      %154 = vector.broadcast %148 : vector<1x256xf32> to vector<16x256xf32>
      %155 = arith.mulf %154, %152 : vector<16x256xf32>
      %156 = arith.addf %147, %155 : vector<16x256xf32>
      %157 = vector.extract_strided_slice %109 {offsets = [5, 0], sizes = [1, 256], strides = [1, 1]} : vector<16x256xf32> to vector<1x256xf32>
      %158 = vector.broadcast %157 : vector<1x256xf32> to vector<16x256xf32>
      %159 = arith.cmpf oge, %158, %109 : vector<16x256xf32>
      %160 = arith.extui %159 : vector<16x256xi1> to vector<16x256xi32>
      %161 = arith.sitofp %160 : vector<16x256xi32> to vector<16x256xf32>
      %162 = arith.addf %153, %161 : vector<16x256xf32>
      %163 = vector.broadcast %157 : vector<1x256xf32> to vector<16x256xf32>
      %164 = arith.mulf %163, %161 : vector<16x256xf32>
      %165 = arith.addf %156, %164 : vector<16x256xf32>
      %166 = vector.extract_strided_slice %109 {offsets = [6, 0], sizes = [1, 256], strides = [1, 1]} : vector<16x256xf32> to vector<1x256xf32>
      %167 = vector.broadcast %166 : vector<1x256xf32> to vector<16x256xf32>
      %168 = arith.cmpf oge, %167, %109 : vector<16x256xf32>
      %169 = arith.extui %168 : vector<16x256xi1> to vector<16x256xi32>
      %170 = arith.sitofp %169 : vector<16x256xi32> to vector<16x256xf32>
      %171 = arith.addf %162, %170 : vector<16x256xf32>
      %172 = vector.broadcast %166 : vector<1x256xf32> to vector<16x256xf32>
      %173 = arith.mulf %172, %170 : vector<16x256xf32>
      %174 = arith.addf %165, %173 : vector<16x256xf32>
      %175 = vector.extract_strided_slice %109 {offsets = [7, 0], sizes = [1, 256], strides = [1, 1]} : vector<16x256xf32> to vector<1x256xf32>
      %176 = vector.broadcast %175 : vector<1x256xf32> to vector<16x256xf32>
      %177 = arith.cmpf oge, %176, %109 : vector<16x256xf32>
      %178 = arith.extui %177 : vector<16x256xi1> to vector<16x256xi32>
      %179 = arith.sitofp %178 : vector<16x256xi32> to vector<16x256xf32>
      %180 = arith.addf %171, %179 : vector<16x256xf32>
      %181 = vector.broadcast %175 : vector<1x256xf32> to vector<16x256xf32>
      %182 = arith.mulf %181, %179 : vector<16x256xf32>
      %183 = arith.addf %174, %182 : vector<16x256xf32>
      %184 = vector.extract_strided_slice %109 {offsets = [8, 0], sizes = [1, 256], strides = [1, 1]} : vector<16x256xf32> to vector<1x256xf32>
      %185 = vector.broadcast %184 : vector<1x256xf32> to vector<16x256xf32>
      %186 = arith.cmpf oge, %185, %109 : vector<16x256xf32>
      %187 = arith.extui %186 : vector<16x256xi1> to vector<16x256xi32>
      %188 = arith.sitofp %187 : vector<16x256xi32> to vector<16x256xf32>
      %189 = arith.addf %180, %188 : vector<16x256xf32>
      %190 = vector.broadcast %184 : vector<1x256xf32> to vector<16x256xf32>
      %191 = arith.mulf %190, %188 : vector<16x256xf32>
      %192 = arith.addf %183, %191 : vector<16x256xf32>
      %193 = vector.extract_strided_slice %109 {offsets = [9, 0], sizes = [1, 256], strides = [1, 1]} : vector<16x256xf32> to vector<1x256xf32>
      %194 = vector.broadcast %193 : vector<1x256xf32> to vector<16x256xf32>
      %195 = arith.cmpf oge, %194, %109 : vector<16x256xf32>
      %196 = arith.extui %195 : vector<16x256xi1> to vector<16x256xi32>
      %197 = arith.sitofp %196 : vector<16x256xi32> to vector<16x256xf32>
      %198 = arith.addf %189, %197 : vector<16x256xf32>
      %199 = vector.broadcast %193 : vector<1x256xf32> to vector<16x256xf32>
      %200 = arith.mulf %199, %197 : vector<16x256xf32>
      %201 = arith.addf %192, %200 : vector<16x256xf32>
      %202 = vector.extract_strided_slice %109 {offsets = [10, 0], sizes = [1, 256], strides = [1, 1]} : vector<16x256xf32> to vector<1x256xf32>
      %203 = vector.broadcast %202 : vector<1x256xf32> to vector<16x256xf32>
      %204 = arith.cmpf oge, %203, %109 : vector<16x256xf32>
      %205 = arith.extui %204 : vector<16x256xi1> to vector<16x256xi32>
      %206 = arith.sitofp %205 : vector<16x256xi32> to vector<16x256xf32>
      %207 = arith.addf %198, %206 : vector<16x256xf32>
      %208 = vector.broadcast %202 : vector<1x256xf32> to vector<16x256xf32>
      %209 = arith.mulf %208, %206 : vector<16x256xf32>
      %210 = arith.addf %201, %209 : vector<16x256xf32>
      %211 = vector.extract_strided_slice %109 {offsets = [11, 0], sizes = [1, 256], strides = [1, 1]} : vector<16x256xf32> to vector<1x256xf32>
      %212 = vector.broadcast %211 : vector<1x256xf32> to vector<16x256xf32>
      %213 = arith.cmpf oge, %212, %109 : vector<16x256xf32>
      %214 = arith.extui %213 : vector<16x256xi1> to vector<16x256xi32>
      %215 = arith.sitofp %214 : vector<16x256xi32> to vector<16x256xf32>
      %216 = arith.addf %207, %215 : vector<16x256xf32>
      %217 = vector.broadcast %211 : vector<1x256xf32> to vector<16x256xf32>
      %218 = arith.mulf %217, %215 : vector<16x256xf32>
      %219 = arith.addf %210, %218 : vector<16x256xf32>
      %220 = vector.extract_strided_slice %109 {offsets = [12, 0], sizes = [1, 256], strides = [1, 1]} : vector<16x256xf32> to vector<1x256xf32>
      %221 = vector.broadcast %220 : vector<1x256xf32> to vector<16x256xf32>
      %222 = arith.cmpf oge, %221, %109 : vector<16x256xf32>
      %223 = arith.extui %222 : vector<16x256xi1> to vector<16x256xi32>
      %224 = arith.sitofp %223 : vector<16x256xi32> to vector<16x256xf32>
      %225 = arith.addf %216, %224 : vector<16x256xf32>
      %226 = vector.broadcast %220 : vector<1x256xf32> to vector<16x256xf32>
      %227 = arith.mulf %226, %224 : vector<16x256xf32>
      %228 = arith.addf %219, %227 : vector<16x256xf32>
      %229 = vector.extract_strided_slice %109 {offsets = [13, 0], sizes = [1, 256], strides = [1, 1]} : vector<16x256xf32> to vector<1x256xf32>
      %230 = vector.broadcast %229 : vector<1x256xf32> to vector<16x256xf32>
      %231 = arith.cmpf oge, %230, %109 : vector<16x256xf32>
      %232 = arith.extui %231 : vector<16x256xi1> to vector<16x256xi32>
      %233 = arith.sitofp %232 : vector<16x256xi32> to vector<16x256xf32>
      %234 = arith.addf %225, %233 : vector<16x256xf32>
      %235 = vector.broadcast %229 : vector<1x256xf32> to vector<16x256xf32>
      %236 = arith.mulf %235, %233 : vector<16x256xf32>
      %237 = arith.addf %228, %236 : vector<16x256xf32>
      %238 = vector.extract_strided_slice %109 {offsets = [14, 0], sizes = [1, 256], strides = [1, 1]} : vector<16x256xf32> to vector<1x256xf32>
      %239 = vector.broadcast %238 : vector<1x256xf32> to vector<16x256xf32>
      %240 = arith.cmpf oge, %239, %109 : vector<16x256xf32>
      %241 = arith.extui %240 : vector<16x256xi1> to vector<16x256xi32>
      %242 = arith.sitofp %241 : vector<16x256xi32> to vector<16x256xf32>
      %243 = arith.addf %234, %242 : vector<16x256xf32>
      %244 = vector.broadcast %238 : vector<1x256xf32> to vector<16x256xf32>
      %245 = arith.mulf %244, %242 : vector<16x256xf32>
      %246 = arith.addf %237, %245 : vector<16x256xf32>
      %247 = vector.extract_strided_slice %109 {offsets = [15, 0], sizes = [1, 256], strides = [1, 1]} : vector<16x256xf32> to vector<1x256xf32>
      %248 = vector.broadcast %247 : vector<1x256xf32> to vector<16x256xf32>
      %249 = arith.cmpf oge, %248, %109 : vector<16x256xf32>
      %250 = arith.extui %249 : vector<16x256xi1> to vector<16x256xi32>
      %251 = arith.sitofp %250 : vector<16x256xi32> to vector<16x256xf32>
      %252 = arith.addf %243, %251 : vector<16x256xf32>
      %253 = vector.broadcast %247 : vector<1x256xf32> to vector<16x256xf32>
      %254 = arith.mulf %253, %251 : vector<16x256xf32>
      %255 = arith.addf %246, %254 : vector<16x256xf32>
      %256 = arith.mulf %252, %109 : vector<16x256xf32>
      %cst_58 = arith.constant 1.000000e+00 : f32
      %257 = vector.broadcast %cst_58 : f32 to vector<16x256xf32>
      %258 = arith.addf %257, %256 : vector<16x256xf32>
      %259 = arith.cmpf ogt, %258, %255 : vector<16x256xf32>
      %cst_59 = arith.constant 0.000000e+00 : f32
      %260 = vector.broadcast %cst_59 : f32 to vector<16x256xf32>
      %261 = arith.select %259, %252, %260 : vector<16x256xi1>, vector<16x256xf32>
      %cst_60 = arith.constant dense<0xFF800000> : vector<256xf32>
      %262 = vector.multi_reduction <maximumf>, %261, %cst_60 [0] : vector<16x256xf32> to vector<256xf32>
      %263 = vector.shape_cast %262 : vector<256xf32> to vector<1x256xf32>
      %264 = vector.broadcast %263 : vector<1x256xf32> to vector<16x256xf32>
      %265 = arith.cmpf ole, %252, %264 : vector<16x256xf32>
      %cst_61 = arith.constant 0.000000e+00 : f32
      %266 = vector.broadcast %cst_61 : f32 to vector<16x256xf32>
      %267 = arith.select %265, %109, %266 : vector<16x256xi1>, vector<16x256xf32>
      %cst_62 = arith.constant dense<0.000000e+00> : vector<256xf32>
      %268 = vector.multi_reduction <add>, %267, %cst_62 [0] : vector<16x256xf32> to vector<256xf32>
      %269 = vector.shape_cast %268 : vector<256xf32> to vector<1x256xf32>
      %cst_63 = arith.constant 1.000000e+00 : f32
      %270 = vector.broadcast %cst_63 : f32 to vector<1x256xf32>
      %271 = arith.subf %269, %270 : vector<1x256xf32>
      %272 = arith.divf %271, %263 : vector<1x256xf32>
      %273 = vector.broadcast %272 : vector<1x256xf32> to vector<16x256xf32>
      %274 = arith.subf %109, %273 : vector<16x256xf32>
      %cst_64 = arith.constant 0.000000e+00 : f32
      %275 = vector.broadcast %cst_64 : f32 to vector<16x256xf32>
      %276 = arith.maximumf %274, %275 : vector<16x256xf32>
      %cst_65 = arith.constant 1.300000e+00 : f32
      %277 = vector.broadcast %cst_65 : f32 to vector<16x256xf32>
      %278 = arith.subf %277, %276 : vector<16x256xf32>
      %279 = arith.mulf %278, %arg17 : vector<16x256xf32>
      %280 = arith.mulf %276, %6 : vector<16x256xf32>
      %c1_i32_66 = arith.constant 1 : i32
      %281 = arith.addi %arg16, %c1_i32_66 : i32
      %282 = arith.index_cast %281 : i32 to index
      %c0_67 = arith.constant 0 : index
      %c0_68 = arith.constant 0 : index
      %283 = vector.load %arg4[%282, %c0_67, %c0_68] : memref<6x128x16xbf16, #tpu.memory_space<vmem>>, vector<1x128x16xbf16>
      %284 = vector.shape_cast %283 : vector<1x128x16xbf16> to vector<128x16xbf16>
      %285 = arith.index_cast %281 : i32 to index
      %c0_69 = arith.constant 0 : index
      %c0_70 = arith.constant 0 : index
      %286 = vector.load %arg5[%285, %c0_69, %c0_70] : memref<6x128x1xf32, #tpu.memory_space<vmem>>, vector<1x128x1xf32>
      %287 = vector.shape_cast %286 : vector<1x128x1xf32> to vector<128x1xf32>
      %288 = arith.truncf %280 : vector<16x256xf32> to vector<16x256xbf16>
      %cst_71 = arith.constant dense<0.000000e+00> : vector<128x256xf32>
      %289 = tpu.matmul %284, %288, %cst_71 {dimension_numbers = #tpu.dot_dimension_numbers<[1], [0], [0], [1], [0, 0, 1, 1], [], []>} : vector<128x16xbf16>, vector<16x256xbf16>, vector<128x256xf32> -> vector<128x256xf32>
      %290 = arith.truncf %289 : vector<128x256xf32> to vector<128x256xbf16>
      %291 = arith.truncf %287 : vector<128x1xf32> to vector<128x1xbf16>
      %292 = vector.broadcast %291 : vector<128x1xbf16> to vector<128x256xbf16>
      %293 = arith.addf %290, %292 : vector<128x256xbf16>
      %294 = vector.extract_strided_slice %293 {offsets = [0, 0], sizes = [64, 256], strides = [1, 1]} : vector<128x256xbf16> to vector<64x256xbf16>
      %295 = vector.extract_strided_slice %293 {offsets = [64, 0], sizes = [64, 256], strides = [1, 1]} : vector<128x256xbf16> to vector<64x256xbf16>
      %296 = arith.negf %295 : vector<64x256xbf16>
      %297 = math.exp %296 : vector<64x256xbf16>
      %cst_72 = arith.constant 1.000000e+00 : bf16
      %298 = vector.broadcast %cst_72 : bf16 to vector<64x256xbf16>
      %299 = arith.addf %298, %297 : vector<64x256xbf16>
      %300 = arith.divf %298, %299 : vector<64x256xbf16>
      %301 = arith.mulf %294, %300 : vector<64x256xbf16>
      %302 = arith.index_cast %281 : i32 to index
      %c0_73 = arith.constant 0 : index
      %c0_74 = arith.constant 0 : index
      %303 = vector.load %arg6[%302, %c0_73, %c0_74] : memref<6x128x64xbf16, #tpu.memory_space<vmem>>, vector<1x128x64xbf16>
      %304 = vector.shape_cast %303 : vector<1x128x64xbf16> to vector<128x64xbf16>
      %305 = arith.index_cast %281 : i32 to index
      %c0_75 = arith.constant 0 : index
      %c0_76 = arith.constant 0 : index
      %306 = vector.load %arg7[%305, %c0_75, %c0_76] : memref<6x128x1xf32, #tpu.memory_space<vmem>>, vector<1x128x1xf32>
      %307 = vector.shape_cast %306 : vector<1x128x1xf32> to vector<128x1xf32>
      %cst_77 = arith.constant dense<0.000000e+00> : vector<128x256xf32>
      %308 = tpu.matmul %304, %301, %cst_77 {dimension_numbers = #tpu.dot_dimension_numbers<[1], [0], [0], [1], [0, 0, 1, 1], [], []>} : vector<128x64xbf16>, vector<64x256xbf16>, vector<128x256xf32> -> vector<128x256xf32>
      %309 = arith.truncf %308 : vector<128x256xf32> to vector<128x256xbf16>
      %310 = arith.truncf %307 : vector<128x1xf32> to vector<128x1xbf16>
      %311 = vector.broadcast %310 : vector<128x1xbf16> to vector<128x256xbf16>
      %312 = arith.addf %309, %311 : vector<128x256xbf16>
      %313 = vector.extract_strided_slice %312 {offsets = [0, 0], sizes = [64, 256], strides = [1, 1]} : vector<128x256xbf16> to vector<64x256xbf16>
      %314 = vector.extract_strided_slice %312 {offsets = [64, 0], sizes = [64, 256], strides = [1, 1]} : vector<128x256xbf16> to vector<64x256xbf16>
      %315 = arith.negf %314 : vector<64x256xbf16>
      %316 = math.exp %315 : vector<64x256xbf16>
      %cst_78 = arith.constant 1.000000e+00 : bf16
      %317 = vector.broadcast %cst_78 : bf16 to vector<64x256xbf16>
      %318 = arith.addf %317, %316 : vector<64x256xbf16>
      %319 = arith.divf %317, %318 : vector<64x256xbf16>
      %320 = arith.mulf %313, %319 : vector<64x256xbf16>
      %321 = arith.addf %301, %320 : vector<64x256xbf16>
      %cst_79 = arith.constant 7.070310e-01 : bf16
      %322 = vector.broadcast %cst_79 : bf16 to vector<64x256xbf16>
      %323 = arith.mulf %321, %322 : vector<64x256xbf16>
      %c2_i32 = arith.constant 2 : i32
      %324 = arith.muli %c2_i32, %281 : i32
      %c0_i32_80 = arith.constant 0 : i32
      %325 = arith.addi %324, %c0_i32_80 : i32
      %326 = arith.index_cast %325 : i32 to index
      %c0_81 = arith.constant 0 : index
      %c0_82 = arith.constant 0 : index
      %327 = vector.load %arg8[%326, %c0_81, %c0_82] : memref<12x128x64xbf16, #tpu.memory_space<vmem>>, vector<1x128x64xbf16>
      %328 = vector.shape_cast %327 : vector<1x128x64xbf16> to vector<128x64xbf16>
      %c2_i32_83 = arith.constant 2 : i32
      %329 = arith.muli %c2_i32_83, %281 : i32
      %c0_i32_84 = arith.constant 0 : i32
      %330 = arith.addi %329, %c0_i32_84 : i32
      %331 = arith.index_cast %330 : i32 to index
      %c0_85 = arith.constant 0 : index
      %c0_86 = arith.constant 0 : index
      %332 = vector.load %arg9[%331, %c0_85, %c0_86] : memref<12x128x1xf32, #tpu.memory_space<vmem>>, vector<1x128x1xf32>
      %333 = vector.shape_cast %332 : vector<1x128x1xf32> to vector<128x1xf32>
      %cst_87 = arith.constant dense<0.000000e+00> : vector<128x256xf32>
      %334 = tpu.matmul %328, %323, %cst_87 {dimension_numbers = #tpu.dot_dimension_numbers<[1], [0], [0], [1], [0, 0, 1, 1], [], []>} : vector<128x64xbf16>, vector<64x256xbf16>, vector<128x256xf32> -> vector<128x256xf32>
      %335 = arith.truncf %334 : vector<128x256xf32> to vector<128x256xbf16>
      %336 = arith.truncf %333 : vector<128x1xf32> to vector<128x1xbf16>
      %337 = vector.broadcast %336 : vector<128x1xbf16> to vector<128x256xbf16>
      %338 = arith.addf %335, %337 : vector<128x256xbf16>
      %339 = vector.extract_strided_slice %338 {offsets = [0, 0], sizes = [64, 256], strides = [1, 1]} : vector<128x256xbf16> to vector<64x256xbf16>
      %340 = vector.extract_strided_slice %338 {offsets = [64, 0], sizes = [64, 256], strides = [1, 1]} : vector<128x256xbf16> to vector<64x256xbf16>
      %341 = arith.negf %340 : vector<64x256xbf16>
      %342 = math.exp %341 : vector<64x256xbf16>
      %cst_88 = arith.constant 1.000000e+00 : bf16
      %343 = vector.broadcast %cst_88 : bf16 to vector<64x256xbf16>
      %344 = arith.addf %343, %342 : vector<64x256xbf16>
      %345 = arith.divf %343, %344 : vector<64x256xbf16>
      %346 = arith.mulf %339, %345 : vector<64x256xbf16>
      %347 = arith.addf %323, %346 : vector<64x256xbf16>
      %cst_89 = arith.constant 7.070310e-01 : bf16
      %348 = vector.broadcast %cst_89 : bf16 to vector<64x256xbf16>
      %349 = arith.mulf %347, %348 : vector<64x256xbf16>
      %c2_i32_90 = arith.constant 2 : i32
      %350 = arith.muli %c2_i32_90, %281 : i32
      %c1_i32_91 = arith.constant 1 : i32
      %351 = arith.addi %350, %c1_i32_91 : i32
      %352 = arith.index_cast %351 : i32 to index
      %c0_92 = arith.constant 0 : index
      %c0_93 = arith.constant 0 : index
      %353 = vector.load %arg8[%352, %c0_92, %c0_93] : memref<12x128x64xbf16, #tpu.memory_space<vmem>>, vector<1x128x64xbf16>
      %354 = vector.shape_cast %353 : vector<1x128x64xbf16> to vector<128x64xbf16>
      %c2_i32_94 = arith.constant 2 : i32
      %355 = arith.muli %c2_i32_94, %281 : i32
      %c1_i32_95 = arith.constant 1 : i32
      %356 = arith.addi %355, %c1_i32_95 : i32
      %357 = arith.index_cast %356 : i32 to index
      %c0_96 = arith.constant 0 : index
      %c0_97 = arith.constant 0 : index
      %358 = vector.load %arg9[%357, %c0_96, %c0_97] : memref<12x128x1xf32, #tpu.memory_space<vmem>>, vector<1x128x1xf32>
      %359 = vector.shape_cast %358 : vector<1x128x1xf32> to vector<128x1xf32>
      %cst_98 = arith.constant dense<0.000000e+00> : vector<128x256xf32>
      %360 = tpu.matmul %354, %349, %cst_98 {dimension_numbers = #tpu.dot_dimension_numbers<[1], [0], [0], [1], [0, 0, 1, 1], [], []>} : vector<128x64xbf16>, vector<64x256xbf16>, vector<128x256xf32> -> vector<128x256xf32>
      %361 = arith.truncf %360 : vector<128x256xf32> to vector<128x256xbf16>
      %362 = arith.truncf %359 : vector<128x1xf32> to vector<128x1xbf16>
      %363 = vector.broadcast %362 : vector<128x1xbf16> to vector<128x256xbf16>
      %364 = arith.addf %361, %363 : vector<128x256xbf16>
      %365 = vector.extract_strided_slice %364 {offsets = [0, 0], sizes = [64, 256], strides = [1, 1]} : vector<128x256xbf16> to vector<64x256xbf16>
      %366 = vector.extract_strided_slice %364 {offsets = [64, 0], sizes = [64, 256], strides = [1, 1]} : vector<128x256xbf16> to vector<64x256xbf16>
      %367 = arith.negf %366 : vector<64x256xbf16>
      %368 = math.exp %367 : vector<64x256xbf16>
      %cst_99 = arith.constant 1.000000e+00 : bf16
      %369 = vector.broadcast %cst_99 : bf16 to vector<64x256xbf16>
      %370 = arith.addf %369, %368 : vector<64x256xbf16>
      %371 = arith.divf %369, %370 : vector<64x256xbf16>
      %372 = arith.mulf %365, %371 : vector<64x256xbf16>
      %373 = arith.addf %349, %372 : vector<64x256xbf16>
      %cst_100 = arith.constant 7.070310e-01 : bf16
      %374 = vector.broadcast %cst_100 : bf16 to vector<64x256xbf16>
      %375 = arith.mulf %373, %374 : vector<64x256xbf16>
      %376 = vector.extract_strided_slice %375 {offsets = [0, 0], sizes = [32, 256], strides = [1, 1]} : vector<64x256xbf16> to vector<32x256xbf16>
      %cst_101 = arith.constant 0.000000e+00 : bf16
      %377 = vector.broadcast %cst_101 : bf16 to vector<32x256xbf16>
      %378 = arith.maximumf %376, %377 : vector<32x256xbf16>
      %379 = arith.extf %378 : vector<32x256xbf16> to vector<32x256xf32>
      %380 = arith.addf %arg18, %379 : vector<32x256xf32>
      %381 = vector.extract_strided_slice %375 {offsets = [32, 0], sizes = [32, 256], strides = [1, 1]} : vector<64x256xbf16> to vector<32x256xbf16>
      scf.yield %279, %380, %381 : vector<16x256xf32>, vector<32x256xf32>, vector<32x256xbf16>
    }
    %c5_i32_40 = arith.constant 5 : i32
    %c0_41 = arith.constant 0 : index
    %c0_42 = arith.constant 0 : index
    %90 = vector.load %arg12[%c0_41, %c0_42] : memref<32x32xbf16, #tpu.memory_space<vmem>>, vector<32x32xbf16>
    %91 = arith.truncf %89#1 : vector<32x256xf32> to vector<32x256xbf16>
    %cst_43 = arith.constant dense<0.000000e+00> : vector<32x256xf32>
    %92 = tpu.matmul %90, %91, %cst_43 {dimension_numbers = #tpu.dot_dimension_numbers<[1], [0], [0], [1], [0, 0, 1, 1], [], []>} : vector<32x32xbf16>, vector<32x256xbf16>, vector<32x256xf32> -> vector<32x256xf32>
    %c0_44 = arith.constant 0 : index
    %c0_45 = arith.constant 0 : index
    %93 = vector.load %arg13[%c0_44, %c0_45] : memref<128x32xbf16, #tpu.memory_space<vmem>>, vector<128x32xbf16>
    %94 = arith.truncf %92 : vector<32x256xf32> to vector<32x256xbf16>
    %cst_46 = arith.constant dense<0.000000e+00> : vector<128x256xf32>
    %95 = tpu.matmul %93, %94, %cst_46 {dimension_numbers = #tpu.dot_dimension_numbers<[1], [0], [0], [1], [0, 0, 1, 1], [], []>} : vector<128x32xbf16>, vector<32x256xbf16>, vector<128x256xf32> -> vector<128x256xf32>
    %c0_47 = arith.constant 0 : index
    %c0_48 = arith.constant 0 : index
    %96 = vector.load %arg14[%c0_47, %c0_48] : memref<128x1xf32, #tpu.memory_space<vmem>>, vector<128x1xf32>
    %97 = vector.broadcast %96 : vector<128x1xf32> to vector<128x256xf32>
    %98 = arith.addf %95, %97 : vector<128x256xf32>
    %c0_49 = arith.constant 0 : index
    %c0_50 = arith.constant 0 : index
    %99 = vector.load %arg15[%c0_49, %c0_50] : memref<128x256xf32, #tpu.memory_space<vmem>>, vector<128x256xf32>
    tpu.vector_store %arg15[%c0_49, %c0_50], %98 {strides = array<i32>} : memref<128x256xf32, #tpu.memory_space<vmem>>, vector<128x256xf32>,
    return
  }
  func.func @transform_0(%arg0: i32) -> (i32, i32) {
    %c0_i32 = arith.constant 0 : i32
    %c0_i32_0 = arith.constant 0 : i32
    return %c0_i32, %arg0 : i32, i32
  }
  func.func @transform_1(%arg0: i32) -> (i32, i32) {
    %c0_i32 = arith.constant 0 : i32
    %c0_i32_0 = arith.constant 0 : i32
    %c0_i32_1 = arith.constant 0 : i32
    return %c0_i32, %c0_i32_0 : i32, i32
  }
  func.func @transform_2(%arg0: i32) -> (i32, i32) {
    %c0_i32 = arith.constant 0 : i32
    %c0_i32_0 = arith.constant 0 : i32
    %c0_i32_1 = arith.constant 0 : i32
    return %c0_i32, %c0_i32_0 : i32, i32
  }
  func.func @transform_3(%arg0: i32) -> (i32, i32, i32) {
    %c0_i32 = arith.constant 0 : i32
    %c0_i32_0 = arith.constant 0 : i32
    %c0_i32_1 = arith.constant 0 : i32
    %c0_i32_2 = arith.constant 0 : i32
    return %c0_i32, %c0_i32_0, %c0_i32_1 : i32, i32, i32
  }
  func.func @transform_4(%arg0: i32) -> (i32, i32, i32) {
    %c0_i32 = arith.constant 0 : i32
    %c0_i32_0 = arith.constant 0 : i32
    %c0_i32_1 = arith.constant 0 : i32
    %c0_i32_2 = arith.constant 0 : i32
    return %c0_i32, %c0_i32_0, %c0_i32_1 : i32, i32, i32
  }
  func.func @transform_5(%arg0: i32) -> (i32, i32, i32) {
    %c0_i32 = arith.constant 0 : i32
    %c0_i32_0 = arith.constant 0 : i32
    %c0_i32_1 = arith.constant 0 : i32
    %c0_i32_2 = arith.constant 0 : i32
    return %c0_i32, %c0_i32_0, %c0_i32_1 : i32, i32, i32
  }
  func.func @transform_6(%arg0: i32) -> (i32, i32, i32) {
    %c0_i32 = arith.constant 0 : i32
    %c0_i32_0 = arith.constant 0 : i32
    %c0_i32_1 = arith.constant 0 : i32
    %c0_i32_2 = arith.constant 0 : i32
    return %c0_i32, %c0_i32_0, %c0_i32_1 : i32, i32, i32
  }
  func.func @transform_7(%arg0: i32) -> (i32, i32, i32) {
    %c0_i32 = arith.constant 0 : i32
    %c0_i32_0 = arith.constant 0 : i32
    %c0_i32_1 = arith.constant 0 : i32
    %c0_i32_2 = arith.constant 0 : i32
    return %c0_i32, %c0_i32_0, %c0_i32_1 : i32, i32, i32
  }
  func.func @transform_8(%arg0: i32) -> (i32, i32, i32) {
    %c0_i32 = arith.constant 0 : i32
    %c0_i32_0 = arith.constant 0 : i32
    %c0_i32_1 = arith.constant 0 : i32
    %c0_i32_2 = arith.constant 0 : i32
    return %c0_i32, %c0_i32_0, %c0_i32_1 : i32, i32, i32
  }
  func.func @transform_9(%arg0: i32) -> (i32, i32, i32) {
    %c0_i32 = arith.constant 0 : i32
    %c0_i32_0 = arith.constant 0 : i32
    %c0_i32_1 = arith.constant 0 : i32
    %c0_i32_2 = arith.constant 0 : i32
    return %c0_i32, %c0_i32_0, %c0_i32_1 : i32, i32, i32
  }
  func.func @transform_10(%arg0: i32) -> (i32, i32, i32) {
    %c0_i32 = arith.constant 0 : i32
    %c0_i32_0 = arith.constant 0 : i32
    %c0_i32_1 = arith.constant 0 : i32
    %c0_i32_2 = arith.constant 0 : i32
    return %c0_i32, %c0_i32_0, %c0_i32_1 : i32, i32, i32
  }
  func.func @transform_11(%arg0: i32) -> (i32, i32) {
    %c0_i32 = arith.constant 0 : i32
    %c0_i32_0 = arith.constant 0 : i32
    %c0_i32_1 = arith.constant 0 : i32
    return %c0_i32, %c0_i32_0 : i32, i32
  }
  func.func @transform_12(%arg0: i32) -> (i32, i32) {
    %c0_i32 = arith.constant 0 : i32
    %c0_i32_0 = arith.constant 0 : i32
    %c0_i32_1 = arith.constant 0 : i32
    return %c0_i32, %c0_i32_0 : i32, i32
  }
  func.func @transform_13(%arg0: i32) -> (i32, i32) {
    %c0_i32 = arith.constant 0 : i32
    %c0_i32_0 = arith.constant 0 : i32
    %c0_i32_1 = arith.constant 0 : i32
    return %c0_i32, %c0_i32_0 : i32, i32
  }
  func.func @transform_14(%arg0: i32) -> (i32, i32) {
    %c0_i32 = arith.constant 0 : i32
    %c0_i32_0 = arith.constant 0 : i32
    return %c0_i32, %arg0 : i32, i32
  }
}

</mosaic_0001>

<llo_original>
// kernel: tpu_custom_call.1
$region0: #{tpu_custom_call.1}
  #allocation0 [shape = 'u32[]', space=smem, size = 0x4, offset = 0x4, fixed_abs, tag = 'smem constant byte address 0x4 - core index']
  #allocation1 [shape = 'u32[144,128]{1,0:T(1,128)}', space=vmem, size = 0x12000, scoped, tag = 'internal scratch']
  %s0 = inlined_call_operand.vmem [shape: f32[16,512], index: 0, kind: input, shape index: {}]
  %s1 = inlined_call_operand.vmem [shape: f32[16,1], index: 1, kind: input, shape index: {}]
  %s2 = inlined_call_operand.vmem [shape: f32[16,1], index: 2, kind: input, shape index: {}]
  %s3 = inlined_call_operand.vmem [shape: bf16[6,128,16], index: 3, kind: input, shape index: {}]
  %s4 = inlined_call_operand.vmem [shape: f32[6,128,1], index: 4, kind: input, shape index: {}]
  %s5 = inlined_call_operand.vmem [shape: bf16[6,128,64], index: 5, kind: input, shape index: {}]
  %s6 = inlined_call_operand.vmem [shape: f32[6,128,1], index: 6, kind: input, shape index: {}]
  %s7 = inlined_call_operand.vmem [shape: bf16[12,128,64], index: 7, kind: input, shape index: {}]
  %s8 = inlined_call_operand.vmem [shape: f32[12,128,1], index: 8, kind: input, shape index: {}]
  %s9 = inlined_call_operand.vmem [shape: bf16[5,16,32], index: 9, kind: input, shape index: {}]
  %s10 = inlined_call_operand.vmem [shape: f32[5,16,1], index: 10, kind: input, shape index: {}]
  %s11 = inlined_call_operand.vmem [shape: bf16[32,32], index: 11, kind: input, shape index: {}]
  %s12 = inlined_call_operand.vmem [shape: bf16[128,32], index: 12, kind: input, shape index: {}]
  %s13 = inlined_call_operand.vmem [shape: f32[128,1], index: 13, kind: input, shape index: {}]
  %s14 = inlined_call_operand.hbm [shape: f32[128,512], index: 14, kind: output, shape index: {}]
  %s15 = sld [smem:[#allocation0]]
  $region119: #{tpu_custom_call.1} parent=0
    _
  %s17 = ssub.s32 1, %s15
  %s18 = scalar_select 0, %s17, %s15
  $region1: #{tpu_custom_call.1} parent=0
    #allocation2 [shape = 'u8[32768]{0}', space=vmem, size = 0x8000, scoped, tag = 'input window, operand 0']
    #allocation3 [shape = 'u8[262144]{0}', space=vmem, size = 0x40000, scoped, tag = 'output window, operand 0']
    #allocation4 [shape = 's32[2]{0}', space=sflag, size = 0x8, scoped, tag = 'scoped memory for tpu_custom_call.1']
    %19 = vsyncpa [#allocation4], 0
    %s20 = scalar_lea.sflag [#allocation4], 1
    %21 = vsyncpa %s20, 0
    loop: start=0, step=1, limit=4
    $region2: #{tpu_custom_call.1} parent=1 // loop_pre_header
      _
    $region3: #{tpu_custom_call.1} parent=1 // loop_header
      %s23 = sphi 0, %s27
      %p24 = scmp.ge.s32.totalorder %s23, 4
      %s33 = sphi 0, %s35
      %s36 = sphi 0, %s33
      %s37 = sphi 0, %s36
      %s53 = sphi 0, %s37
      %s57 = sphi 0, %s57
      %s59 = sphi 0, %s57
      %s60 = sphi 0, %s59
      %s74 = sphi 0, %s60
      %s78 = sphi 0, %s78
      %s80 = sphi 0, %s78
      %s81 = sphi 0, %s80
      %s95 = sphi 0, %s81
      %s99 = sphi 0, %s99
      %s101 = sphi 0, %s99
      %s102 = sphi 0, %s101
      %s116 = sphi 0, %s102
      %s120 = sphi 0, %s120
      %s122 = sphi 0, %s120
      %s123 = sphi 0, %s122
      %s137 = sphi 0, %s123
      %s141 = sphi 0, %s141
      %s143 = sphi 0, %s141
      %s144 = sphi 0, %s143
      %s158 = sphi 0, %s144
      %s162 = sphi 0, %s162
      %s164 = sphi 0, %s162
      %s165 = sphi 0, %s164
      %s179 = sphi 0, %s165
      %s183 = sphi 0, %s183
      %s185 = sphi 0, %s183
      %s186 = sphi 0, %s185
      %s200 = sphi 0, %s186
      %s204 = sphi 0, %s204
      %s206 = sphi 0, %s204
      %s207 = sphi 0, %s206
      %s221 = sphi 0, %s207
      %s225 = sphi 0, %s225
      %s227 = sphi 0, %s225
      %s228 = sphi 0, %s227
      %s242 = sphi 0, %s228
      %s246 = sphi 0, %s246
      %s248 = sphi 0, %s246
      %s249 = sphi 0, %s248
      %s263 = sphi 0, %s249
      %s267 = sphi 0, %s267
      %s269 = sphi 0, %s267
      %s270 = sphi 0, %s269
      %s284 = sphi 0, %s270
      %s288 = sphi 0, %s288
      %s290 = sphi 0, %s288
      %s291 = sphi 0, %s290
      %s305 = sphi 0, %s291
      %s309 = sphi 0, %s309
      %s311 = sphi 0, %s309
      %s312 = sphi 0, %s311
      %s326 = sphi 0, %s312
      %s332 = sphi 0, %s334
      %s335 = sphi 0, %s332
      %s336 = sphi 0, %s335
      %s352 = sphi 0, %s336
    $region4: #{tpu_custom_call.1} parent=1 // loop_header_branch
      %26 = sbr.rel (%p24) target = $region8
    $region5: #{tpu_custom_call.1} parent=1 // loop_body
      %s28 = ssub.s32 %s23, 1
      %s29 = ssub.s32 %s23, 2
      %s30 = sadd.s32 %s23, 1
      %s31 = ssub.s32 %s23, %s30
      %p32 = scmp.eq.s32.totalorder %s31, 0
      %s34 = sadd.s32 %s33, 1
      %s35 = scalar_select %p32, %s33, %s34
      %p38 = pneg %p32
      %p39 = scmp.eq.s32.totalorder %s23, 1
      %p40 = por %p38, %p39
      %p41 = scmp.ne.s32.totalorder %s33, %s36
      %p42 = scmp.eq.s32.totalorder %s23, 0
      %p43 = por %p41, %p42
      %p44 = scmp.ne.s32.totalorder %s33, %s36
      %p45 = scmp.eq.s32.totalorder %s28, 1
      %p46 = por %p44, %p45
      %p47 = scmp.ne.s32.totalorder %s36, %s37
      %p48 = scmp.eq.s32.totalorder %s28, 0
      %p49 = por %p47, %p48
      %p50 = scmp.ne.s32.totalorder %s36, %s37
      %p51 = scmp.eq.s32.totalorder %s29, 1
      %p52 = por %p50, %p51
      %p54 = scmp.ne.s32.totalorder %s37, %s53
      %p55 = scmp.eq.s32.totalorder %s29, 0
      %p56 = por %p54, %p55
      %s58 = sadd.s32 %s57, 1
      %p61 = scmp.eq.s32.totalorder %s23, 1
      %p62 = scmp.ne.s32.totalorder %s57, %s59
      %p63 = scmp.eq.s32.totalorder %s23, 0
      %p64 = por %p62, %p63
      %p65 = scmp.ne.s32.totalorder %s57, %s59
      %p66 = scmp.eq.s32.totalorder %s28, 1
      %p67 = por %p65, %p66
      %p68 = scmp.ne.s32.totalorder %s59, %s60
      %p69 = scmp.eq.s32.totalorder %s28, 0
      %p70 = por %p68, %p69
      %p71 = scmp.ne.s32.totalorder %s59, %s60
      %p72 = scmp.eq.s32.totalorder %s29, 1
      %p73 = por %p71, %p72
      %p75 = scmp.ne.s32.totalorder %s60, %s74
      %p76 = scmp.eq.s32.totalorder %s29, 0
      %p77 = por %p75, %p76
      %s79 = sadd.s32 %s78, 1
      %p82 = scmp.eq.s32.totalorder %s23, 1
      %p83 = scmp.ne.s32.totalorder %s78, %s80
      %p84 = scmp.eq.s32.totalorder %s23, 0
      %p85 = por %p83, %p84
      %p86 = scmp.ne.s32.totalorder %s78, %s80
      %p87 = scmp.eq.s32.totalorder %s28, 1
      %p88 = por %p86, %p87
      %p89 = scmp.ne.s32.totalorder %s80, %s81
      %p90 = scmp.eq.s32.totalorder %s28, 0
      %p91 = por %p89, %p90
      %p92 = scmp.ne.s32.totalorder %s80, %s81
      %p93 = scmp.eq.s32.totalorder %s29, 1
      %p94 = por %p92, %p93
      %p96 = scmp.ne.s32.totalorder %s81, %s95
      %p97 = scmp.eq.s32.totalorder %s29, 0
      %p98 = por %p96, %p97
      %s100 = sadd.s32 %s99, 1
      %p103 = scmp.eq.s32.totalorder %s23, 1
      %p104 = scmp.ne.s32.totalorder %s99, %s101
      %p105 = scmp.eq.s32.totalorder %s23, 0
      %p106 = por %p104, %p105
      %p107 = scmp.ne.s32.totalorder %s99, %s101
      %p108 = scmp.eq.s32.totalorder %s28, 1
      %p109 = por %p107, %p108
      %p110 = scmp.ne.s32.totalorder %s101, %s102
      %p111 = scmp.eq.s32.totalorder %s28, 0
      %p112 = por %p110, %p111
      %p113 = scmp.ne.s32.totalorder %s101, %s102
      %p114 = scmp.eq.s32.totalorder %s29, 1
      %p115 = por %p113, %p114
      %p117 = scmp.ne.s32.totalorder %s102, %s116
      %p118 = scmp.eq.s32.totalorder %s29, 0
      %p119 = por %p117, %p118
      %s121 = sadd.s32 %s120, 1
      %p124 = scmp.eq.s32.totalorder %s23, 1
      %p125 = scmp.ne.s32.totalorder %s120, %s122
      %p126 = scmp.eq.s32.totalorder %s23, 0
      %p127 = por %p125, %p126
      %p128 = scmp.ne.s32.totalorder %s120, %s122
      %p129 = scmp.eq.s32.totalorder %s28, 1
      %p130 = por %p128, %p129
      %p131 = scmp.ne.s32.totalorder %s122, %s123
      %p132 = scmp.eq.s32.totalorder %s28, 0
      %p133 = por %p131, %p132
      %p134 = scmp.ne.s32.totalorder %s122, %s123
      %p135 = scmp.eq.s32.totalorder %s29, 1
      %p136 = por %p134, %p135
      %p138 = scmp.ne.s32.totalorder %s123, %s137
      %p139 = scmp.eq.s32.totalorder %s29, 0
      %p140 = por %p138, %p139
      %s142 = sadd.s32 %s141, 1
      %p145 = scmp.eq.s32.totalorder %s23, 1
      %p146 = scmp.ne.s32.totalorder %s141, %s143
      %p147 = scmp.eq.s32.totalorder %s23, 0
      %p148 = por %p146, %p147
      %p149 = scmp.ne.s32.totalorder %s141, %s143
      %p150 = scmp.eq.s32.totalorder %s28, 1
      %p151 = por %p149, %p150
      %p152 = scmp.ne.s32.totalorder %s143, %s144
      %p153 = scmp.eq.s32.totalorder %s28, 0
      %p154 = por %p152, %p153
      %p155 = scmp.ne.s32.totalorder %s143, %s144
      %p156 = scmp.eq.s32.totalorder %s29, 1
      %p157 = por %p155, %p156
      %p159 = scmp.ne.s32.totalorder %s144, %s158
      %p160 = scmp.eq.s32.totalorder %s29, 0
      %p161 = por %p159, %p160
      %s163 = sadd.s32 %s162, 1
      %p166 = scmp.eq.s32.totalorder %s23, 1
      %p167 = scmp.ne.s32.totalorder %s162, %s164
      %p168 = scmp.eq.s32.totalorder %s23, 0
      %p169 = por %p167, %p168
      %p170 = scmp.ne.s32.totalorder %s162, %s164
      %p171 = scmp.eq.s32.totalorder %s28, 1
      %p172 = por %p170, %p171
      %p173 = scmp.ne.s32.totalorder %s164, %s165
      %p174 = scmp.eq.s32.totalorder %s28, 0
      %p175 = por %p173, %p174
      %p176 = scmp.ne.s32.totalorder %s164, %s165
      %p177 = scmp.eq.s32.totalorder %s29, 1
      %p178 = por %p176, %p177
      %p180 = scmp.ne.s32.totalorder %s165, %s179
      %p181 = scmp.eq.s32.totalorder %s29, 0
      %p182 = por %p180, %p181
      %s184 = sadd.s32 %s183, 1
      %p187 = scmp.eq.s32.totalorder %s23, 1
      %p188 = scmp.ne.s32.totalorder %s183, %s185
      %p189 = scmp.eq.s32.totalorder %s23, 0
      %p190 = por %p188, %p189
      %p191 = scmp.ne.s32.totalorder %s183, %s185
      %p192 = scmp.eq.s32.totalorder %s28, 1
      %p193 = por %p191, %p192
      %p194 = scmp.ne.s32.totalorder %s185, %s186
      %p195 = scmp.eq.s32.totalorder %s28, 0
      %p196 = por %p194, %p195
      %p197 = scmp.ne.s32.totalorder %s185, %s186
      %p198 = scmp.eq.s32.totalorder %s29, 1
      %p199 = por %p197, %p198
      %p201 = scmp.ne.s32.totalorder %s186, %s200
      %p202 = scmp.eq.s32.totalorder %s29, 0
      %p203 = por %p201, %p202
      %s205 = sadd.s32 %s204, 1
      %p208 = scmp.eq.s32.totalorder %s23, 1
      %p209 = scmp.ne.s32.totalorder %s204, %s206
      %p210 = scmp.eq.s32.totalorder %s23, 0
      %p211 = por %p209, %p210
      %p212 = scmp.ne.s32.totalorder %s204, %s206
      %p213 = scmp.eq.s32.totalorder %s28, 1
      %p214 = por %p212, %p213
      %p215 = scmp.ne.s32.totalorder %s206, %s207
      %p216 = scmp.eq.s32.totalorder %s28, 0
      %p217 = por %p215, %p216
      %p218 = scmp.ne.s32.totalorder %s206, %s207
      %p219 = scmp.eq.s32.totalorder %s29, 1
      %p220 = por %p218, %p219
      %p222 = scmp.ne.s32.totalorder %s207, %s221
      %p223 = scmp.eq.s32.totalorder %s29, 0
      %p224 = por %p222, %p223
      %s226 = sadd.s32 %s225, 1
      %p229 = scmp.eq.s32.totalorder %s23, 1
      %p230 = scmp.ne.s32.totalorder %s225, %s227
      %p231 = scmp.eq.s32.totalorder %s23, 0
      %p232 = por %p230, %p231
      %p233 = scmp.ne.s32.totalorder %s225, %s227
      %p234 = scmp.eq.s32.totalorder %s28, 1
      %p235 = por %p233, %p234
      %p236 = scmp.ne.s32.totalorder %s227, %s228
      %p237 = scmp.eq.s32.totalorder %s28, 0
      %p238 = por %p236, %p237
      %p239 = scmp.ne.s32.totalorder %s227, %s228
      %p240 = scmp.eq.s32.totalorder %s29, 1
      %p241 = por %p239, %p240
      %p243 = scmp.ne.s32.totalorder %s228, %s242
      %p244 = scmp.eq.s32.totalorder %s29, 0
      %p245 = por %p243, %p244
      %s247 = sadd.s32 %s246, 1
      %p250 = scmp.eq.s32.totalorder %s23, 1
      %p251 = scmp.ne.s32.totalorder %s246, %s248
      %p252 = scmp.eq.s32.totalorder %s23, 0
      %p253 = por %p251, %p252
      %p254 = scmp.ne.s32.totalorder %s246, %s248
      %p255 = scmp.eq.s32.totalorder %s28, 1
      %p256 = por %p254, %p255
      %p257 = scmp.ne.s32.totalorder %s248, %s249
      %p258 = scmp.eq.s32.totalorder %s28, 0
      %p259 = por %p257, %p258
      %p260 = scmp.ne.s32.totalorder %s248, %s249
      %p261 = scmp.eq.s32.totalorder %s29, 1
      %p262 = por %p260, %p261
      %p264 = scmp.ne.s32.totalorder %s249, %s263
      %p265 = scmp.eq.s32.totalorder %s29, 0
      %p266 = por %p264, %p265
      %s268 = sadd.s32 %s267, 1
      %p271 = scmp.eq.s32.totalorder %s23, 1
      %p272 = scmp.ne.s32.totalorder %s267, %s269
      %p273 = scmp.eq.s32.totalorder %s23, 0
      %p274 = por %p272, %p273
      %p275 = scmp.ne.s32.totalorder %s267, %s269
      %p276 = scmp.eq.s32.totalorder %s28, 1
      %p277 = por %p275, %p276
      %p278 = scmp.ne.s32.totalorder %s269, %s270
      %p279 = scmp.eq.s32.totalorder %s28, 0
      %p280 = por %p278, %p279
      %p281 = scmp.ne.s32.totalorder %s269, %s270
      %p282 = scmp.eq.s32.totalorder %s29, 1
      %p283 = por %p281, %p282
      %p285 = scmp.ne.s32.totalorder %s270, %s284
      %p286 = scmp.eq.s32.totalorder %s29, 0
      %p287 = por %p285, %p286
      %s289 = sadd.s32 %s288, 1
      %p292 = scmp.eq.s32.totalorder %s23, 1
      %p293 = scmp.ne.s32.totalorder %s288, %s290
      %p294 = scmp.eq.s32.totalorder %s23, 0
      %p295 = por %p293, %p294
      %p296 = scmp.ne.s32.totalorder %s288, %s290
      %p297 = scmp.eq.s32.totalorder %s28, 1
      %p298 = por %p296, %p297
      %p299 = scmp.ne.s32.totalorder %s290, %s291
      %p300 = scmp.eq.s32.totalorder %s28, 0
      %p301 = por %p299, %p300
      %p302 = scmp.ne.s32.totalorder %s290, %s291
      %p303 = scmp.eq.s32.totalorder %s29, 1
      %p304 = por %p302, %p303
      %p306 = scmp.ne.s32.totalorder %s291, %s305
      %p307 = scmp.eq.s32.totalorder %s29, 0
      %p308 = por %p306, %p307
      %s310 = sadd.s32 %s309, 1
      %p313 = scmp.eq.s32.totalorder %s23, 1
      %p314 = scmp.ne.s32.totalorder %s309, %s311
      %p315 = scmp.eq.s32.totalorder %s23, 0
      %p316 = por %p314, %p315
      %p317 = scmp.ne.s32.totalorder %s309, %s311
      %p318 = scmp.eq.s32.totalorder %s28, 1
      %p319 = por %p317, %p318
      %p320 = scmp.ne.s32.totalorder %s311, %s312
      %p321 = scmp.eq.s32.totalorder %s28, 0
      %p322 = por %p320, %p321
      %p323 = scmp.ne.s32.totalorder %s311, %s312
      %p324 = scmp.eq.s32.totalorder %s29, 1
      %p325 = por %p323, %p324
      %p327 = scmp.ne.s32.totalorder %s312, %s326
      %p328 = scmp.eq.s32.totalorder %s29, 0
      %p329 = por %p327, %p328
      %s330 = ssub.s32 %s23, %s30
      %p331 = scmp.eq.s32.totalorder %s330, 0
      %s333 = sadd.s32 %s332, 1
      %s334 = scalar_select %p331, %s332, %s333
      %p337 = pneg %p331
      %p338 = scmp.eq.s32.totalorder %s23, 1
      %p339 = por %p337, %p338
      %p340 = scmp.ne.s32.totalorder %s332, %s335
      %p341 = scmp.eq.s32.totalorder %s23, 0
      %p342 = por %p340, %p341
      %p343 = scmp.ne.s32.totalorder %s332, %s335
      %p344 = scmp.eq.s32.totalorder %s28, 1
      %p345 = por %p343, %p344
      %p346 = scmp.ne.s32.totalorder %s335, %s336
      %p347 = scmp.eq.s32.totalorder %s28, 0
      %p348 = por %p346, %p347
      %p349 = scmp.ne.s32.totalorder %s335, %s336
      %p350 = scmp.eq.s32.totalorder %s29, 1
      %p351 = por %p349, %p350
      %p353 = scmp.ne.s32.totalorder %s336, %s352
      %p354 = scmp.eq.s32.totalorder %s29, 0
      %p355 = por %p353, %p354
      %p356 = scmp.le.s32.totalorder 1, %s23
      %p357 = scmp.lt.s32.totalorder %s23, 3
      %p358 = pnand %p356, %p357
      %p359 = pneg %p358
      // Predicated region
      $region9: #{tpu_custom_call.1} parent=5 // pred_check
        _
      $region10: #{tpu_custom_call.1} parent=5 // pred_check_branch
        %361 = sbr.rel (%p358) target = $region12
      $region11: #{tpu_custom_call.1} parent=5 // pred_region
        %s362 = ssub.s32 %s23, 1
        // Predicated region
        $region13: #{tpu_custom_call.1} parent=11 // pred_check
          %p363 = pneg %p70
        $region14: #{tpu_custom_call.1} parent=11 // pred_check_branch
          %365 = sbr.rel (%p363) target = $region16
        $region15: #{tpu_custom_call.1} parent=11 // pred_region
          _
        $region16: #{tpu_custom_call.1} parent=11 // pred_fallthru
          _
        // Predicated region
        $region17: #{tpu_custom_call.1} parent=11 // pred_check
          %p366 = pneg %p91
        $region18: #{tpu_custom_call.1} parent=11 // pred_check_branch
          %368 = sbr.rel (%p366) target = $region20
        $region19: #{tpu_custom_call.1} parent=11 // pred_region
          _
        $region20: #{tpu_custom_call.1} parent=11 // pred_fallthru
          _
        // Predicated region
        $region21: #{tpu_custom_call.1} parent=11 // pred_check
          %p369 = pneg %p112
        $region22: #{tpu_custom_call.1} parent=11 // pred_check_branch
          %371 = sbr.rel (%p369) target = $region24
        $region23: #{tpu_custom_call.1} parent=11 // pred_region
          _
        $region24: #{tpu_custom_call.1} parent=11 // pred_fallthru
          _
        // Predicated region
        $region25: #{tpu_custom_call.1} parent=11 // pred_check
          %p372 = pneg %p133
        $region26: #{tpu_custom_call.1} parent=11 // pred_check_branch
          %374 = sbr.rel (%p372) target = $region28
        $region27: #{tpu_custom_call.1} parent=11 // pred_region
          _
        $region28: #{tpu_custom_call.1} parent=11 // pred_fallthru
          _
        // Predicated region
        $region29: #{tpu_custom_call.1} parent=11 // pred_check
          %p375 = pneg %p154
        $region30: #{tpu_custom_call.1} parent=11 // pred_check_branch
          %377 = sbr.rel (%p375) target = $region32
        $region31: #{tpu_custom_call.1} parent=11 // pred_region
          _
        $region32: #{tpu_custom_call.1} parent=11 // pred_fallthru
          _
        // Predicated region
        $region33: #{tpu_custom_call.1} parent=11 // pred_check
          %p378 = pneg %p175
        $region34: #{tpu_custom_call.1} parent=11 // pred_check_branch
          %380 = sbr.rel (%p378) target = $region36
        $region35: #{tpu_custom_call.1} parent=11 // pred_region
          _
        $region36: #{tpu_custom_call.1} parent=11 // pred_fallthru
          _
        // Predicated region
        $region37: #{tpu_custom_call.1} parent=11 // pred_check
          %p381 = pneg %p196
        $region38: #{tpu_custom_call.1} parent=11 // pred_check_branch
          %383 = sbr.rel (%p381) target = $region40
        $region39: #{tpu_custom_call.1} parent=11 // pred_region
          _
        $region40: #{tpu_custom_call.1} parent=11 // pred_fallthru
          _
        // Predicated region
        $region41: #{tpu_custom_call.1} parent=11 // pred_check
          %p384 = pneg %p217
        $region42: #{tpu_custom_call.1} parent=11 // pred_check_branch
          %386 = sbr.rel (%p384) target = $region44
        $region43: #{tpu_custom_call.1} parent=11 // pred_region
          _
        $region44: #{tpu_custom_call.1} parent=11 // pred_fallthru
          _
        // Predicated region
        $region45: #{tpu_custom_call.1} parent=11 // pred_check
          %p387 = pneg %p238
        $region46: #{tpu_custom_call.1} parent=11 // pred_check_branch
          %389 = sbr.rel (%p387) target = $region48
        $region47: #{tpu_custom_call.1} parent=11 // pred_region
          _
        $region48: #{tpu_custom_call.1} parent=11 // pred_fallthru
          _
        // Predicated region
        $region49: #{tpu_custom_call.1} parent=11 // pred_check
          %p390 = pneg %p259
        $region50: #{tpu_custom_call.1} parent=11 // pred_check_branch
          %392 = sbr.rel (%p390) target = $region52
        $region51: #{tpu_custom_call.1} parent=11 // pred_region
          _
        $region52: #{tpu_custom_call.1} parent=11 // pred_fallthru
          _
        // Predicated region
        $region53: #{tpu_custom_call.1} parent=11 // pred_check
          %p393 = pneg %p280
        $region54: #{tpu_custom_call.1} parent=11 // pred_check_branch
          %395 = sbr.rel (%p393) target = $region56
        $region55: #{tpu_custom_call.1} parent=11 // pred_region
          _
        $region56: #{tpu_custom_call.1} parent=11 // pred_fallthru
          _
        // Predicated region
        $region57: #{tpu_custom_call.1} parent=11 // pred_check
          %p396 = pneg %p301
        $region58: #{tpu_custom_call.1} parent=11 // pred_check_branch
          %398 = sbr.rel (%p396) target = $region60
        $region59: #{tpu_custom_call.1} parent=11 // pred_region
          _
        $region60: #{tpu_custom_call.1} parent=11 // pred_fallthru
          _
        // Predicated region
        $region61: #{tpu_custom_call.1} parent=11 // pred_check
          %p399 = pneg %p322
        $region62: #{tpu_custom_call.1} parent=11 // pred_check_branch
          %401 = sbr.rel (%p399) target = $region64
        $region63: #{tpu_custom_call.1} parent=11 // pred_region
          _
        $region64: #{tpu_custom_call.1} parent=11 // pred_fallthru
          _
      $region12: #{tpu_custom_call.1} parent=5 // pred_fallthru
        _
      %p402 = scmp.lt.s32.totalorder %s23, 2
      // Predicated region
      $region65: #{tpu_custom_call.1} parent=5 // pred_check
        %p403 = pneg %p402
      $region66: #{tpu_custom_call.1} parent=5 // pred_check_branch
        %405 = sbr.rel (%p403) target = $region68
      $region67: #{tpu_custom_call.1} parent=5 // pred_region
        // Predicated region
        $region69: #{tpu_custom_call.1} parent=67 // pred_check
          %p406 = pneg %p43
        $region70: #{tpu_custom_call.1} parent=67 // pred_check_branch
          %408 = sbr.rel (%p406) target = $region72
        $region71: #{tpu_custom_call.1} parent=67 // pred_region
          %s409 = sand.u32 %s33, 1
          %s410 = sand.u32 %s33, 1
          %s411 = smul.addr %s410, 32
          %s412 = scalar_lea.vmem [#allocation2], %s411
          %s413 = smul.u32 2, %s23
          %s414 = smul.addr %s413, 8
          %s415 = scalar_lea.vmem %s0, %s414
          // Predicated region
          $region73: #{tpu_custom_call.1} parent=71 // pred_check
            _
          $region74: #{tpu_custom_call.1} parent=71 // pred_check_branch
            %417 = sbr.rel (0) target = $region76
          $region75: #{tpu_custom_call.1} parent=71 // pred_region
            // Predicated region
            $region77: #{tpu_custom_call.1} parent=75 // pred_check
              _
            $region78: #{tpu_custom_call.1} parent=75 // pred_check_branch
              %419 = sbr.rel (0) target = $region80
            $region79: #{tpu_custom_call.1} parent=75 // pred_region
              loop: start=0, step=1, limit=1
              $region81: #{tpu_custom_call.1} parent=79 // loop_pre_header
                _
              $region82: #{tpu_custom_call.1} parent=79 // loop_header
                %s421 = sphi 0, %s425
                %p422 = scmp.ge.s32.totalorder %s421, 1
                %s426 = sphi %s415, %s415
                %s427 = sphi %s412, %s412
              $region83: #{tpu_custom_call.1} parent=79 // loop_header_branch
                %424 = sbr.rel (%p422) target = $region87
              $region84: #{tpu_custom_call.1} parent=79 // loop_body
                %v428 = vld [vmem:[%s426] sm:$0xff]
                %429 = vst [vmem:[%s427] sm:$0xff] %v428
                %v430 = vld [vmem:[%s426 + $0x8] sm:$0xff]
                %431 = vst [vmem:[%s427 + $0x8] sm:$0xff] %v430
                %v432 = vld [vmem:[%s426 + $0x20] sm:$0xff]
                %433 = vst [vmem:[%s427 + $0x10] sm:$0xff] %v432
                %v434 = vld [vmem:[%s426 + $0x28] sm:$0xff]
                %435 = vst [vmem:[%s427 + $0x18] sm:$0xff] %v434
              $region85: #{tpu_custom_call.1} parent=79 // loop_footer
                %s425 = sadd.s32 1, %s421
              $region86: #{tpu_custom_call.1} parent=79 // loop_footer_branch
                %420 = sbr.rel target = $region82
              $region87: #{tpu_custom_call.1} parent=79 // loop_exit
                _
            $region80: #{tpu_custom_call.1} parent=75 // pred_fallthru
              _
            // Predicated region
            $region88: #{tpu_custom_call.1} parent=75 // pred_check
              _
            $region89: #{tpu_custom_call.1} parent=75 // pred_check_branch
              %437 = sbr.rel target = $region91
            $region90: #{tpu_custom_call.1} parent=75 // pred_region
              _
            $region91: #{tpu_custom_call.1} parent=75 // pred_fallthru
              _
          $region76: #{tpu_custom_call.1} parent=71 // pred_fallthru
            _
          %438 = vnop
        $region72: #{tpu_custom_call.1} parent=67 // pred_fallthru
          _
      $region68: #{tpu_custom_call.1} parent=5 // pred_fallthru
        _
      %p439 = scmp.le.s32.totalorder 1, %s23
      %p440 = scmp.lt.s32.totalorder %s23, 3
      %p441 = pnand %p439, %p440
      %p442 = pneg %p441
      // Predicated region
      $region92: #{tpu_custom_call.1} parent=5 // pred_check
        _
      $region93: #{tpu_custom_call.1} parent=5 // pred_check_branch
        %444 = sbr.rel (%p441) target = $region95
      $region94: #{tpu_custom_call.1} parent=5 // pred_region
        %s445 = ssub.s32 %s23, 1
        %s446 = sand.u32 %s36, 1
        %s447 = sand.u32 %s36, 1
        %s448 = smul.addr %s447, 32
        %s449 = scalar_lea.vmem [#allocation2], %s448
        // Predicated region
        $region96: #{tpu_custom_call.1} parent=94 // pred_check
          %p450 = pneg %p49
        $region97: #{tpu_custom_call.1} parent=94 // pred_check_branch
          %452 = sbr.rel (%p450) target = $region99
        $region98: #{tpu_custom_call.1} parent=94 // pred_region
          _
        $region99: #{tpu_custom_call.1} parent=94 // pred_fallthru
          _
        %s453 = sand.u32 %s36, 1
        %s454 = sand.u32 %s36, 1
        %s455 = smul.addr %s454, 32
        %s456 = scalar_lea.vmem [#allocation2], %s455
        %p457 = pneg %p49
        %p458 = pneg %p46
        %p459 = pneg %p70
        %p460 = pneg %p67
        %p461 = pneg %p91
        %p462 = pneg %p88
        %p463 = pneg %p112
        %p464 = pneg %p109
        %p465 = pneg %p133
        %p466 = pneg %p130
        %p467 = pneg %p154
        %p468 = pneg %p151
        %p469 = pneg %p175
        %p470 = pneg %p172
        %p471 = pneg %p196
        %p472 = pneg %p193
        %p473 = pneg %p217
        %p474 = pneg %p214
        %p475 = pneg %p238
        %p476 = pneg %p235
        %p477 = pneg %p259
        %p478 = pneg %p256
        %p479 = pneg %p280
        %p480 = pneg %p277
        %p481 = pneg %p301
        %p482 = pneg %p298
        %p483 = pneg %p322
        %p484 = pneg %p319
        %p485 = pneg %p348
        %p486 = pneg %p345
        %s487 = sand.u32 %s335, 1
        %s488 = scalar_lea.sflag [#allocation4], %s487
        %s489 = sand.u32 %s335, 1
        %s490 = smul.addr %s489, 256
        %s491 = scalar_lea.vmem [#allocation3], %s490
        %s492 = smul.u32 2, %s28
        %s493 = smul.u32 2, %s28
        %v497 = vld [vmem:[%s449] sm:$0xff]
        %v498 = vld [vmem:[%s449 + $0x8] sm:$0xff]
        %v499 = vld [vmem:[%s449 + $0x10] sm:$0xff]
        %v500 = vld [vmem:[%s449 + $0x18] sm:$0xff]
        %v501 = vld [vmem:[%s1] sm:$0xff]
        %v502 = vld [vmem:[%s1 + $0x8] sm:$0xff]
        %504 = vset.pattern.permute.xlu0 0
        %505 = vperm.xlu0 %504, %v501
        %v506 = vpop.permute.xlu0 %505
        %509 = vset.pattern.permute.xlu0 0
        %510 = vperm.xlu0 %509, %v502
        %v511 = vpop.permute.xlu0 %510
        %v513 = vmul.f32 %v497, %v506
        %v514 = vmul.f32 %v498, %v506
        %v515 = vmul.f32 %v499, %v511
        %v516 = vmul.f32 %v500, %v511
        %v517 = vld [vmem:[%s2] sm:$0xff]
        %v518 = vld [vmem:[%s2 + $0x8] sm:$0xff]
        %520 = vset.pattern.permute.xlu0 0
        %521 = vperm.xlu0 %520, %v517
        %v522 = vpop.permute.xlu0 %521
        %525 = vset.pattern.permute.xlu0 0
        %526 = vperm.xlu0 %525, %v518
        %v527 = vpop.permute.xlu0 %526
        %v529 = vadd.f32 %v513, %v522
        %v530 = vadd.f32 %v514, %v522
        %v531 = vadd.f32 %v515, %v527
        %v532 = vadd.f32 %v516, %v527
        %v533 = vld [vmem:[%s3] sm:$0xf]
        %v534 = vld [vmem:[%s3 + $0x4] sm:$0xf]
        %v535 = vld [vmem:[%s3 + $0x8] sm:$0xf]
        %v536 = vld [vmem:[%s3 + $0xc] sm:$0xf]
        %v537 = vld [vmem:[%s3 + $0x10] sm:$0xf]
        %v538 = vld [vmem:[%s3 + $0x14] sm:$0xf]
        %v539 = vld [vmem:[%s3 + $0x18] sm:$0xf]
        %v540 = vld [vmem:[%s3 + $0x1c] sm:$0xf]
        %v541 = vld [vmem:[%s3 + $0x20] sm:$0xf]
        %v542 = vld [vmem:[%s3 + $0x24] sm:$0xf]
        %v543 = vld [vmem:[%s3 + $0x28] sm:$0xf]
        %v544 = vld [vmem:[%s3 + $0x2c] sm:$0xf]
        %v545 = vld [vmem:[%s3 + $0x30] sm:$0xf]
        %v546 = vld [vmem:[%s3 + $0x34] sm:$0xf]
        %v547 = vld [vmem:[%s3 + $0x38] sm:$0xf]
        %v548 = vld [vmem:[%s3 + $0x3c] sm:$0xf]
        %v549 = vld [vmem:[%s4] sm:$0xff]
        %v550 = vld [vmem:[%s4 + $0x8] sm:$0xff]
        %v551 = vld [vmem:[%s4 + $0x10] sm:$0xff]
        %v552 = vld [vmem:[%s4 + $0x18] sm:$0xff]
        %v553 = vld [vmem:[%s4 + $0x20] sm:$0xff]
        %v554 = vld [vmem:[%s4 + $0x28] sm:$0xff]
        %v555 = vld [vmem:[%s4 + $0x30] sm:$0xff]
        %v556 = vld [vmem:[%s4 + $0x38] sm:$0xff]
        %v557 = vld [vmem:[%s4 + $0x40] sm:$0xff]
        %v558 = vld [vmem:[%s4 + $0x48] sm:$0xff]
        %v559 = vld [vmem:[%s4 + $0x50] sm:$0xff]
        %v560 = vld [vmem:[%s4 + $0x58] sm:$0xff]
        %v561 = vld [vmem:[%s4 + $0x60] sm:$0xff]
        %v562 = vld [vmem:[%s4 + $0x68] sm:$0xff]
        %v563 = vld [vmem:[%s4 + $0x70] sm:$0xff]
        %v564 = vld [vmem:[%s4 + $0x78] sm:$0xff]
        %v565 = vpack.c.bf16 %v531, %v529
        %v566 = vpack.c.bf16 %v532, %v530
        %v583 = vunpack.c.l.b16 %v533
        %v584 = vunpack.c.l.b16 %v534
        %v585 = vunpack.c.l.b16 %v535
        %v586 = vunpack.c.l.b16 %v536
        %v587 = vunpack.c.l.b16 %v537
        %v588 = vunpack.c.l.b16 %v538
        %v589 = vunpack.c.l.b16 %v539
        %v590 = vunpack.c.l.b16 %v540
        %v591 = vunpack.c.l.b16 %v541
        %v592 = vunpack.c.l.b16 %v542
        %v593 = vunpack.c.l.b16 %v543
        %v594 = vunpack.c.l.b16 %v544
        %v595 = vunpack.c.l.b16 %v545
        %v596 = vunpack.c.l.b16 %v546
        %v597 = vunpack.c.l.b16 %v547
        %v598 = vunpack.c.l.b16 %v548
        %v599 = vpack.c.b16 %v584, %v583
        %v600 = vpack.c.b16 %v586, %v585
        %v601 = vpack.c.b16 %v588, %v587
        %v602 = vpack.c.b16 %v590, %v589
        %v603 = vpack.c.b16 %v592, %v591
        %v604 = vpack.c.b16 %v594, %v593
        %v605 = vpack.c.b16 %v596, %v595
        %v606 = vpack.c.b16 %v598, %v597
        %vm607 = vcmask 130048
        %v609 = vsel %vm607, %v599, 0
        %v612 = vsel %vm607, %v600, 0
        %v615 = vsel %vm607, %v601, 0
        %v618 = vsel %vm607, %v602, 0
        %v621 = vsel %vm607, %v603, 0
        %v624 = vsel %vm607, %v604, 0
        %v627 = vsel %vm607, %v605, 0
        %v630 = vsel %vm607, %v606, 0
        %632 = vmatprep.subr.bf16.mxu0 %v566
        %633 = vmatpush1.bf16.msra.mxu0 %v565
        %634 = vmatprep.subr.bf16.mxu0 0
        %635 = vmatpush1.bf16.msra.mxu0 0
        %636 = vmatprep.subr.bf16.mxu0 0
        %637 = vmatpush1.bf16.msra.mxu0 0
        %638 = vmatprep.subr.bf16.mxu0 0
        %639 = vmatpush1.bf16.msra.mxu0 0
        %640 = vmatprep.subr.bf16.mxu0 0
        %641 = vmatpush1.bf16.msra.mxu0 0
        %642 = vmatprep.subr.bf16.mxu0 0
        %643 = vmatpush1.bf16.msra.mxu0 0
        %644 = vmatprep.subr.bf16.mxu0 0
        %645 = vmatpush1.bf16.msra.mxu0 0
        %646 = vmatprep.subr.bf16.mxu0 0
        %647 = vmatpush1.bf16.msra.mxu0 0
        %648 = vmatprep.subr.bf16.mxu0 0
        %649 = vmatpush1.bf16.msra.mxu0 0
        %650 = vmatprep.subr.bf16.mxu0 0
        %651 = vmatpush1.bf16.msra.mxu0 0
        %652 = vmatprep.subr.bf16.mxu0 0
        %653 = vmatpush1.bf16.msra.mxu0 0
        %654 = vmatprep.subr.bf16.mxu0 0
        %655 = vmatpush1.bf16.msra.mxu0 0
        %656 = vmatprep.subr.bf16.mxu0 0
        %657 = vmatpush1.bf16.msra.mxu0 0
        %658 = vmatprep.subr.bf16.mxu0 0
        %659 = vmatpush1.bf16.msra.mxu0 0
        %660 = vmatprep.subr.bf16.mxu0 0
        %661 = vmatpush1.bf16.msra.mxu0 0
        %662 = vmatprep.subr.bf16.mxu0 0
        %663 = vmatpush1.bf16.msra.mxu0 0
        %664 = vmatprep.mubr.bf16.mxu0 0
        %665 = vmatmul.mubr.bf16.gmra.mrb[0].mxu0 %v609
        %v666 = vpop.f32.mrb[0].mxu0
        %v667 = vadd.f32 0.0, %v666
        %v668 = vpop.f32.mrb[0].mxu0
        %v669 = vadd.f32 0.0, %v668
        %v670 = vpop.f32.mrb[0].mxu0
        %v671 = vadd.f32 0.0, %v670
        %v672 = vpop.f32.mrb[0].mxu0
        %v673 = vadd.f32 0.0, %v672
        %674 = vmatprep.mubr.bf16.mxu0 0
        %675 = vmatmul.mubr.bf16.gmra.mrb[0].mxu0 %v612
        %v676 = vpop.f32.mrb[0].mxu0
        %v677 = vadd.f32 0.0, %v676
        %v678 = vpop.f32.mrb[0].mxu0
        %v679 = vadd.f32 0.0, %v678
        %v680 = vpop.f32.mrb[0].mxu0
        %v681 = vadd.f32 0.0, %v680
        %v682 = vpop.f32.mrb[0].mxu0
        %v683 = vadd.f32 0.0, %v682
        %684 = vmatprep.mubr.bf16.mxu0 0
        %685 = vmatmul.mubr.bf16.gmra.mrb[0].mxu0 %v615
        %v686 = vpop.f32.mrb[0].mxu0
        %v687 = vadd.f32 0.0, %v686
        %v688 = vpop.f32.mrb[0].mxu0
        %v689 = vadd.f32 0.0, %v688
        %v690 = vpop.f32.mrb[0].mxu0
        %v691 = vadd.f32 0.0, %v690
        %v692 = vpop.f32.mrb[0].mxu0
        %v693 = vadd.f32 0.0, %v692
        %694 = vmatprep.mubr.bf16.mxu0 0
        %695 = vmatmul.mubr.bf16.gmra.mrb[0].mxu0 %v618
        %v696 = vpop.f32.mrb[0].mxu0
        %v697 = vadd.f32 0.0, %v696
        %v698 = vpop.f32.mrb[0].mxu0
        %v699 = vadd.f32 0.0, %v698
        %v700 = vpop.f32.mrb[0].mxu0
        %v701 = vadd.f32 0.0, %v700
        %v702 = vpop.f32.mrb[0].mxu0
        %v703 = vadd.f32 0.0, %v702
        %704 = vmatprep.mubr.bf16.mxu0 0
        %705 = vmatmul.mubr.bf16.gmra.mrb[0].mxu0 %v621
        %v706 = vpop.f32.mrb[0].mxu0
        %v707 = vadd.f32 0.0, %v706
        %v708 = vpop.f32.mrb[0].mxu0
        %v709 = vadd.f32 0.0, %v708
        %v710 = vpop.f32.mrb[0].mxu0
        %v711 = vadd.f32 0.0, %v710
        %v712 = vpop.f32.mrb[0].mxu0
        %v713 = vadd.f32 0.0, %v712
        %714 = vmatprep.mubr.bf16.mxu0 0
        %715 = vmatmul.mubr.bf16.gmra.mrb[0].mxu0 %v624
        %v716 = vpop.f32.mrb[0].mxu0
        %v717 = vadd.f32 0.0, %v716
        %v718 = vpop.f32.mrb[0].mxu0
        %v719 = vadd.f32 0.0, %v718
        %v720 = vpop.f32.mrb[0].mxu0
        %v721 = vadd.f32 0.0, %v720
        %v722 = vpop.f32.mrb[0].mxu0
        %v723 = vadd.f32 0.0, %v722
        %724 = vmatprep.mubr.bf16.mxu0 0
        %725 = vmatmul.mubr.bf16.gmra.mrb[0].mxu0 %v627
        %v726 = vpop.f32.mrb[0].mxu0
        %v727 = vadd.f32 0.0, %v726
        %v728 = vpop.f32.mrb[0].mxu0
        %v729 = vadd.f32 0.0, %v728
        %v730 = vpop.f32.mrb[0].mxu0
        %v731 = vadd.f32 0.0, %v730
        %v732 = vpop.f32.mrb[0].mxu0
        %v733 = vadd.f32 0.0, %v732
        %734 = vmatprep.mubr.bf16.mxu0 0
        %735 = vmatmul.mubr.bf16.gmra.mrb[0].mxu0 %v630
        %v736 = vpop.f32.mrb[0].mxu0
        %v737 = vadd.f32 0.0, %v736
        %v738 = vpop.f32.mrb[0].mxu0
        %v739 = vadd.f32 0.0, %v738
        %v740 = vpop.f32.mrb[0].mxu0
        %v741 = vadd.f32 0.0, %v740
        %v742 = vpop.f32.mrb[0].mxu0
        %v743 = vadd.f32 0.0, %v742
        %744 = vdwg.mxu0
        %v745 = vpack.c.bf16 %v671, %v667
        %v746 = vpack.c.bf16 %v673, %v669
        %v747 = vpack.c.bf16 %v681, %v677
        %v748 = vpack.c.bf16 %v683, %v679
        %v749 = vpack.c.bf16 %v691, %v687
        %v750 = vpack.c.bf16 %v693, %v689
        %v751 = vpack.c.bf16 %v701, %v697
        %v752 = vpack.c.bf16 %v703, %v699
        %v753 = vpack.c.bf16 %v711, %v707
        %v754 = vpack.c.bf16 %v713, %v709
        %v755 = vpack.c.bf16 %v721, %v717
        %v756 = vpack.c.bf16 %v723, %v719
        %v757 = vpack.c.bf16 %v731, %v727
        %v758 = vpack.c.bf16 %v733, %v729
        %v759 = vpack.c.bf16 %v741, %v737
        %v760 = vpack.c.bf16 %v743, %v739
        %v761 = vpack.c.bf16 %v550, %v549
        %v762 = vpack.c.bf16 %v552, %v551
        %v763 = vpack.c.bf16 %v554, %v553
        %v764 = vpack.c.bf16 %v556, %v555
        %v765 = vpack.c.bf16 %v558, %v557
        %v766 = vpack.c.bf16 %v560, %v559
        %v767 = vpack.c.bf16 %v562, %v561
        %v768 = vpack.c.bf16 %v564, %v563
        %770 = vset.pattern.permute.xlu0 0
        %771 = vperm.xlu0 %770, %v761
        %v772 = vpop.permute.xlu0 %771
        %775 = vset.pattern.permute.xlu0 0
        %776 = vperm.xlu0 %775, %v762
        %v777 = vpop.permute.xlu0 %776
        %780 = vset.pattern.permute.xlu0 0
        %781 = vperm.xlu0 %780, %v763
        %v782 = vpop.permute.xlu0 %781
        %785 = vset.pattern.permute.xlu0 0
        %786 = vperm.xlu0 %785, %v764
        %v787 = vpop.permute.xlu0 %786
        %790 = vset.pattern.permute.xlu0 0
        %791 = vperm.xlu0 %790, %v765
        %v792 = vpop.permute.xlu0 %791
        %795 = vset.pattern.permute.xlu0 0
        %796 = vperm.xlu0 %795, %v766
        %v797 = vpop.permute.xlu0 %796
        %800 = vset.pattern.permute.xlu0 0
        %801 = vperm.xlu0 %800, %v767
        %v802 = vpop.permute.xlu0 %801
        %805 = vset.pattern.permute.xlu0 0
        %806 = vperm.xlu0 %805, %v768
        %v807 = vpop.permute.xlu0 %806
        %v809 = vadd.bf16 %v745, %v772
        %v810 = vadd.bf16 %v746, %v772
        %v811 = vadd.bf16 %v747, %v777
        %v812 = vadd.bf16 %v748, %v777
        %v813 = vadd.bf16 %v749, %v782
        %v814 = vadd.bf16 %v750, %v782
        %v815 = vadd.bf16 %v751, %v787
        %v816 = vadd.bf16 %v752, %v787
        %v817 = vadd.bf16 %v753, %v792
        %v818 = vadd.bf16 %v754, %v792
        %v819 = vadd.bf16 %v755, %v797
        %v820 = vadd.bf16 %v756, %v797
        %v821 = vadd.bf16 %v757, %v802
        %v822 = vadd.bf16 %v758, %v802
        %v823 = vadd.bf16 %v759, %v807
        %v824 = vadd.bf16 %v760, %v807
        %v825 = vxor.u32 %v817, 2147516416
        %v826 = vxor.u32 %v818, 2147516416
        %v827 = vxor.u32 %v819, 2147516416
        %v828 = vxor.u32 %v820, 2147516416
        %v829 = vxor.u32 %v821, 2147516416
        %v830 = vxor.u32 %v822, 2147516416
        %v831 = vxor.u32 %v823, 2147516416
        %v832 = vxor.u32 %v824, 2147516416
        %v834 = vmul.bf16 %v825, 1069105081
        %v835 = vpow.bf16.pop %v834
        %v837 = vmul.bf16 %v826, 1069105081
        %v838 = vpow.bf16.pop %v837
        %v840 = vmul.bf16 %v827, 1069105081
        %v841 = vpow.bf16.pop %v840
        %v843 = vmul.bf16 %v828, 1069105081
        %v844 = vpow.bf16.pop %v843
        %v846 = vmul.bf16 %v829, 1069105081
        %v847 = vpow.bf16.pop %v846
        %v849 = vmul.bf16 %v830, 1069105081
        %v850 = vpow.bf16.pop %v849
        %v852 = vmul.bf16 %v831, 1069105081
        %v853 = vpow.bf16.pop %v852
        %v855 = vmul.bf16 %v832, 1069105081
        %v856 = vpow.bf16.pop %v855
        %v857 = vadd.bf16 %v835, 1065369472
        %v858 = vadd.bf16 %v838, 1065369472
        %v859 = vadd.bf16 %v841, 1065369472
        %v860 = vadd.bf16 %v844, 1065369472
        %v861 = vadd.bf16 %v847, 1065369472
        %v862 = vadd.bf16 %v850, 1065369472
        %v863 = vadd.bf16 %v853, 1065369472
        %v864 = vadd.bf16 %v856, 1065369472
        %v865 = vrcp.bf16.pop %v857
        %v866 = vmul.bf16 1065369472, %v865
        %v867 = vrcp.bf16.pop %v858
        %v868 = vmul.bf16 1065369472, %v867
        %v869 = vrcp.bf16.pop %v859
        %v870 = vmul.bf16 1065369472, %v869
        %v871 = vrcp.bf16.pop %v860
        %v872 = vmul.bf16 1065369472, %v871
        %v873 = vrcp.bf16.pop %v861
        %v874 = vmul.bf16 1065369472, %v873
        %v875 = vrcp.bf16.pop %v862
        %v876 = vmul.bf16 1065369472, %v875
        %v877 = vrcp.bf16.pop %v863
        %v878 = vmul.bf16 1065369472, %v877
        %v879 = vrcp.bf16.pop %v864
        %v880 = vmul.bf16 1065369472, %v879
        %v881 = vmul.bf16 %v809, %v866
        %v882 = vmul.bf16 %v810, %v868
        %v883 = vmul.bf16 %v811, %v870
        %v884 = vmul.bf16 %v812, %v872
        %v885 = vmul.bf16 %v813, %v874
        %v886 = vmul.bf16 %v814, %v876
        %v887 = vmul.bf16 %v815, %v878
        %v888 = vmul.bf16 %v816, %v880
        %v889 = vld [vmem:[%s5] sm:$0xf]
        %v890 = vld [vmem:[%s5 + $0x4] sm:$0xf]
        %v891 = vld [vmem:[%s5 + $0x8] sm:$0xf]
        %v892 = vld [vmem:[%s5 + $0xc] sm:$0xf]
        %v893 = vld [vmem:[%s5 + $0x10] sm:$0xf]
        %v894 = vld [vmem:[%s5 + $0x14] sm:$0xf]
        %v895 = vld [vmem:[%s5 + $0x18] sm:$0xf]
        %v896 = vld [vmem:[%s5 + $0x1c] sm:$0xf]
        %v897 = vld [vmem:[%s5 + $0x20] sm:$0xf]
        %v898 = vld [vmem:[%s5 + $0x24] sm:$0xf]
        %v899 = vld [vmem:[%s5 + $0x28] sm:$0xf]
        %v900 = vld [vmem:[%s5 + $0x2c] sm:$0xf]
        %v901 = vld [vmem:[%s5 + $0x30] sm:$0xf]
        %v902 = vld [vmem:[%s5 + $0x34] sm:$0xf]
        %v903 = vld [vmem:[%s5 + $0x38] sm:$0xf]
        %v904 = vld [vmem:[%s5 + $0x3c] sm:$0xf]
        %v905 = vld [vmem:[%s6] sm:$0xff]
        %v906 = vld [vmem:[%s6 + $0x8] sm:$0xff]
        %v907 = vld [vmem:[%s6 + $0x10] sm:$0xff]
        %v908 = vld [vmem:[%s6 + $0x18] sm:$0xff]
        %v909 = vld [vmem:[%s6 + $0x20] sm:$0xff]
        %v910 = vld [vmem:[%s6 + $0x28] sm:$0xff]
        %v911 = vld [vmem:[%s6 + $0x30] sm:$0xff]
        %v912 = vld [vmem:[%s6 + $0x38] sm:$0xff]
        %v913 = vld [vmem:[%s6 + $0x40] sm:$0xff]
        %v914 = vld [vmem:[%s6 + $0x48] sm:$0xff]
        %v915 = vld [vmem:[%s6 + $0x50] sm:$0xff]
        %v916 = vld [vmem:[%s6 + $0x58] sm:$0xff]
        %v917 = vld [vmem:[%s6 + $0x60] sm:$0xff]
        %v918 = vld [vmem:[%s6 + $0x68] sm:$0xff]
        %v919 = vld [vmem:[%s6 + $0x70] sm:$0xff]
        %v920 = vld [vmem:[%s6 + $0x78] sm:$0xff]
        %v937 = vunpack.c.l.b16 %v889
        %v938 = vunpack.c.l.b16 %v890
        %v939 = vunpack.c.l.b16 %v891
        %v940 = vunpack.c.l.b16 %v892
        %v941 = vunpack.c.l.b16 %v893
        %v942 = vunpack.c.l.b16 %v894
        %v943 = vunpack.c.l.b16 %v895
        %v944 = vunpack.c.l.b16 %v896
        %v945 = vunpack.c.l.b16 %v897
        %v946 = vunpack.c.l.b16 %v898
        %v947 = vunpack.c.l.b16 %v899
        %v948 = vunpack.c.l.b16 %v900
        %v949 = vunpack.c.l.b16 %v901
        %v950 = vunpack.c.l.b16 %v902
        %v951 = vunpack.c.l.b16 %v903
        %v952 = vunpack.c.l.b16 %v904
        %v953 = vpack.c.b16 %v938, %v937
        %v954 = vpack.c.b16 %v940, %v939
        %v955 = vpack.c.b16 %v942, %v941
        %v956 = vpack.c.b16 %v944, %v943
        %v957 = vpack.c.b16 %v946, %v945
        %v958 = vpack.c.b16 %v948, %v947
        %v959 = vpack.c.b16 %v950, %v949
        %v960 = vpack.c.b16 %v952, %v951
        %vm961 = vcmask 523264
        %v963 = vsel %vm961, %v953, 0
        %v966 = vsel %vm961, %v954, 0
        %v969 = vsel %vm961, %v955, 0
        %v972 = vsel %vm961, %v956, 0
        %v975 = vsel %vm961, %v957, 0
        %v978 = vsel %vm961, %v958, 0
        %v981 = vsel %vm961, %v959, 0
        %v984 = vsel %vm961, %v960, 0
        %986 = vmatprep.subr.bf16.mxu0 %v882
        %987 = vmatpush1.bf16.msra.mxu0 %v881
        %988 = vmatprep.subr.bf16.mxu0 %v884
        %989 = vmatpush1.bf16.msra.mxu0 %v883
        %990 = vmatprep.subr.bf16.mxu0 %v886
        %991 = vmatpush1.bf16.msra.mxu0 %v885
        %992 = vmatprep.subr.bf16.mxu0 %v888
        %993 = vmatpush1.bf16.msra.mxu0 %v887
        %994 = vmatprep.subr.bf16.mxu0 0
        %995 = vmatpush1.bf16.msra.mxu0 0
        %996 = vmatprep.subr.bf16.mxu0 0
        %997 = vmatpush1.bf16.msra.mxu0 0
        %998 = vmatprep.subr.bf16.mxu0 0
        %999 = vmatpush1.bf16.msra.mxu0 0
        %1000 = vmatprep.subr.bf16.mxu0 0
        %1001 = vmatpush1.bf16.msra.mxu0 0
        %1002 = vmatprep.subr.bf16.mxu0 0
        %1003 = vmatpush1.bf16.msra.mxu0 0
        %1004 = vmatprep.subr.bf16.mxu0 0
        %1005 = vmatpush1.bf16.msra.mxu0 0
        %1006 = vmatprep.subr.bf16.mxu0 0
        %1007 = vmatpush1.bf16.msra.mxu0 0
        %1008 = vmatprep.subr.bf16.mxu0 0
        %1009 = vmatpush1.bf16.msra.mxu0 0
        %1010 = vmatprep.subr.bf16.mxu0 0
        %1011 = vmatpush1.bf16.msra.mxu0 0
        %1012 = vmatprep.subr.bf16.mxu0 0
        %1013 = vmatpush1.bf16.msra.mxu0 0
        %1014 = vmatprep.subr.bf16.mxu0 0
        %1015 = vmatpush1.bf16.msra.mxu0 0
        %1016 = vmatprep.subr.bf16.mxu0 0
        %1017 = vmatpush1.bf16.msra.mxu0 0
        %1018 = vmatprep.mubr.bf16.mxu0 0
        %1019 = vmatmul.mubr.bf16.gmra.mrb[0].mxu0 %v963
        %v1020 = vpop.f32.mrb[0].mxu0
        %v1021 = vadd.f32 0.0, %v1020
        %v1022 = vpop.f32.mrb[0].mxu0
        %v1023 = vadd.f32 0.0, %v1022
        %v1024 = vpop.f32.mrb[0].mxu0
        %v1025 = vadd.f32 0.0, %v1024
        %v1026 = vpop.f32.mrb[0].mxu0
        %v1027 = vadd.f32 0.0, %v1026
        %1028 = vmatprep.mubr.bf16.mxu0 0
        %1029 = vmatmul.mubr.bf16.gmra.mrb[0].mxu0 %v966
        %v1030 = vpop.f32.mrb[0].mxu0
        %v1031 = vadd.f32 0.0, %v1030
        %v1032 = vpop.f32.mrb[0].mxu0
        %v1033 = vadd.f32 0.0, %v1032
        %v1034 = vpop.f32.mrb[0].mxu0
        %v1035 = vadd.f32 0.0, %v1034
        %v1036 = vpop.f32.mrb[0].mxu0
        %v1037 = vadd.f32 0.0, %v1036
        %1038 = vmatprep.mubr.bf16.mxu0 0
        %1039 = vmatmul.mubr.bf16.gmra.mrb[0].mxu0 %v969
        %v1040 = vpop.f32.mrb[0].mxu0
        %v1041 = vadd.f32 0.0, %v1040
        %v1042 = vpop.f32.mrb[0].mxu0
        %v1043 = vadd.f32 0.0, %v1042
        %v1044 = vpop.f32.mrb[0].mxu0
        %v1045 = vadd.f32 0.0, %v1044
        %v1046 = vpop.f32.mrb[0].mxu0
        %v1047 = vadd.f32 0.0, %v1046
        %1048 = vmatprep.mubr.bf16.mxu0 0
        %1049 = vmatmul.mubr.bf16.gmra.mrb[0].mxu0 %v972
        %v1050 = vpop.f32.mrb[0].mxu0
        %v1051 = vadd.f32 0.0, %v1050
        %v1052 = vpop.f32.mrb[0].mxu0
        %v1053 = vadd.f32 0.0, %v1052
        %v1054 = vpop.f32.mrb[0].mxu0
        %v1055 = vadd.f32 0.0, %v1054
        %v1056 = vpop.f32.mrb[0].mxu0
        %v1057 = vadd.f32 0.0, %v1056
        %1058 = vmatprep.mubr.bf16.mxu0 0
        %1059 = vmatmul.mubr.bf16.gmra.mrb[0].mxu0 %v975
        %v1060 = vpop.f32.mrb[0].mxu0
        %v1061 = vadd.f32 0.0, %v1060
        %v1062 = vpop.f32.mrb[0].mxu0
        %v1063 = vadd.f32 0.0, %v1062
        %v1064 = vpop.f32.mrb[0].mxu0
        %v1065 = vadd.f32 0.0, %v1064
        %v1066 = vpop.f32.mrb[0].mxu0
        %v1067 = vadd.f32 0.0, %v1066
        %1068 = vmatprep.mubr.bf16.mxu0 0
        %1069 = vmatmul.mubr.bf16.gmra.mrb[0].mxu0 %v978
        %v1070 = vpop.f32.mrb[0].mxu0
        %v1071 = vadd.f32 0.0, %v1070
        %v1072 = vpop.f32.mrb[0].mxu0
        %v1073 = vadd.f32 0.0, %v1072
        %v1074 = vpop.f32.mrb[0].mxu0
        %v1075 = vadd.f32 0.0, %v1074
        %v1076 = vpop.f32.mrb[0].mxu0
        %v1077 = vadd.f32 0.0, %v1076
        %1078 = vmatprep.mubr.bf16.mxu0 0
        %1079 = vmatmul.mubr.bf16.gmra.mrb[0].mxu0 %v981
        %v1080 = vpop.f32.mrb[0].mxu0
        %v1081 = vadd.f32 0.0, %v1080
        %v1082 = vpop.f32.mrb[0].mxu0
        %v1083 = vadd.f32 0.0, %v1082
        %v1084 = vpop.f32.mrb[0].mxu0
        %v1085 = vadd.f32 0.0, %v1084
        %v1086 = vpop.f32.mrb[0].mxu0
        %v1087 = vadd.f32 0.0, %v1086
        %1088 = vmatprep.mubr.bf16.mxu0 0
        %1089 = vmatmul.mubr.bf16.gmra.mrb[0].mxu0 %v984
        %v1090 = vpop.f32.mrb[0].mxu0
        %v1091 = vadd.f32 0.0, %v1090
        %v1092 = vpop.f32.mrb[0].mxu0
        %v1093 = vadd.f32 0.0, %v1092
        %v1094 = vpop.f32.mrb[0].mxu0
        %v1095 = vadd.f32 0.0, %v1094
        %v1096 = vpop.f32.mrb[0].mxu0
        %v1097 = vadd.f32 0.0, %v1096
        %1098 = vdwg.mxu0
        %v1099 = vpack.c.bf16 %v1025, %v1021
        %v1100 = vpack.c.bf16 %v1027, %v1023
        %v1101 = vpack.c.bf16 %v1035, %v1031
        %v1102 = vpack.c.bf16 %v1037, %v1033
        %v1103 = vpack.c.bf16 %v1045, %v1041
        %v1104 = vpack.c.bf16 %v1047, %v1043
        %v1105 = vpack.c.bf16 %v1055, %v1051
        %v1106 = vpack.c.bf16 %v1057, %v1053
        %v1107 = vpack.c.bf16 %v1065, %v1061
        %v1108 = vpack.c.bf16 %v1067, %v1063
        %v1109 = vpack.c.bf16 %v1075, %v1071
        %v1110 = vpack.c.bf16 %v1077, %v1073
        %v1111 = vpack.c.bf16 %v1085, %v1081
        %v1112 = vpack.c.bf16 %v1087, %v1083
        %v1113 = vpack.c.bf16 %v1095, %v1091
        %v1114 = vpack.c.bf16 %v1097, %v1093
        %v1115 = vpack.c.bf16 %v906, %v905
        %v1116 = vpack.c.bf16 %v908, %v907
        %v1117 = vpack.c.bf16 %v910, %v909
        %v1118 = vpack.c.bf16 %v912, %v911
        %v1119 = vpack.c.bf16 %v914, %v913
        %v1120 = vpack.c.bf16 %v916, %v915
        %v1121 = vpack.c.bf16 %v918, %v917
        %v1122 = vpack.c.bf16 %v920, %v919
        %1124 = vset.pattern.permute.xlu0 0
        %1125 = vperm.xlu0 %1124, %v1115
        %v1126 = vpop.permute.xlu0 %1125
        %1129 = vset.pattern.permute.xlu0 0
        %1130 = vperm.xlu0 %1129, %v1116
        %v1131 = vpop.permute.xlu0 %1130
        %1134 = vset.pattern.permute.xlu0 0
        %1135 = vperm.xlu0 %1134, %v1117
        %v1136 = vpop.permute.xlu0 %1135
        %1139 = vset.pattern.permute.xlu0 0
        %1140 = vperm.xlu0 %1139, %v1118
        %v1141 = vpop.permute.xlu0 %1140
        %1144 = vset.pattern.permute.xlu0 0
        %1145 = vperm.xlu0 %1144, %v1119
        %v1146 = vpop.permute.xlu0 %1145
        %1149 = vset.pattern.permute.xlu0 0
        %1150 = vperm.xlu0 %1149, %v1120
        %v1151 = vpop.permute.xlu0 %1150
        %1154 = vset.pattern.permute.xlu0 0
        %1155 = vperm.xlu0 %1154, %v1121
        %v1156 = vpop.permute.xlu0 %1155
        %1159 = vset.pattern.permute.xlu0 0
        %1160 = vperm.xlu0 %1159, %v1122
        %v1161 = vpop.permute.xlu0 %1160
        %v1163 = vadd.bf16 %v1099, %v1126
        %v1164 = vadd.bf16 %v1100, %v1126
        %v1165 = vadd.bf16 %v1101, %v1131
        %v1166 = vadd.bf16 %v1102, %v1131
        %v1167 = vadd.bf16 %v1103, %v1136
        %v1168 = vadd.bf16 %v1104, %v1136
        %v1169 = vadd.bf16 %v1105, %v1141
        %v1170 = vadd.bf16 %v1106, %v1141
        %v1171 = vadd.bf16 %v1107, %v1146
        %v1172 = vadd.bf16 %v1108, %v1146
        %v1173 = vadd.bf16 %v1109, %v1151
        %v1174 = vadd.bf16 %v1110, %v1151
        %v1175 = vadd.bf16 %v1111, %v1156
        %v1176 = vadd.bf16 %v1112, %v1156
        %v1177 = vadd.bf16 %v1113, %v1161
        %v1178 = vadd.bf16 %v1114, %v1161
        %v1179 = vxor.u32 %v1171, 2147516416
        %v1180 = vxor.u32 %v1172, 2147516416
        %v1181 = vxor.u32 %v1173, 2147516416
        %v1182 = vxor.u32 %v1174, 2147516416
        %v1183 = vxor.u32 %v1175, 2147516416
        %v1184 = vxor.u32 %v1176, 2147516416
        %v1185 = vxor.u32 %v1177, 2147516416
        %v1186 = vxor.u32 %v1178, 2147516416
        %v1188 = vmul.bf16 %v1179, 1069105081
        %v1189 = vpow.bf16.pop %v1188
        %v1191 = vmul.bf16 %v1180, 1069105081
        %v1192 = vpow.bf16.pop %v1191
        %v1194 = vmul.bf16 %v1181, 1069105081
        %v1195 = vpow.bf16.pop %v1194
        %v1197 = vmul.bf16 %v1182, 1069105081
        %v1198 = vpow.bf16.pop %v1197
        %v1200 = vmul.bf16 %v1183, 1069105081
        %v1201 = vpow.bf16.pop %v1200
        %v1203 = vmul.bf16 %v1184, 1069105081
        %v1204 = vpow.bf16.pop %v1203
        %v1206 = vmul.bf16 %v1185, 1069105081
        %v1207 = vpow.bf16.pop %v1206
        %v1209 = vmul.bf16 %v1186, 1069105081
        %v1210 = vpow.bf16.pop %v1209
        %v1211 = vadd.bf16 %v1189, 1065369472
        %v1212 = vadd.bf16 %v1192, 1065369472
        %v1213 = vadd.bf16 %v1195, 1065369472
        %v1214 = vadd.bf16 %v1198, 1065369472
        %v1215 = vadd.bf16 %v1201, 1065369472
        %v1216 = vadd.bf16 %v1204, 1065369472
        %v1217 = vadd.bf16 %v1207, 1065369472
        %v1218 = vadd.bf16 %v1210, 1065369472
        %v1219 = vrcp.bf16.pop %v1211
        %v1220 = vmul.bf16 1065369472, %v1219
        %v1221 = vrcp.bf16.pop %v1212
        %v1222 = vmul.bf16 1065369472, %v1221
        %v1223 = vrcp.bf16.pop %v1213
        %v1224 = vmul.bf16 1065369472, %v1223
        %v1225 = vrcp.bf16.pop %v1214
        %v1226 = vmul.bf16 1065369472, %v1225
        %v1227 = vrcp.bf16.pop %v1215
        %v1228 = vmul.bf16 1065369472, %v1227
        %v1229 = vrcp.bf16.pop %v1216
        %v1230 = vmul.bf16 1065369472, %v1229
        %v1231 = vrcp.bf16.pop %v1217
        %v1232 = vmul.bf16 1065369472, %v1231
        %v1233 = vrcp.bf16.pop %v1218
        %v1234 = vmul.bf16 1065369472, %v1233
        %v1235 = vmul.bf16 %v1163, %v1220
        %v1236 = vmul.bf16 %v1164, %v1222
        %v1237 = vmul.bf16 %v1165, %v1224
        %v1238 = vmul.bf16 %v1166, %v1226
        %v1239 = vmul.bf16 %v1167, %v1228
        %v1240 = vmul.bf16 %v1168, %v1230
        %v1241 = vmul.bf16 %v1169, %v1232
        %v1242 = vmul.bf16 %v1170, %v1234
        %v1243 = vadd.bf16 %v881, %v1235
        %v1244 = vadd.bf16 %v882, %v1236
        %v1245 = vadd.bf16 %v883, %v1237
        %v1246 = vadd.bf16 %v884, %v1238
        %v1247 = vadd.bf16 %v885, %v1239
        %v1248 = vadd.bf16 %v886, %v1240
        %v1249 = vadd.bf16 %v887, %v1241
        %v1250 = vadd.bf16 %v888, %v1242
        %v1251 = vmul.bf16 %v1243, 1060454197
        %v1252 = vmul.bf16 %v1244, 1060454197
        %v1253 = vmul.bf16 %v1245, 1060454197
        %v1254 = vmul.bf16 %v1246, 1060454197
        %v1255 = vmul.bf16 %v1247, 1060454197
        %v1256 = vmul.bf16 %v1248, 1060454197
        %v1257 = vmul.bf16 %v1249, 1060454197
        %v1258 = vmul.bf16 %v1250, 1060454197
        %v1259 = vld [vmem:[%s7] sm:$0xf]
        %v1260 = vld [vmem:[%s7 + $0x4] sm:$0xf]
        %v1261 = vld [vmem:[%s7 + $0x8] sm:$0xf]
        %v1262 = vld [vmem:[%s7 + $0xc] sm:$0xf]
        %v1263 = vld [vmem:[%s7 + $0x10] sm:$0xf]
        %v1264 = vld [vmem:[%s7 + $0x14] sm:$0xf]
        %v1265 = vld [vmem:[%s7 + $0x18] sm:$0xf]
        %v1266 = vld [vmem:[%s7 + $0x1c] sm:$0xf]
        %v1267 = vld [vmem:[%s7 + $0x20] sm:$0xf]
        %v1268 = vld [vmem:[%s7 + $0x24] sm:$0xf]
        %v1269 = vld [vmem:[%s7 + $0x28] sm:$0xf]
        %v1270 = vld [vmem:[%s7 + $0x2c] sm:$0xf]
        %v1271 = vld [vmem:[%s7 + $0x30] sm:$0xf]
        %v1272 = vld [vmem:[%s7 + $0x34] sm:$0xf]
        %v1273 = vld [vmem:[%s7 + $0x38] sm:$0xf]
        %v1274 = vld [vmem:[%s7 + $0x3c] sm:$0xf]
        %v1275 = vld [vmem:[%s8] sm:$0xff]
        %v1276 = vld [vmem:[%s8 + $0x8] sm:$0xff]
        %v1277 = vld [vmem:[%s8 + $0x10] sm:$0xff]
        %v1278 = vld [vmem:[%s8 + $0x18] sm:$0xff]
        %v1279 = vld [vmem:[%s8 + $0x20] sm:$0xff]
        %v1280 = vld [vmem:[%s8 + $0x28] sm:$0xff]
        %v1281 = vld [vmem:[%s8 + $0x30] sm:$0xff]
        %v1282 = vld [vmem:[%s8 + $0x38] sm:$0xff]
        %v1283 = vld [vmem:[%s8 + $0x40] sm:$0xff]
        %v1284 = vld [vmem:[%s8 + $0x48] sm:$0xff]
        %v1285 = vld [vmem:[%s8 + $0x50] sm:$0xff]
        %v1286 = vld [vmem:[%s8 + $0x58] sm:$0xff]
        %v1287 = vld [vmem:[%s8 + $0x60] sm:$0xff]
        %v1288 = vld [vmem:[%s8 + $0x68] sm:$0xff]
        %v1289 = vld [vmem:[%s8 + $0x70] sm:$0xff]
        %v1290 = vld [vmem:[%s8 + $0x78] sm:$0xff]
        %v1307 = vunpack.c.l.b16 %v1259
        %v1308 = vunpack.c.l.b16 %v1260
        %v1309 = vunpack.c.l.b16 %v1261
        %v1310 = vunpack.c.l.b16 %v1262
        %v1311 = vunpack.c.l.b16 %v1263
        %v1312 = vunpack.c.l.b16 %v1264
        %v1313 = vunpack.c.l.b16 %v1265
        %v1314 = vunpack.c.l.b16 %v1266
        %v1315 = vunpack.c.l.b16 %v1267
        %v1316 = vunpack.c.l.b16 %v1268
        %v1317 = vunpack.c.l.b16 %v1269
        %v1318 = vunpack.c.l.b16 %v1270
        %v1319 = vunpack.c.l.b16 %v1271
        %v1320 = vunpack.c.l.b16 %v1272
        %v1321 = vunpack.c.l.b16 %v1273
        %v1322 = vunpack.c.l.b16 %v1274
        %v1323 = vpack.c.b16 %v1308, %v1307
        %v1324 = vpack.c.b16 %v1310, %v1309
        %v1325 = vpack.c.b16 %v1312, %v1311
        %v1326 = vpack.c.b16 %v1314, %v1313
        %v1327 = vpack.c.b16 %v1316, %v1315
        %v1328 = vpack.c.b16 %v1318, %v1317
        %v1329 = vpack.c.b16 %v1320, %v1319
        %v1330 = vpack.c.b16 %v1322, %v1321
        %v1332 = vsel %vm961, %v1323, 0
        %v1335 = vsel %vm961, %v1324, 0
        %v1338 = vsel %vm961, %v1325, 0
        %v1341 = vsel %vm961, %v1326, 0
        %v1344 = vsel %vm961, %v1327, 0
        %v1347 = vsel %vm961, %v1328, 0
        %v1350 = vsel %vm961, %v1329, 0
        %v1353 = vsel %vm961, %v1330, 0
        %1355 = vmatprep.subr.bf16.mxu0 %v1252
        %1356 = vmatpush1.bf16.msra.mxu0 %v1251
        %1357 = vmatprep.subr.bf16.mxu0 %v1254
        %1358 = vmatpush1.bf16.msra.mxu0 %v1253
        %1359 = vmatprep.subr.bf16.mxu0 %v1256
        %1360 = vmatpush1.bf16.msra.mxu0 %v1255
        %1361 = vmatprep.subr.bf16.mxu0 %v1258
        %1362 = vmatpush1.bf16.msra.mxu0 %v1257
        %1363 = vmatprep.subr.bf16.mxu0 0
        %1364 = vmatpush1.bf16.msra.mxu0 0
        %1365 = vmatprep.subr.bf16.mxu0 0
        %1366 = vmatpush1.bf16.msra.mxu0 0
        %1367 = vmatprep.subr.bf16.mxu0 0
        %1368 = vmatpush1.bf16.msra.mxu0 0
        %1369 = vmatprep.subr.bf16.mxu0 0
        %1370 = vmatpush1.bf16.msra.mxu0 0
        %1371 = vmatprep.subr.bf16.mxu0 0
        %1372 = vmatpush1.bf16.msra.mxu0 0
        %1373 = vmatprep.subr.bf16.mxu0 0
        %1374 = vmatpush1.bf16.msra.mxu0 0
        %1375 = vmatprep.subr.bf16.mxu0 0
        %1376 = vmatpush1.bf16.msra.mxu0 0
        %1377 = vmatprep.subr.bf16.mxu0 0
        %1378 = vmatpush1.bf16.msra.mxu0 0
        %1379 = vmatprep.subr.bf16.mxu0 0
        %1380 = vmatpush1.bf16.msra.mxu0 0
        %1381 = vmatprep.subr.bf16.mxu0 0
        %1382 = vmatpush1.bf16.msra.mxu0 0
        %1383 = vmatprep.subr.bf16.mxu0 0
        %1384 = vmatpush1.bf16.msra.mxu0 0
        %1385 = vmatprep.subr.bf16.mxu0 0
        %1386 = vmatpush1.bf16.msra.mxu0 0
        %1387 = vmatprep.mubr.bf16.mxu0 0
        %1388 = vmatmul.mubr.bf16.gmra.mrb[0].mxu0 %v1332
        %v1389 = vpop.f32.mrb[0].mxu0
        %v1390 = vadd.f32 0.0, %v1389
        %v1391 = vpop.f32.mrb[0].mxu0
        %v1392 = vadd.f32 0.0, %v1391
        %v1393 = vpop.f32.mrb[0].mxu0
        %v1394 = vadd.f32 0.0, %v1393
        %v1395 = vpop.f32.mrb[0].mxu0
        %v1396 = vadd.f32 0.0, %v1395
        %1397 = vmatprep.mubr.bf16.mxu0 0
        %1398 = vmatmul.mubr.bf16.gmra.mrb[0].mxu0 %v1335
        %v1399 = vpop.f32.mrb[0].mxu0
        %v1400 = vadd.f32 0.0, %v1399
        %v1401 = vpop.f32.mrb[0].mxu0
        %v1402 = vadd.f32 0.0, %v1401
        %v1403 = vpop.f32.mrb[0].mxu0
        %v1404 = vadd.f32 0.0, %v1403
        %v1405 = vpop.f32.mrb[0].mxu0
        %v1406 = vadd.f32 0.0, %v1405
        %1407 = vmatprep.mubr.bf16.mxu0 0
        %1408 = vmatmul.mubr.bf16.gmra.mrb[0].mxu0 %v1338
        %v1409 = vpop.f32.mrb[0].mxu0
        %v1410 = vadd.f32 0.0, %v1409
        %v1411 = vpop.f32.mrb[0].mxu0
        %v1412 = vadd.f32 0.0, %v1411
        %v1413 = vpop.f32.mrb[0].mxu0
        %v1414 = vadd.f32 0.0, %v1413
        %v1415 = vpop.f32.mrb[0].mxu0
        %v1416 = vadd.f32 0.0, %v1415
        %1417 = vmatprep.mubr.bf16.mxu0 0
        %1418 = vmatmul.mubr.bf16.gmra.mrb[0].mxu0 %v1341
        %v1419 = vpop.f32.mrb[0].mxu0
        %v1420 = vadd.f32 0.0, %v1419
        %v1421 = vpop.f32.mrb[0].mxu0
        %v1422 = vadd.f32 0.0, %v1421
        %v1423 = vpop.f32.mrb[0].mxu0
        %v1424 = vadd.f32 0.0, %v1423
        %v1425 = vpop.f32.mrb[0].mxu0
        %v1426 = vadd.f32 0.0, %v1425
        %1427 = vmatprep.mubr.bf16.mxu0 0
        %1428 = vmatmul.mubr.bf16.gmra.mrb[0].mxu0 %v1344
        %v1429 = vpop.f32.mrb[0].mxu0
        %v1430 = vadd.f32 0.0, %v1429
        %v1431 = vpop.f32.mrb[0].mxu0
        %v1432 = vadd.f32 0.0, %v1431
        %v1433 = vpop.f32.mrb[0].mxu0
        %v1434 = vadd.f32 0.0, %v1433
        %v1435 = vpop.f32.mrb[0].mxu0
        %v1436 = vadd.f32 0.0, %v1435
        %1437 = vmatprep.mubr.bf16.mxu0 0
        %1438 = vmatmul.mubr.bf16.gmra.mrb[0].mxu0 %v1347
        %v1439 = vpop.f32.mrb[0].mxu0
        %v1440 = vadd.f32 0.0, %v1439
        %v1441 = vpop.f32.mrb[0].mxu0
        %v1442 = vadd.f32 0.0, %v1441
        %v1443 = vpop.f32.mrb[0].mxu0
        %v1444 = vadd.f32 0.0, %v1443
        %v1445 = vpop.f32.mrb[0].mxu0
        %v1446 = vadd.f32 0.0, %v1445
        %1447 = vmatprep.mubr.bf16.mxu0 0
        %1448 = vmatmul.mubr.bf16.gmra.mrb[0].mxu0 %v1350
        %v1449 = vpop.f32.mrb[0].mxu0
        %v1450 = vadd.f32 0.0, %v1449
        %v1451 = vpop.f32.mrb[0].mxu0
        %v1452 = vadd.f32 0.0, %v1451
        %v1453 = vpop.f32.mrb[0].mxu0
        %v1454 = vadd.f32 0.0, %v1453
        %v1455 = vpop.f32.mrb[0].mxu0
        %v1456 = vadd.f32 0.0, %v1455
        %1457 = vmatprep.mubr.bf16.mxu0 0
        %1458 = vmatmul.mubr.bf16.gmra.mrb[0].mxu0 %v1353
        %v1459 = vpop.f32.mrb[0].mxu0
        %v1460 = vadd.f32 0.0, %v1459
        %v1461 = vpop.f32.mrb[0].mxu0
        %v1462 = vadd.f32 0.0, %v1461
        %v1463 = vpop.f32.mrb[0].mxu0
        %v1464 = vadd.f32 0.0, %v1463
        %v1465 = vpop.f32.mrb[0].mxu0
        %v1466 = vadd.f32 0.0, %v1465
        %1467 = vdwg.mxu0
        %v1468 = vpack.c.bf16 %v1394, %v1390
        %v1469 = vpack.c.bf16 %v1396, %v1392
        %v1470 = vpack.c.bf16 %v1404, %v1400
        %v1471 = vpack.c.bf16 %v1406, %v1402
        %v1472 = vpack.c.bf16 %v1414, %v1410
        %v1473 = vpack.c.bf16 %v1416, %v1412
        %v1474 = vpack.c.bf16 %v1424, %v1420
        %v1475 = vpack.c.bf16 %v1426, %v1422
        %v1476 = vpack.c.bf16 %v1434, %v1430
        %v1477 = vpack.c.bf16 %v1436, %v1432
        %v1478 = vpack.c.bf16 %v1444, %v1440
        %v1479 = vpack.c.bf16 %v1446, %v1442
        %v1480 = vpack.c.bf16 %v1454, %v1450
        %v1481 = vpack.c.bf16 %v1456, %v1452
        %v1482 = vpack.c.bf16 %v1464, %v1460
        %v1483 = vpack.c.bf16 %v1466, %v1462
        %v1484 = vpack.c.bf16 %v1276, %v1275
        %v1485 = vpack.c.bf16 %v1278, %v1277
        %v1486 = vpack.c.bf16 %v1280, %v1279
        %v1487 = vpack.c.bf16 %v1282, %v1281
        %v1488 = vpack.c.bf16 %v1284, %v1283
        %v1489 = vpack.c.bf16 %v1286, %v1285
        %v1490 = vpack.c.bf16 %v1288, %v1287
        %v1491 = vpack.c.bf16 %v1290, %v1289
        %1493 = vset.pattern.permute.xlu0 0
        %1494 = vperm.xlu0 %1493, %v1484
        %v1495 = vpop.permute.xlu0 %1494
        %1498 = vset.pattern.permute.xlu0 0
        %1499 = vperm.xlu0 %1498, %v1485
        %v1500 = vpop.permute.xlu0 %1499
        %1503 = vset.pattern.permute.xlu0 0
        %1504 = vperm.xlu0 %1503, %v1486
        %v1505 = vpop.permute.xlu0 %1504
        %1508 = vset.pattern.permute.xlu0 0
        %1509 = vperm.xlu0 %1508, %v1487
        %v1510 = vpop.permute.xlu0 %1509
        %1513 = vset.pattern.permute.xlu0 0
        %1514 = vperm.xlu0 %1513, %v1488
        %v1515 = vpop.permute.xlu0 %1514
        %1518 = vset.pattern.permute.xlu0 0
        %1519 = vperm.xlu0 %1518, %v1489
        %v1520 = vpop.permute.xlu0 %1519
        %1523 = vset.pattern.permute.xlu0 0
        %1524 = vperm.xlu0 %1523, %v1490
        %v1525 = vpop.permute.xlu0 %1524
        %1528 = vset.pattern.permute.xlu0 0
        %1529 = vperm.xlu0 %1528, %v1491
        %v1530 = vpop.permute.xlu0 %1529
        %v1532 = vadd.bf16 %v1468, %v1495
        %v1533 = vadd.bf16 %v1469, %v1495
        %v1534 = vadd.bf16 %v1470, %v1500
        %v1535 = vadd.bf16 %v1471, %v1500
        %v1536 = vadd.bf16 %v1472, %v1505
        %v1537 = vadd.bf16 %v1473, %v1505
        %v1538 = vadd.bf16 %v1474, %v1510
        %v1539 = vadd.bf16 %v1475, %v1510
        %v1540 = vadd.bf16 %v1476, %v1515
        %v1541 = vadd.bf16 %v1477, %v1515
        %v1542 = vadd.bf16 %v1478, %v1520
        %v1543 = vadd.bf16 %v1479, %v1520
        %v1544 = vadd.bf16 %v1480, %v1525
        %v1545 = vadd.bf16 %v1481, %v1525
        %v1546 = vadd.bf16 %v1482, %v1530
        %v1547 = vadd.bf16 %v1483, %v1530
        %v1548 = vxor.u32 %v1540, 2147516416
        %v1549 = vxor.u32 %v1541, 2147516416
        %v1550 = vxor.u32 %v1542, 2147516416
        %v1551 = vxor.u32 %v1543, 2147516416
        %v1552 = vxor.u32 %v1544, 2147516416
        %v1553 = vxor.u32 %v1545, 2147516416
        %v1554 = vxor.u32 %v1546, 2147516416
        %v1555 = vxor.u32 %v1547, 2147516416
        %v1557 = vmul.bf16 %v1548, 1069105081
        %v1558 = vpow.bf16.pop %v1557
        %v1560 = vmul.bf16 %v1549, 1069105081
        %v1561 = vpow.bf16.pop %v1560
        %v1563 = vmul.bf16 %v1550, 1069105081
        %v1564 = vpow.bf16.pop %v1563
        %v1566 = vmul.bf16 %v1551, 1069105081
        %v1567 = vpow.bf16.pop %v1566
        %v1569 = vmul.bf16 %v1552, 1069105081
        %v1570 = vpow.bf16.pop %v1569
        %v1572 = vmul.bf16 %v1553, 1069105081
        %v1573 = vpow.bf16.pop %v1572
        %v1575 = vmul.bf16 %v1554, 1069105081
        %v1576 = vpow.bf16.pop %v1575
        %v1578 = vmul.bf16 %v1555, 1069105081
        %v1579 = vpow.bf16.pop %v1578
        %v1580 = vadd.bf16 %v1558, 1065369472
        %v1581 = vadd.bf16 %v1561, 1065369472
        %v1582 = vadd.bf16 %v1564, 1065369472
        %v1583 = vadd.bf16 %v1567, 1065369472
        %v1584 = vadd.bf16 %v1570, 1065369472
        %v1585 = vadd.bf16 %v1573, 1065369472
        %v1586 = vadd.bf16 %v1576, 1065369472
        %v1587 = vadd.bf16 %v1579, 1065369472
        %v1588 = vrcp.bf16.pop %v1580
        %v1589 = vmul.bf16 1065369472, %v1588
        %v1590 = vrcp.bf16.pop %v1581
        %v1591 = vmul.bf16 1065369472, %v1590
        %v1592 = vrcp.bf16.pop %v1582
        %v1593 = vmul.bf16 1065369472, %v1592
        %v1594 = vrcp.bf16.pop %v1583
        %v1595 = vmul.bf16 1065369472, %v1594
        %v1596 = vrcp.bf16.pop %v1584
        %v1597 = vmul.bf16 1065369472, %v1596
        %v1598 = vrcp.bf16.pop %v1585
        %v1599 = vmul.bf16 1065369472, %v1598
        %v1600 = vrcp.bf16.pop %v1586
        %v1601 = vmul.bf16 1065369472, %v1600
        %v1602 = vrcp.bf16.pop %v1587
        %v1603 = vmul.bf16 1065369472, %v1602
        %v1604 = vmul.bf16 %v1532, %v1589
        %v1605 = vmul.bf16 %v1533, %v1591
        %v1606 = vmul.bf16 %v1534, %v1593
        %v1607 = vmul.bf16 %v1535, %v1595
        %v1608 = vmul.bf16 %v1536, %v1597
        %v1609 = vmul.bf16 %v1537, %v1599
        %v1610 = vmul.bf16 %v1538, %v1601
        %v1611 = vmul.bf16 %v1539, %v1603
        %v1612 = vadd.bf16 %v1251, %v1604
        %v1613 = vadd.bf16 %v1252, %v1605
        %v1614 = vadd.bf16 %v1253, %v1606
        %v1615 = vadd.bf16 %v1254, %v1607
        %v1616 = vadd.bf16 %v1255, %v1608
        %v1617 = vadd.bf16 %v1256, %v1609
        %v1618 = vadd.bf16 %v1257, %v1610
        %v1619 = vadd.bf16 %v1258, %v1611
        %v1620 = vmul.bf16 %v1612, 1060454197
        %v1621 = vmul.bf16 %v1613, 1060454197
        %v1622 = vmul.bf16 %v1614, 1060454197
        %v1623 = vmul.bf16 %v1615, 1060454197
        %v1624 = vmul.bf16 %v1616, 1060454197
        %v1625 = vmul.bf16 %v1617, 1060454197
        %v1626 = vmul.bf16 %v1618, 1060454197
        %v1627 = vmul.bf16 %v1619, 1060454197
        %s1628 = scalar_lea.vmem %s7, 64
        %v1629 = vld [vmem:[%s1628] sm:$0xf]
        %v1630 = vld [vmem:[%s1628 + $0x4] sm:$0xf]
        %v1631 = vld [vmem:[%s1628 + $0x8] sm:$0xf]
        %v1632 = vld [vmem:[%s1628 + $0xc] sm:$0xf]
        %v1633 = vld [vmem:[%s1628 + $0x10] sm:$0xf]
        %v1634 = vld [vmem:[%s1628 + $0x14] sm:$0xf]
        %v1635 = vld [vmem:[%s1628 + $0x18] sm:$0xf]
        %v1636 = vld [vmem:[%s1628 + $0x1c] sm:$0xf]
        %v1637 = vld [vmem:[%s1628 + $0x20] sm:$0xf]
        %v1638 = vld [vmem:[%s1628 + $0x24] sm:$0xf]
        %v1639 = vld [vmem:[%s1628 + $0x28] sm:$0xf]
        %v1640 = vld [vmem:[%s1628 + $0x2c] sm:$0xf]
        %v1641 = vld [vmem:[%s1628 + $0x30] sm:$0xf]
        %v1642 = vld [vmem:[%s1628 + $0x34] sm:$0xf]
        %v1643 = vld [vmem:[%s1628 + $0x38] sm:$0xf]
        %v1644 = vld [vmem:[%s1628 + $0x3c] sm:$0xf]
        %s1645 = scalar_lea.vmem %s8, 128
        %v1646 = vld [vmem:[%s1645 + $0x20] sm:$0xff]
        %v1647 = vld [vmem:[%s1645 + $0x28] sm:$0xff]
        %v1648 = vld [vmem:[%s1645 + $0x30] sm:$0xff]
        %v1649 = vld [vmem:[%s1645 + $0x38] sm:$0xff]
        %v1650 = vld [vmem:[%s1645 + $0x60] sm:$0xff]
        %v1651 = vld [vmem:[%s1645 + $0x68] sm:$0xff]
        %v1652 = vld [vmem:[%s1645 + $0x70] sm:$0xff]
        %v1653 = vld [vmem:[%s1645 + $0x78] sm:$0xff]
        %v1670 = vunpack.c.l.b16 %v1629
        %v1671 = vunpack.c.l.b16 %v1630
        %v1672 = vunpack.c.l.b16 %v1631
        %v1673 = vunpack.c.l.b16 %v1632
        %v1674 = vunpack.c.l.b16 %v1633
        %v1675 = vunpack.c.l.b16 %v1634
        %v1676 = vunpack.c.l.b16 %v1635
        %v1677 = vunpack.c.l.b16 %v1636
        %v1678 = vunpack.c.l.b16 %v1637
        %v1679 = vunpack.c.l.b16 %v1638
        %v1680 = vunpack.c.l.b16 %v1639
        %v1681 = vunpack.c.l.b16 %v1640
        %v1682 = vunpack.c.l.b16 %v1641
        %v1683 = vunpack.c.l.b16 %v1642
        %v1684 = vunpack.c.l.b16 %v1643
        %v1685 = vunpack.c.l.b16 %v1644
        %v1686 = vpack.c.b16 %v1671, %v1670
        %v1687 = vpack.c.b16 %v1673, %v1672
        %v1688 = vpack.c.b16 %v1675, %v1674
        %v1689 = vpack.c.b16 %v1677, %v1676
        %v1690 = vpack.c.b16 %v1679, %v1678
        %v1691 = vpack.c.b16 %v1681, %v1680
        %v1692 = vpack.c.b16 %v1683, %v1682
        %v1693 = vpack.c.b16 %v1685, %v1684
        %v1695 = vsel %vm961, %v1686, 0
        %v1698 = vsel %vm961, %v1687, 0
        %v1701 = vsel %vm961, %v1688, 0
        %v1704 = vsel %vm961, %v1689, 0
        %v1707 = vsel %vm961, %v1690, 0
        %v1710 = vsel %vm961, %v1691, 0
        %v1713 = vsel %vm961, %v1692, 0
        %v1716 = vsel %vm961, %v1693, 0
        %1718 = vmatprep.subr.bf16.mxu0 %v1621
        %1719 = vmatpush1.bf16.msra.mxu0 %v1620
        %1720 = vmatprep.subr.bf16.mxu0 %v1623
        %1721 = vmatpush1.bf16.msra.mxu0 %v1622
        %1722 = vmatprep.subr.bf16.mxu0 %v1625
        %1723 = vmatpush1.bf16.msra.mxu0 %v1624
        %1724 = vmatprep.subr.bf16.mxu0 %v1627
        %1725 = vmatpush1.bf16.msra.mxu0 %v1626
        %1726 = vmatprep.subr.bf16.mxu0 0
        %1727 = vmatpush1.bf16.msra.mxu0 0
        %1728 = vmatprep.subr.bf16.mxu0 0
        %1729 = vmatpush1.bf16.msra.mxu0 0
        %1730 = vmatprep.subr.bf16.mxu0 0
        %1731 = vmatpush1.bf16.msra.mxu0 0
        %1732 = vmatprep.subr.bf16.mxu0 0
        %1733 = vmatpush1.bf16.msra.mxu0 0
        %1734 = vmatprep.subr.bf16.mxu0 0
        %1735 = vmatpush1.bf16.msra.mxu0 0
        %1736 = vmatprep.subr.bf16.mxu0 0
        %1737 = vmatpush1.bf16.msra.mxu0 0
        %1738 = vmatprep.subr.bf16.mxu0 0
        %1739 = vmatpush1.bf16.msra.mxu0 0
        %1740 = vmatprep.subr.bf16.mxu0 0
        %1741 = vmatpush1.bf16.msra.mxu0 0
        %1742 = vmatprep.subr.bf16.mxu0 0
        %1743 = vmatpush1.bf16.msra.mxu0 0
        %1744 = vmatprep.subr.bf16.mxu0 0
        %1745 = vmatpush1.bf16.msra.mxu0 0
        %1746 = vmatprep.subr.bf16.mxu0 0
        %1747 = vmatpush1.bf16.msra.mxu0 0
        %1748 = vmatprep.subr.bf16.mxu0 0
        %1749 = vmatpush1.bf16.msra.mxu0 0
        %1750 = vmatprep.mubr.bf16.mxu0 0
        %1751 = vmatmul.mubr.bf16.gmra.mrb[0].mxu0 %v1695
        %v1752 = vpop.f32.mrb[0].mxu0
        %v1753 = vpop.f32.mrb[0].mxu0
        %v1754 = vpop.f32.mrb[0].mxu0
        %v1755 = vpop.f32.mrb[0].mxu0
        %1756 = vmatprep.mubr.bf16.mxu0 0
        %1757 = vmatmul.mubr.bf16.gmra.mrb[0].mxu0 %v1698
        %v1758 = vpop.f32.mrb[0].mxu0
        %v1759 = vpop.f32.mrb[0].mxu0
        %v1760 = vpop.f32.mrb[0].mxu0
        %v1761 = vpop.f32.mrb[0].mxu0
        %1762 = vmatprep.mubr.bf16.mxu0 0
        %1763 = vmatmul.mubr.bf16.gmra.mrb[0].mxu0 %v1701
        %v1764 = vpop.f32.mrb[0].mxu0
        %v1765 = vadd.f32 0.0, %v1764
        %v1766 = vpop.f32.mrb[0].mxu0
        %v1767 = vadd.f32 0.0, %v1766
        %v1768 = vpop.f32.mrb[0].mxu0
        %v1769 = vadd.f32 0.0, %v1768
        %v1770 = vpop.f32.mrb[0].mxu0
        %v1771 = vadd.f32 0.0, %v1770
        %1772 = vmatprep.mubr.bf16.mxu0 0
        %1773 = vmatmul.mubr.bf16.gmra.mrb[0].mxu0 %v1704
        %v1774 = vpop.f32.mrb[0].mxu0
        %v1775 = vadd.f32 0.0, %v1774
        %v1776 = vpop.f32.mrb[0].mxu0
        %v1777 = vadd.f32 0.0, %v1776
        %v1778 = vpop.f32.mrb[0].mxu0
        %v1779 = vadd.f32 0.0, %v1778
        %v1780 = vpop.f32.mrb[0].mxu0
        %v1781 = vadd.f32 0.0, %v1780
        %1782 = vmatprep.mubr.bf16.mxu0 0
        %1783 = vmatmul.mubr.bf16.gmra.mrb[0].mxu0 %v1707
        %v1784 = vpop.f32.mrb[0].mxu0
        %v1785 = vpop.f32.mrb[0].mxu0
        %v1786 = vpop.f32.mrb[0].mxu0
        %v1787 = vpop.f32.mrb[0].mxu0
        %1788 = vmatprep.mubr.bf16.mxu0 0
        %1789 = vmatmul.mubr.bf16.gmra.mrb[0].mxu0 %v1710
        %v1790 = vpop.f32.mrb[0].mxu0
        %v1791 = vpop.f32.mrb[0].mxu0
        %v1792 = vpop.f32.mrb[0].mxu0
        %v1793 = vpop.f32.mrb[0].mxu0
        %1794 = vmatprep.mubr.bf16.mxu0 0
        %1795 = vmatmul.mubr.bf16.gmra.mrb[0].mxu0 %v1713
        %v1796 = vpop.f32.mrb[0].mxu0
        %v1797 = vadd.f32 0.0, %v1796
        %v1798 = vpop.f32.mrb[0].mxu0
        %v1799 = vadd.f32 0.0, %v1798
        %v1800 = vpop.f32.mrb[0].mxu0
        %v1801 = vadd.f32 0.0, %v1800
        %v1802 = vpop.f32.mrb[0].mxu0
        %v1803 = vadd.f32 0.0, %v1802
        %1804 = vmatprep.mubr.bf16.mxu0 0
        %1805 = vmatmul.mubr.bf16.gmra.mrb[0].mxu0 %v1716
        %v1806 = vpop.f32.mrb[0].mxu0
        %v1807 = vadd.f32 0.0, %v1806
        %v1808 = vpop.f32.mrb[0].mxu0
        %v1809 = vadd.f32 0.0, %v1808
        %v1810 = vpop.f32.mrb[0].mxu0
        %v1811 = vadd.f32 0.0, %v1810
        %v1812 = vpop.f32.mrb[0].mxu0
        %v1813 = vadd.f32 0.0, %v1812
        %1814 = vdwg.mxu0
        %v1815 = vpack.c.bf16 %v1769, %v1765
        %v1816 = vpack.c.bf16 %v1771, %v1767
        %v1817 = vpack.c.bf16 %v1779, %v1775
        %v1818 = vpack.c.bf16 %v1781, %v1777
        %v1819 = vpack.c.bf16 %v1801, %v1797
        %v1820 = vpack.c.bf16 %v1803, %v1799
        %v1821 = vpack.c.bf16 %v1811, %v1807
        %v1822 = vpack.c.bf16 %v1813, %v1809
        %v1823 = vpack.c.bf16 %v1647, %v1646
        %v1824 = vpack.c.bf16 %v1649, %v1648
        %v1825 = vpack.c.bf16 %v1651, %v1650
        %v1826 = vpack.c.bf16 %v1653, %v1652
        %1828 = vset.pattern.permute.xlu0 0
        %1829 = vperm.xlu0 %1828, %v1823
        %v1830 = vpop.permute.xlu0 %1829
        %1833 = vset.pattern.permute.xlu0 0
        %1834 = vperm.xlu0 %1833, %v1824
        %v1835 = vpop.permute.xlu0 %1834
        %1838 = vset.pattern.permute.xlu0 0
        %1839 = vperm.xlu0 %1838, %v1825
        %v1840 = vpop.permute.xlu0 %1839
        %1843 = vset.pattern.permute.xlu0 0
        %1844 = vperm.xlu0 %1843, %v1826
        %v1845 = vpop.permute.xlu0 %1844
        %v1847 = vadd.bf16 %v1815, %v1830
        %v1848 = vadd.bf16 %v1816, %v1830
        %v1849 = vadd.bf16 %v1817, %v1835
        %v1850 = vadd.bf16 %v1818, %v1835
        %v1851 = vadd.bf16 %v1819, %v1840
        %v1852 = vadd.bf16 %v1820, %v1840
        %v1853 = vadd.bf16 %v1821, %v1845
        %v1854 = vadd.bf16 %v1822, %v1845
        %v1855 = vxor.u32 %v1851, 2147516416
        %v1856 = vxor.u32 %v1852, 2147516416
        %v1857 = vxor.u32 %v1853, 2147516416
        %v1858 = vxor.u32 %v1854, 2147516416
        %v1860 = vmul.bf16 %v1855, 1069105081
        %v1861 = vpow.bf16.pop %v1860
        %v1863 = vmul.bf16 %v1856, 1069105081
        %v1864 = vpow.bf16.pop %v1863
        %v1866 = vmul.bf16 %v1857, 1069105081
        %v1867 = vpow.bf16.pop %v1866
        %v1869 = vmul.bf16 %v1858, 1069105081
        %v1870 = vpow.bf16.pop %v1869
        %v1871 = vadd.bf16 %v1861, 1065369472
        %v1872 = vadd.bf16 %v1864, 1065369472
        %v1873 = vadd.bf16 %v1867, 1065369472
        %v1874 = vadd.bf16 %v1870, 1065369472
        %v1875 = vrcp.bf16.pop %v1871
        %v1876 = vmul.bf16 1065369472, %v1875
        %v1877 = vrcp.bf16.pop %v1872
        %v1878 = vmul.bf16 1065369472, %v1877
        %v1879 = vrcp.bf16.pop %v1873
        %v1880 = vmul.bf16 1065369472, %v1879
        %v1881 = vrcp.bf16.pop %v1874
        %v1882 = vmul.bf16 1065369472, %v1881
        %v1883 = vmul.bf16 %v1847, %v1876
        %v1884 = vmul.bf16 %v1848, %v1878
        %v1885 = vmul.bf16 %v1849, %v1880
        %v1886 = vmul.bf16 %v1850, %v1882
        %v1887 = vadd.bf16 %v1624, %v1883
        %v1888 = vadd.bf16 %v1625, %v1884
        %v1889 = vadd.bf16 %v1626, %v1885
        %v1890 = vadd.bf16 %v1627, %v1886
        %v1891 = vmul.bf16 %v1887, 1060454197
        %v1892 = vmul.bf16 %v1888, 1060454197
        %v1893 = vmul.bf16 %v1889, 1060454197
        %v1894 = vmul.bf16 %v1890, 1060454197
        loop: start=0, step=1, limit=5
        $region100: #{tpu_custom_call.1} parent=94 // loop_pre_header
          _
        $region101: #{tpu_custom_call.1} parent=94 // loop_header
          %s1896 = sphi 0, %s1900
          %p1897 = scmp.ge.s32.totalorder %s1896, 5
          %v1901 = vphi 1.0, %v2574
          %v1902 = vphi 1.0, %v2575
          %v1903 = vphi 1.0, %v2576
          %v1904 = vphi 1.0, %v2577
          %v1905 = vphi 0.0, %v4077
          %v1906 = vphi 0.0, %v4078
          %v1907 = vphi 0.0, %v4079
          %v1908 = vphi 0.0, %v4080
          %v1909 = vphi 0.0, %v4081
          %v1910 = vphi 0.0, %v4082
          %v1911 = vphi 0.0, %v4083
          %v1912 = vphi 0.0, %v4084
          %v1913 = vphi %v1891, %v4061
          %v1914 = vphi %v1892, %v4062
          %v1915 = vphi %v1893, %v4063
          %v1916 = vphi %v1894, %v4064
        $region102: #{tpu_custom_call.1} parent=94 // loop_header_branch
          %1899 = sbr.rel (%p1897) target = $region106
        $region103: #{tpu_custom_call.1} parent=94 // loop_body
          %s1917 = smul.u32 %s1896, 2
          %s1918 = smul.addr %s1917, 4
          %s1919 = scalar_lea.vmem %s9, %s1918
          %v1920 = vld [vmem:[%s1919] sm:$0xf]
          %v1921 = vld [vmem:[%s1919 + $0x4] sm:$0xf]
          %s1922 = smul.u32 %s1896, 16
          %s1923 = scalar_lea.vmem %s10, %s1922
          %v1924 = vld [vmem:[%s1923] sm:$0xff]
          %v1925 = vld [vmem:[%s1923 + $0x8] sm:$0xff]
          %1927 = vset.pattern.permute.xlu0 0
          %1928 = vperm.xlu0 %1927, %v1924
          %v1929 = vpop.permute.xlu0 %1928
          %1932 = vset.pattern.permute.xlu0 0
          %1933 = vperm.xlu0 %1932, %v1925
          %v1934 = vpop.permute.xlu0 %1933
          %v1938 = vunpack.c.l.b16 %v1920
          %v1939 = vunpack.c.l.b16 %v1921
          %v1940 = vpack.c.b16 %v1939, %v1938
          %vm1941 = vcmask 261120
          %v1943 = vsel %vm1941, %v1940, 0
          %1945 = vmatprep.subr.bf16.mxu0 %v1914
          %1946 = vmatpush1.bf16.msra.mxu0 %v1913
          %1947 = vmatprep.subr.bf16.mxu0 %v1916
          %1948 = vmatpush1.bf16.msra.mxu0 %v1915
          %1949 = vmatprep.subr.bf16.mxu0 0
          %1950 = vmatpush1.bf16.msra.mxu0 0
          %1951 = vmatprep.subr.bf16.mxu0 0
          %1952 = vmatpush1.bf16.msra.mxu0 0
          %1953 = vmatprep.subr.bf16.mxu0 0
          %1954 = vmatpush1.bf16.msra.mxu0 0
          %1955 = vmatprep.subr.bf16.mxu0 0
          %1956 = vmatpush1.bf16.msra.mxu0 0
          %1957 = vmatprep.subr.bf16.mxu0 0
          %1958 = vmatpush1.bf16.msra.mxu0 0
          %1959 = vmatprep.subr.bf16.mxu0 0
          %1960 = vmatpush1.bf16.msra.mxu0 0
          %1961 = vmatprep.subr.bf16.mxu0 0
          %1962 = vmatpush1.bf16.msra.mxu0 0
          %1963 = vmatprep.subr.bf16.mxu0 0
          %1964 = vmatpush1.bf16.msra.mxu0 0
          %1965 = vmatprep.subr.bf16.mxu0 0
          %1966 = vmatpush1.bf16.msra.mxu0 0
          %1967 = vmatprep.subr.bf16.mxu0 0
          %1968 = vmatpush1.bf16.msra.mxu0 0
          %1969 = vmatprep.subr.bf16.mxu0 0
          %1970 = vmatpush1.bf16.msra.mxu0 0
          %1971 = vmatprep.subr.bf16.mxu0 0
          %1972 = vmatpush1.bf16.msra.mxu0 0
          %1973 = vmatprep.subr.bf16.mxu0 0
          %1974 = vmatpush1.bf16.msra.mxu0 0
          %1975 = vmatprep.subr.bf16.mxu0 0
          %1976 = vmatpush1.bf16.msra.mxu0 0
          %1977 = vmatprep.mubr.bf16.mxu0 0
          %1978 = vmatmul.mubr.bf16.gmra.mrb[0].mxu0 %v1943
          %v1979 = vpop.f32.mrb[0].mxu0
          %v1980 = vadd.f32 %v1929, %v1979
          %v1981 = vpop.f32.mrb[0].mxu0
          %v1982 = vadd.f32 %v1929, %v1981
          %v1983 = vpop.f32.mrb[0].mxu0
          %v1984 = vadd.f32 %v1934, %v1983
          %v1985 = vpop.f32.mrb[0].mxu0
          %v1986 = vadd.f32 %v1934, %v1985
          %1987 = vdwg.mxu0
          %v1988 = vmul.f32 %v1980, %v1901
          %v1989 = vmul.f32 %v1982, %v1902
          %v1990 = vmul.f32 %v1984, %v1903
          %v1991 = vmul.f32 %v1986, %v1904
          %v1992 = vlaneseq
          %v1993 = vshrl.u32 %v1992, 7
          %v1994 = vsub.s32 0, %v1993
          %v1995 = vrot.slane %v1988, %v1994
          %v1996 = vlaneseq
          %v1997 = vshrl.u32 %v1996, 7
          %v1998 = vsub.s32 0, %v1997
          %v1999 = vrot.slane %v1989, %v1998
          %vm2000 = vcmp.ge.f32.partialorder %v1995, %v1988
          %vm2001 = vcmp.ge.f32.partialorder %v1999, %v1989
          %vm2002 = vcmp.ge.f32.partialorder %v1995, %v1990
          %vm2003 = vcmp.ge.f32.partialorder %v1999, %v1991
          %v2004 = vsel %vm2000, 1, 0
          %v2005 = vsel %vm2001, 1, 0
          %v2006 = vsel %vm2002, 1, 0
          %v2007 = vsel %vm2003, 1, 0
          %v2008 = vcvt.s32.f32 %v2004
          %v2009 = vcvt.s32.f32 %v2005
          %v2010 = vcvt.s32.f32 %v2006
          %v2011 = vcvt.s32.f32 %v2007
          %v2012 = vadd.f32 %v2008, 0.0
          %v2013 = vadd.f32 %v2009, 0.0
          %v2014 = vadd.f32 %v2010, 0.0
          %v2015 = vadd.f32 %v2011, 0.0
          %v2016 = vmul.f32 %v1995, %v2008
          %v2017 = vmul.f32 %v1999, %v2009
          %v2018 = vmul.f32 %v1995, %v2010
          %v2019 = vmul.f32 %v1999, %v2011
          %v2020 = vadd.f32 %v2016, 0.0
          %v2021 = vadd.f32 %v2017, 0.0
          %v2022 = vadd.f32 %v2018, 0.0
          %v2023 = vadd.f32 %v2019, 0.0
          %v2024 = vlaneseq
          %v2025 = vshrl.u32 %v2024, 7
          %v2026 = vsub.s32 1, %v2025
          %v2027 = vrot.slane %v1988, %v2026
          %v2028 = vlaneseq
          %v2029 = vshrl.u32 %v2028, 7
          %v2030 = vsub.s32 1, %v2029
          %v2031 = vrot.slane %v1989, %v2030
          %vm2032 = vcmp.ge.f32.partialorder %v2027, %v1988
          %vm2033 = vcmp.ge.f32.partialorder %v2031, %v1989
          %vm2034 = vcmp.ge.f32.partialorder %v2027, %v1990
          %vm2035 = vcmp.ge.f32.partialorder %v2031, %v1991
          %v2036 = vsel %vm2032, 1, 0
          %v2037 = vsel %vm2033, 1, 0
          %v2038 = vsel %vm2034, 1, 0
          %v2039 = vsel %vm2035, 1, 0
          %v2040 = vcvt.s32.f32 %v2036
          %v2041 = vcvt.s32.f32 %v2037
          %v2042 = vcvt.s32.f32 %v2038
          %v2043 = vcvt.s32.f32 %v2039
          %v2044 = vadd.f32 %v2012, %v2040
          %v2045 = vadd.f32 %v2013, %v2041
          %v2046 = vadd.f32 %v2014, %v2042
          %v2047 = vadd.f32 %v2015, %v2043
          %v2048 = vmul.f32 %v2027, %v2040
          %v2049 = vmul.f32 %v2031, %v2041
          %v2050 = vmul.f32 %v2027, %v2042
          %v2051 = vmul.f32 %v2031, %v2043
          %v2052 = vadd.f32 %v2020, %v2048
          %v2053 = vadd.f32 %v2021, %v2049
          %v2054 = vadd.f32 %v2022, %v2050
          %v2055 = vadd.f32 %v2023, %v2051
          %v2056 = vlaneseq
          %v2057 = vshrl.u32 %v2056, 7
          %v2058 = vsub.s32 2, %v2057
          %v2059 = vrot.slane %v1988, %v2058
          %v2060 = vlaneseq
          %v2061 = vshrl.u32 %v2060, 7
          %v2062 = vsub.s32 2, %v2061
          %v2063 = vrot.slane %v1989, %v2062
          %vm2064 = vcmp.ge.f32.partialorder %v2059, %v1988
          %vm2065 = vcmp.ge.f32.partialorder %v2063, %v1989
          %vm2066 = vcmp.ge.f32.partialorder %v2059, %v1990
          %vm2067 = vcmp.ge.f32.partialorder %v2063, %v1991
          %v2068 = vsel %vm2064, 1, 0
          %v2069 = vsel %vm2065, 1, 0
          %v2070 = vsel %vm2066, 1, 0
          %v2071 = vsel %vm2067, 1, 0
          %v2072 = vcvt.s32.f32 %v2068
          %v2073 = vcvt.s32.f32 %v2069
          %v2074 = vcvt.s32.f32 %v2070
          %v2075 = vcvt.s32.f32 %v2071
          %v2076 = vadd.f32 %v2044, %v2072
          %v2077 = vadd.f32 %v2045, %v2073
          %v2078 = vadd.f32 %v2046, %v2074
          %v2079 = vadd.f32 %v2047, %v2075
          %v2080 = vmul.f32 %v2059, %v2072
          %v2081 = vmul.f32 %v2063, %v2073
          %v2082 = vmul.f32 %v2059, %v2074
          %v2083 = vmul.f32 %v2063, %v2075
          %v2084 = vadd.f32 %v2052, %v2080
          %v2085 = vadd.f32 %v2053, %v2081
          %v2086 = vadd.f32 %v2054, %v2082
          %v2087 = vadd.f32 %v2055, %v2083
          %v2088 = vlaneseq
          %v2089 = vshrl.u32 %v2088, 7
          %v2090 = vsub.s32 3, %v2089
          %v2091 = vrot.slane %v1988, %v2090
          %v2092 = vlaneseq
          %v2093 = vshrl.u32 %v2092, 7
          %v2094 = vsub.s32 3, %v2093
          %v2095 = vrot.slane %v1989, %v2094
          %vm2096 = vcmp.ge.f32.partialorder %v2091, %v1988
          %vm2097 = vcmp.ge.f32.partialorder %v2095, %v1989
          %vm2098 = vcmp.ge.f32.partialorder %v2091, %v1990
          %vm2099 = vcmp.ge.f32.partialorder %v2095, %v1991
          %v2100 = vsel %vm2096, 1, 0
          %v2101 = vsel %vm2097, 1, 0
          %v2102 = vsel %vm2098, 1, 0
          %v2103 = vsel %vm2099, 1, 0
          %v2104 = vcvt.s32.f32 %v2100
          %v2105 = vcvt.s32.f32 %v2101
          %v2106 = vcvt.s32.f32 %v2102
          %v2107 = vcvt.s32.f32 %v2103
          %v2108 = vadd.f32 %v2076, %v2104
          %v2109 = vadd.f32 %v2077, %v2105
          %v2110 = vadd.f32 %v2078, %v2106
          %v2111 = vadd.f32 %v2079, %v2107
          %v2112 = vmul.f32 %v2091, %v2104
          %v2113 = vmul.f32 %v2095, %v2105
          %v2114 = vmul.f32 %v2091, %v2106
          %v2115 = vmul.f32 %v2095, %v2107
          %v2116 = vadd.f32 %v2084, %v2112
          %v2117 = vadd.f32 %v2085, %v2113
          %v2118 = vadd.f32 %v2086, %v2114
          %v2119 = vadd.f32 %v2087, %v2115
          %v2120 = vlaneseq
          %v2121 = vshrl.u32 %v2120, 7
          %v2122 = vsub.s32 4, %v2121
          %v2123 = vrot.slane %v1988, %v2122
          %v2124 = vlaneseq
          %v2125 = vshrl.u32 %v2124, 7
          %v2126 = vsub.s32 4, %v2125
          %v2127 = vrot.slane %v1989, %v2126
          %vm2128 = vcmp.ge.f32.partialorder %v2123, %v1988
          %vm2129 = vcmp.ge.f32.partialorder %v2127, %v1989
          %vm2130 = vcmp.ge.f32.partialorder %v2123, %v1990
          %vm2131 = vcmp.ge.f32.partialorder %v2127, %v1991
          %v2132 = vsel %vm2128, 1, 0
          %v2133 = vsel %vm2129, 1, 0
          %v2134 = vsel %vm2130, 1, 0
          %v2135 = vsel %vm2131, 1, 0
          %v2136 = vcvt.s32.f32 %v2132
          %v2137 = vcvt.s32.f32 %v2133
          %v2138 = vcvt.s32.f32 %v2134
          %v2139 = vcvt.s32.f32 %v2135
          %v2140 = vadd.f32 %v2108, %v2136
          %v2141 = vadd.f32 %v2109, %v2137
          %v2142 = vadd.f32 %v2110, %v2138
          %v2143 = vadd.f32 %v2111, %v2139
          %v2144 = vmul.f32 %v2123, %v2136
          %v2145 = vmul.f32 %v2127, %v2137
          %v2146 = vmul.f32 %v2123, %v2138
          %v2147 = vmul.f32 %v2127, %v2139
          %v2148 = vadd.f32 %v2116, %v2144
          %v2149 = vadd.f32 %v2117, %v2145
          %v2150 = vadd.f32 %v2118, %v2146
          %v2151 = vadd.f32 %v2119, %v2147
          %v2152 = vlaneseq
          %v2153 = vshrl.u32 %v2152, 7
          %v2154 = vsub.s32 5, %v2153
          %v2155 = vrot.slane %v1988, %v2154
          %v2156 = vlaneseq
          %v2157 = vshrl.u32 %v2156, 7
          %v2158 = vsub.s32 5, %v2157
          %v2159 = vrot.slane %v1989, %v2158
          %vm2160 = vcmp.ge.f32.partialorder %v2155, %v1988
          %vm2161 = vcmp.ge.f32.partialorder %v2159, %v1989
          %vm2162 = vcmp.ge.f32.partialorder %v2155, %v1990
          %vm2163 = vcmp.ge.f32.partialorder %v2159, %v1991
          %v2164 = vsel %vm2160, 1, 0
          %v2165 = vsel %vm2161, 1, 0
          %v2166 = vsel %vm2162, 1, 0
          %v2167 = vsel %vm2163, 1, 0
          %v2168 = vcvt.s32.f32 %v2164
          %v2169 = vcvt.s32.f32 %v2165
          %v2170 = vcvt.s32.f32 %v2166
          %v2171 = vcvt.s32.f32 %v2167
          %v2172 = vadd.f32 %v2140, %v2168
          %v2173 = vadd.f32 %v2141, %v2169
          %v2174 = vadd.f32 %v2142, %v2170
          %v2175 = vadd.f32 %v2143, %v2171
          %v2176 = vmul.f32 %v2155, %v2168
          %v2177 = vmul.f32 %v2159, %v2169
          %v2178 = vmul.f32 %v2155, %v2170
          %v2179 = vmul.f32 %v2159, %v2171
          %v2180 = vadd.f32 %v2148, %v2176
          %v2181 = vadd.f32 %v2149, %v2177
          %v2182 = vadd.f32 %v2150, %v2178
          %v2183 = vadd.f32 %v2151, %v2179
          %v2184 = vlaneseq
          %v2185 = vshrl.u32 %v2184, 7
          %v2186 = vsub.s32 6, %v2185
          %v2187 = vrot.slane %v1988, %v2186
          %v2188 = vlaneseq
          %v2189 = vshrl.u32 %v2188, 7
          %v2190 = vsub.s32 6, %v2189
          %v2191 = vrot.slane %v1989, %v2190
          %vm2192 = vcmp.ge.f32.partialorder %v2187, %v1988
          %vm2193 = vcmp.ge.f32.partialorder %v2191, %v1989
          %vm2194 = vcmp.ge.f32.partialorder %v2187, %v1990
          %vm2195 = vcmp.ge.f32.partialorder %v2191, %v1991
          %v2196 = vsel %vm2192, 1, 0
          %v2197 = vsel %vm2193, 1, 0
          %v2198 = vsel %vm2194, 1, 0
          %v2199 = vsel %vm2195, 1, 0
          %v2200 = vcvt.s32.f32 %v2196
          %v2201 = vcvt.s32.f32 %v2197
          %v2202 = vcvt.s32.f32 %v2198
          %v2203 = vcvt.s32.f32 %v2199
          %v2204 = vadd.f32 %v2172, %v2200
          %v2205 = vadd.f32 %v2173, %v2201
          %v2206 = vadd.f32 %v2174, %v2202
          %v2207 = vadd.f32 %v2175, %v2203
          %v2208 = vmul.f32 %v2187, %v2200
          %v2209 = vmul.f32 %v2191, %v2201
          %v2210 = vmul.f32 %v2187, %v2202
          %v2211 = vmul.f32 %v2191, %v2203
          %v2212 = vadd.f32 %v2180, %v2208
          %v2213 = vadd.f32 %v2181, %v2209
          %v2214 = vadd.f32 %v2182, %v2210
          %v2215 = vadd.f32 %v2183, %v2211
          %v2216 = vlaneseq
          %v2217 = vshrl.u32 %v2216, 7
          %v2218 = vsub.s32 7, %v2217
          %v2219 = vrot.slane %v1988, %v2218
          %v2220 = vlaneseq
          %v2221 = vshrl.u32 %v2220, 7
          %v2222 = vsub.s32 7, %v2221
          %v2223 = vrot.slane %v1989, %v2222
          %vm2224 = vcmp.ge.f32.partialorder %v2219, %v1988
          %vm2225 = vcmp.ge.f32.partialorder %v2223, %v1989
          %vm2226 = vcmp.ge.f32.partialorder %v2219, %v1990
          %vm2227 = vcmp.ge.f32.partialorder %v2223, %v1991
          %v2228 = vsel %vm2224, 1, 0
          %v2229 = vsel %vm2225, 1, 0
          %v2230 = vsel %vm2226, 1, 0
          %v2231 = vsel %vm2227, 1, 0
          %v2232 = vcvt.s32.f32 %v2228
          %v2233 = vcvt.s32.f32 %v2229
          %v2234 = vcvt.s32.f32 %v2230
          %v2235 = vcvt.s32.f32 %v2231
          %v2236 = vadd.f32 %v2204, %v2232
          %v2237 = vadd.f32 %v2205, %v2233
          %v2238 = vadd.f32 %v2206, %v2234
          %v2239 = vadd.f32 %v2207, %v2235
          %v2240 = vmul.f32 %v2219, %v2232
          %v2241 = vmul.f32 %v2223, %v2233
          %v2242 = vmul.f32 %v2219, %v2234
          %v2243 = vmul.f32 %v2223, %v2235
          %v2244 = vadd.f32 %v2212, %v2240
          %v2245 = vadd.f32 %v2213, %v2241
          %v2246 = vadd.f32 %v2214, %v2242
          %v2247 = vadd.f32 %v2215, %v2243
          %v2248 = vlaneseq
          %v2249 = vshrl.u32 %v2248, 7
          %v2250 = vsub.s32 0, %v2249
          %v2251 = vrot.slane %v1990, %v2250
          %v2252 = vlaneseq
          %v2253 = vshrl.u32 %v2252, 7
          %v2254 = vsub.s32 0, %v2253
          %v2255 = vrot.slane %v1991, %v2254
          %vm2256 = vcmp.ge.f32.partialorder %v2251, %v1988
          %vm2257 = vcmp.ge.f32.partialorder %v2255, %v1989
          %vm2258 = vcmp.ge.f32.partialorder %v2251, %v1990
          %vm2259 = vcmp.ge.f32.partialorder %v2255, %v1991
          %v2260 = vsel %vm2256, 1, 0
          %v2261 = vsel %vm2257, 1, 0
          %v2262 = vsel %vm2258, 1, 0
          %v2263 = vsel %vm2259, 1, 0
          %v2264 = vcvt.s32.f32 %v2260
          %v2265 = vcvt.s32.f32 %v2261
          %v2266 = vcvt.s32.f32 %v2262
          %v2267 = vcvt.s32.f32 %v2263
          %v2268 = vadd.f32 %v2236, %v2264
          %v2269 = vadd.f32 %v2237, %v2265
          %v2270 = vadd.f32 %v2238, %v2266
          %v2271 = vadd.f32 %v2239, %v2267
          %v2272 = vmul.f32 %v2251, %v2264
          %v2273 = vmul.f32 %v2255, %v2265
          %v2274 = vmul.f32 %v2251, %v2266
          %v2275 = vmul.f32 %v2255, %v2267
          %v2276 = vadd.f32 %v2244, %v2272
          %v2277 = vadd.f32 %v2245, %v2273
          %v2278 = vadd.f32 %v2246, %v2274
          %v2279 = vadd.f32 %v2247, %v2275
          %v2280 = vlaneseq
          %v2281 = vshrl.u32 %v2280, 7
          %v2282 = vsub.s32 1, %v2281
          %v2283 = vrot.slane %v1990, %v2282
          %v2284 = vlaneseq
          %v2285 = vshrl.u32 %v2284, 7
          %v2286 = vsub.s32 1, %v2285
          %v2287 = vrot.slane %v1991, %v2286
          %vm2288 = vcmp.ge.f32.partialorder %v2283, %v1988
          %vm2289 = vcmp.ge.f32.partialorder %v2287, %v1989
          %vm2290 = vcmp.ge.f32.partialorder %v2283, %v1990
          %vm2291 = vcmp.ge.f32.partialorder %v2287, %v1991
          %v2292 = vsel %vm2288, 1, 0
          %v2293 = vsel %vm2289, 1, 0
          %v2294 = vsel %vm2290, 1, 0
          %v2295 = vsel %vm2291, 1, 0
          %v2296 = vcvt.s32.f32 %v2292
          %v2297 = vcvt.s32.f32 %v2293
          %v2298 = vcvt.s32.f32 %v2294
          %v2299 = vcvt.s32.f32 %v2295
          %v2300 = vadd.f32 %v2268, %v2296
          %v2301 = vadd.f32 %v2269, %v2297
          %v2302 = vadd.f32 %v2270, %v2298
          %v2303 = vadd.f32 %v2271, %v2299
          %v2304 = vmul.f32 %v2283, %v2296
          %v2305 = vmul.f32 %v2287, %v2297
          %v2306 = vmul.f32 %v2283, %v2298
          %v2307 = vmul.f32 %v2287, %v2299
          %v2308 = vadd.f32 %v2276, %v2304
          %v2309 = vadd.f32 %v2277, %v2305
          %v2310 = vadd.f32 %v2278, %v2306
          %v2311 = vadd.f32 %v2279, %v2307
          %v2312 = vlaneseq
          %v2313 = vshrl.u32 %v2312, 7
          %v2314 = vsub.s32 2, %v2313
          %v2315 = vrot.slane %v1990, %v2314
          %v2316 = vlaneseq
          %v2317 = vshrl.u32 %v2316, 7
          %v2318 = vsub.s32 2, %v2317
          %v2319 = vrot.slane %v1991, %v2318
          %vm2320 = vcmp.ge.f32.partialorder %v2315, %v1988
          %vm2321 = vcmp.ge.f32.partialorder %v2319, %v1989
          %vm2322 = vcmp.ge.f32.partialorder %v2315, %v1990
          %vm2323 = vcmp.ge.f32.partialorder %v2319, %v1991
          %v2324 = vsel %vm2320, 1, 0
          %v2325 = vsel %vm2321, 1, 0
          %v2326 = vsel %vm2322, 1, 0
          %v2327 = vsel %vm2323, 1, 0
          %v2328 = vcvt.s32.f32 %v2324
          %v2329 = vcvt.s32.f32 %v2325
          %v2330 = vcvt.s32.f32 %v2326
          %v2331 = vcvt.s32.f32 %v2327
          %v2332 = vadd.f32 %v2300, %v2328
          %v2333 = vadd.f32 %v2301, %v2329
          %v2334 = vadd.f32 %v2302, %v2330
          %v2335 = vadd.f32 %v2303, %v2331
          %v2336 = vmul.f32 %v2315, %v2328
          %v2337 = vmul.f32 %v2319, %v2329
          %v2338 = vmul.f32 %v2315, %v2330
          %v2339 = vmul.f32 %v2319, %v2331
          %v2340 = vadd.f32 %v2308, %v2336
          %v2341 = vadd.f32 %v2309, %v2337
          %v2342 = vadd.f32 %v2310, %v2338
          %v2343 = vadd.f32 %v2311, %v2339
          %v2344 = vlaneseq
          %v2345 = vshrl.u32 %v2344, 7
          %v2346 = vsub.s32 3, %v2345
          %v2347 = vrot.slane %v1990, %v2346
          %v2348 = vlaneseq
          %v2349 = vshrl.u32 %v2348, 7
          %v2350 = vsub.s32 3, %v2349
          %v2351 = vrot.slane %v1991, %v2350
          %vm2352 = vcmp.ge.f32.partialorder %v2347, %v1988
          %vm2353 = vcmp.ge.f32.partialorder %v2351, %v1989
          %vm2354 = vcmp.ge.f32.partialorder %v2347, %v1990
          %vm2355 = vcmp.ge.f32.partialorder %v2351, %v1991
          %v2356 = vsel %vm2352, 1, 0
          %v2357 = vsel %vm2353, 1, 0
          %v2358 = vsel %vm2354, 1, 0
          %v2359 = vsel %vm2355, 1, 0
          %v2360 = vcvt.s32.f32 %v2356
          %v2361 = vcvt.s32.f32 %v2357
          %v2362 = vcvt.s32.f32 %v2358
          %v2363 = vcvt.s32.f32 %v2359
          %v2364 = vadd.f32 %v2332, %v2360
          %v2365 = vadd.f32 %v2333, %v2361
          %v2366 = vadd.f32 %v2334, %v2362
          %v2367 = vadd.f32 %v2335, %v2363
          %v2368 = vmul.f32 %v2347, %v2360
          %v2369 = vmul.f32 %v2351, %v2361
          %v2370 = vmul.f32 %v2347, %v2362
          %v2371 = vmul.f32 %v2351, %v2363
          %v2372 = vadd.f32 %v2340, %v2368
          %v2373 = vadd.f32 %v2341, %v2369
          %v2374 = vadd.f32 %v2342, %v2370
          %v2375 = vadd.f32 %v2343, %v2371
          %v2376 = vlaneseq
          %v2377 = vshrl.u32 %v2376, 7
          %v2378 = vsub.s32 4, %v2377
          %v2379 = vrot.slane %v1990, %v2378
          %v2380 = vlaneseq
          %v2381 = vshrl.u32 %v2380, 7
          %v2382 = vsub.s32 4, %v2381
          %v2383 = vrot.slane %v1991, %v2382
          %vm2384 = vcmp.ge.f32.partialorder %v2379, %v1988
          %vm2385 = vcmp.ge.f32.partialorder %v2383, %v1989
          %vm2386 = vcmp.ge.f32.partialorder %v2379, %v1990
          %vm2387 = vcmp.ge.f32.partialorder %v2383, %v1991
          %v2388 = vsel %vm2384, 1, 0
          %v2389 = vsel %vm2385, 1, 0
          %v2390 = vsel %vm2386, 1, 0
          %v2391 = vsel %vm2387, 1, 0
          %v2392 = vcvt.s32.f32 %v2388
          %v2393 = vcvt.s32.f32 %v2389
          %v2394 = vcvt.s32.f32 %v2390
          %v2395 = vcvt.s32.f32 %v2391
          %v2396 = vadd.f32 %v2364, %v2392
          %v2397 = vadd.f32 %v2365, %v2393
          %v2398 = vadd.f32 %v2366, %v2394
          %v2399 = vadd.f32 %v2367, %v2395
          %v2400 = vmul.f32 %v2379, %v2392
          %v2401 = vmul.f32 %v2383, %v2393
          %v2402 = vmul.f32 %v2379, %v2394
          %v2403 = vmul.f32 %v2383, %v2395
          %v2404 = vadd.f32 %v2372, %v2400
          %v2405 = vadd.f32 %v2373, %v2401
          %v2406 = vadd.f32 %v2374, %v2402
          %v2407 = vadd.f32 %v2375, %v2403
          %v2408 = vlaneseq
          %v2409 = vshrl.u32 %v2408, 7
          %v2410 = vsub.s32 5, %v2409
          %v2411 = vrot.slane %v1990, %v2410
          %v2412 = vlaneseq
          %v2413 = vshrl.u32 %v2412, 7
          %v2414 = vsub.s32 5, %v2413
          %v2415 = vrot.slane %v1991, %v2414
          %vm2416 = vcmp.ge.f32.partialorder %v2411, %v1988
          %vm2417 = vcmp.ge.f32.partialorder %v2415, %v1989
          %vm2418 = vcmp.ge.f32.partialorder %v2411, %v1990
          %vm2419 = vcmp.ge.f32.partialorder %v2415, %v1991
          %v2420 = vsel %vm2416, 1, 0
          %v2421 = vsel %vm2417, 1, 0
          %v2422 = vsel %vm2418, 1, 0
          %v2423 = vsel %vm2419, 1, 0
          %v2424 = vcvt.s32.f32 %v2420
          %v2425 = vcvt.s32.f32 %v2421
          %v2426 = vcvt.s32.f32 %v2422
          %v2427 = vcvt.s32.f32 %v2423
          %v2428 = vadd.f32 %v2396, %v2424
          %v2429 = vadd.f32 %v2397, %v2425
          %v2430 = vadd.f32 %v2398, %v2426
          %v2431 = vadd.f32 %v2399, %v2427
          %v2432 = vmul.f32 %v2411, %v2424
          %v2433 = vmul.f32 %v2415, %v2425
          %v2434 = vmul.f32 %v2411, %v2426
          %v2435 = vmul.f32 %v2415, %v2427
          %v2436 = vadd.f32 %v2404, %v2432
          %v2437 = vadd.f32 %v2405, %v2433
          %v2438 = vadd.f32 %v2406, %v2434
          %v2439 = vadd.f32 %v2407, %v2435
          %v2440 = vlaneseq
          %v2441 = vshrl.u32 %v2440, 7
          %v2442 = vsub.s32 6, %v2441
          %v2443 = vrot.slane %v1990, %v2442
          %v2444 = vlaneseq
          %v2445 = vshrl.u32 %v2444, 7
          %v2446 = vsub.s32 6, %v2445
          %v2447 = vrot.slane %v1991, %v2446
          %vm2448 = vcmp.ge.f32.partialorder %v2443, %v1988
          %vm2449 = vcmp.ge.f32.partialorder %v2447, %v1989
          %vm2450 = vcmp.ge.f32.partialorder %v2443, %v1990
          %vm2451 = vcmp.ge.f32.partialorder %v2447, %v1991
          %v2452 = vsel %vm2448, 1, 0
          %v2453 = vsel %vm2449, 1, 0
          %v2454 = vsel %vm2450, 1, 0
          %v2455 = vsel %vm2451, 1, 0
          %v2456 = vcvt.s32.f32 %v2452
          %v2457 = vcvt.s32.f32 %v2453
          %v2458 = vcvt.s32.f32 %v2454
          %v2459 = vcvt.s32.f32 %v2455
          %v2460 = vadd.f32 %v2428, %v2456
          %v2461 = vadd.f32 %v2429, %v2457
          %v2462 = vadd.f32 %v2430, %v2458
          %v2463 = vadd.f32 %v2431, %v2459
          %v2464 = vmul.f32 %v2443, %v2456
          %v2465 = vmul.f32 %v2447, %v2457
          %v2466 = vmul.f32 %v2443, %v2458
          %v2467 = vmul.f32 %v2447, %v2459
          %v2468 = vadd.f32 %v2436, %v2464
          %v2469 = vadd.f32 %v2437, %v2465
          %v2470 = vadd.f32 %v2438, %v2466
          %v2471 = vadd.f32 %v2439, %v2467
          %v2472 = vlaneseq
          %v2473 = vshrl.u32 %v2472, 7
          %v2474 = vsub.s32 7, %v2473
          %v2475 = vrot.slane %v1990, %v2474
          %v2476 = vlaneseq
          %v2477 = vshrl.u32 %v2476, 7
          %v2478 = vsub.s32 7, %v2477
          %v2479 = vrot.slane %v1991, %v2478
          %vm2480 = vcmp.ge.f32.partialorder %v2475, %v1988
          %vm2481 = vcmp.ge.f32.partialorder %v2479, %v1989
          %vm2482 = vcmp.ge.f32.partialorder %v2475, %v1990
          %vm2483 = vcmp.ge.f32.partialorder %v2479, %v1991
          %v2484 = vsel %vm2480, 1, 0
          %v2485 = vsel %vm2481, 1, 0
          %v2486 = vsel %vm2482, 1, 0
          %v2487 = vsel %vm2483, 1, 0
          %v2488 = vcvt.s32.f32 %v2484
          %v2489 = vcvt.s32.f32 %v2485
          %v2490 = vcvt.s32.f32 %v2486
          %v2491 = vcvt.s32.f32 %v2487
          %v2492 = vadd.f32 %v2460, %v2488
          %v2493 = vadd.f32 %v2461, %v2489
          %v2494 = vadd.f32 %v2462, %v2490
          %v2495 = vadd.f32 %v2463, %v2491
          %v2496 = vmul.f32 %v2475, %v2488
          %v2497 = vmul.f32 %v2479, %v2489
          %v2498 = vmul.f32 %v2475, %v2490
          %v2499 = vmul.f32 %v2479, %v2491
          %v2500 = vadd.f32 %v2468, %v2496
          %v2501 = vadd.f32 %v2469, %v2497
          %v2502 = vadd.f32 %v2470, %v2498
          %v2503 = vadd.f32 %v2471, %v2499
          %v2504 = vmul.f32 %v2492, %v1988
          %v2505 = vmul.f32 %v2493, %v1989
          %v2506 = vmul.f32 %v2494, %v1990
          %v2507 = vmul.f32 %v2495, %v1991
          %v2508 = vadd.f32 %v2504, 1.0
          %v2509 = vadd.f32 %v2505, 1.0
          %v2510 = vadd.f32 %v2506, 1.0
          %v2511 = vadd.f32 %v2507, 1.0
          %vm2512 = vcmp.gt.f32.partialorder %v2508, %v2500
          %vm2513 = vcmp.gt.f32.partialorder %v2509, %v2501
          %vm2514 = vcmp.gt.f32.partialorder %v2510, %v2502
          %vm2515 = vcmp.gt.f32.partialorder %v2511, %v2503
          %v2516 = vsel %vm2512, %v2492, 0.0
          %v2517 = vsel %vm2513, %v2493, 0.0
          %v2518 = vsel %vm2514, %v2494, 0.0
          %v2519 = vsel %vm2515, %v2495, 0.0
          %v2520 = vmax.f32 %v2516, %v2518
          %v2521 = vrot.slane %v2520, 4
          %v2522 = vmax.f32 %v2520, %v2521
          %v2523 = vrot.slane %v2522, 2
          %v2524 = vmax.f32 %v2522, %v2523
          %v2525 = vrot.slane %v2524, 1
          %v2526 = vmax.f32 %v2524, %v2525
          %v2527 = vmax.f32 %v2517, %v2519
          %v2528 = vrot.slane %v2527, 4
          %v2529 = vmax.f32 %v2527, %v2528
          %v2530 = vrot.slane %v2529, 2
          %v2531 = vmax.f32 %v2529, %v2530
          %v2532 = vrot.slane %v2531, 1
          %v2533 = vmax.f32 %v2531, %v2532
          %vm2534 = vcmp.le.f32.partialorder %v2492, %v2526
          %vm2535 = vcmp.le.f32.partialorder %v2493, %v2533
          %vm2536 = vcmp.le.f32.partialorder %v2494, %v2526
          %vm2537 = vcmp.le.f32.partialorder %v2495, %v2533
          %v2538 = vsel %vm2534, %v1988, 0.0
          %v2539 = vsel %vm2535, %v1989, 0.0
          %v2540 = vsel %vm2536, %v1990, 0.0
          %v2541 = vsel %vm2537, %v1991, 0.0
          %v2542 = vadd.f32 %v2538, %v2540
          %v2543 = vrot.slane %v2542, 4
          %v2544 = vadd.f32 %v2542, %v2543
          %v2545 = vrot.slane %v2544, 2
          %v2546 = vadd.f32 %v2544, %v2545
          %v2547 = vrot.slane %v2546, 1
          %v2548 = vadd.f32 %v2546, %v2547
          %v2549 = vadd.f32 %v2539, %v2541
          %v2550 = vrot.slane %v2549, 4
          %v2551 = vadd.f32 %v2549, %v2550
          %v2552 = vrot.slane %v2551, 2
          %v2553 = vadd.f32 %v2551, %v2552
          %v2554 = vrot.slane %v2553, 1
          %v2555 = vadd.f32 %v2553, %v2554
          %v2556 = vsub.f32 %v2548, 1.0
          %v2557 = vsub.f32 %v2555, 1.0
          %v2558 = vrcp.pop %v2526
          %v2559 = vmul.f32 %v2556, %v2558
          %v2560 = vrcp.pop %v2533
          %v2561 = vmul.f32 %v2557, %v2560
          %v2562 = vsub.f32 %v1988, %v2559
          %v2563 = vsub.f32 %v1989, %v2561
          %v2564 = vsub.f32 %v1990, %v2559
          %v2565 = vsub.f32 %v1991, %v2561
          %v2566 = vmax.f32 %v2562, 0.0
          %v2567 = vmax.f32 %v2563, 0.0
          %v2568 = vmax.f32 %v2564, 0.0
          %v2569 = vmax.f32 %v2565, 0.0
          %v2570 = vsub.f32 1.3, %v2566
          %v2571 = vsub.f32 1.3, %v2567
          %v2572 = vsub.f32 1.3, %v2568
          %v2573 = vsub.f32 1.3, %v2569
          %v2574 = vmul.f32 %v2570, %v1901
          %v2575 = vmul.f32 %v2571, %v1902
          %v2576 = vmul.f32 %v2572, %v1903
          %v2577 = vmul.f32 %v2573, %v1904
          %v2578 = vmul.f32 %v2566, %v529
          %v2579 = vmul.f32 %v2567, %v530
          %v2580 = vmul.f32 %v2568, %v531
          %v2581 = vmul.f32 %v2569, %v532
          %s2582 = sadd.s32 %s1896, 1
          %s2583 = smul.u32 %s2582, 16
          %s2584 = smul.addr %s2583, 4
          %s2585 = scalar_lea.vmem %s3, %s2584
          %v2586 = vld [vmem:[%s2585] sm:$0xf]
          %v2587 = vld [vmem:[%s2585 + $0x4] sm:$0xf]
          %v2588 = vld [vmem:[%s2585 + $0x8] sm:$0xf]
          %v2589 = vld [vmem:[%s2585 + $0xc] sm:$0xf]
          %v2590 = vld [vmem:[%s2585 + $0x10] sm:$0xf]
          %v2591 = vld [vmem:[%s2585 + $0x14] sm:$0xf]
          %v2592 = vld [vmem:[%s2585 + $0x18] sm:$0xf]
          %v2593 = vld [vmem:[%s2585 + $0x1c] sm:$0xf]
          %v2594 = vld [vmem:[%s2585 + $0x20] sm:$0xf]
          %v2595 = vld [vmem:[%s2585 + $0x24] sm:$0xf]
          %v2596 = vld [vmem:[%s2585 + $0x28] sm:$0xf]
          %v2597 = vld [vmem:[%s2585 + $0x2c] sm:$0xf]
          %v2598 = vld [vmem:[%s2585 + $0x30] sm:$0xf]
          %v2599 = vld [vmem:[%s2585 + $0x34] sm:$0xf]
          %v2600 = vld [vmem:[%s2585 + $0x38] sm:$0xf]
          %v2601 = vld [vmem:[%s2585 + $0x3c] sm:$0xf]
          %s2602 = smul.u32 %s2582, 128
          %s2603 = scalar_lea.vmem %s4, %s2602
          %v2604 = vld [vmem:[%s2603] sm:$0xff]
          %v2605 = vld [vmem:[%s2603 + $0x8] sm:$0xff]
          %v2606 = vld [vmem:[%s2603 + $0x10] sm:$0xff]
          %v2607 = vld [vmem:[%s2603 + $0x18] sm:$0xff]
          %v2608 = vld [vmem:[%s2603 + $0x20] sm:$0xff]
          %v2609 = vld [vmem:[%s2603 + $0x28] sm:$0xff]
          %v2610 = vld [vmem:[%s2603 + $0x30] sm:$0xff]
          %v2611 = vld [vmem:[%s2603 + $0x38] sm:$0xff]
          %v2612 = vld [vmem:[%s2603 + $0x40] sm:$0xff]
          %v2613 = vld [vmem:[%s2603 + $0x48] sm:$0xff]
          %v2614 = vld [vmem:[%s2603 + $0x50] sm:$0xff]
          %v2615 = vld [vmem:[%s2603 + $0x58] sm:$0xff]
          %v2616 = vld [vmem:[%s2603 + $0x60] sm:$0xff]
          %v2617 = vld [vmem:[%s2603 + $0x68] sm:$0xff]
          %v2618 = vld [vmem:[%s2603 + $0x70] sm:$0xff]
          %v2619 = vld [vmem:[%s2603 + $0x78] sm:$0xff]
          %v2620 = vpack.c.bf16 %v2580, %v2578
          %v2621 = vpack.c.bf16 %v2581, %v2579
          %v2638 = vunpack.c.l.b16 %v2586
          %v2639 = vunpack.c.l.b16 %v2587
          %v2640 = vunpack.c.l.b16 %v2588
          %v2641 = vunpack.c.l.b16 %v2589
          %v2642 = vunpack.c.l.b16 %v2590
          %v2643 = vunpack.c.l.b16 %v2591
          %v2644 = vunpack.c.l.b16 %v2592
          %v2645 = vunpack.c.l.b16 %v2593
          %v2646 = vunpack.c.l.b16 %v2594
          %v2647 = vunpack.c.l.b16 %v2595
          %v2648 = vunpack.c.l.b16 %v2596
          %v2649 = vunpack.c.l.b16 %v2597
          %v2650 = vunpack.c.l.b16 %v2598
          %v2651 = vunpack.c.l.b16 %v2599
          %v2652 = vunpack.c.l.b16 %v2600
          %v2653 = vunpack.c.l.b16 %v2601
          %v2654 = vpack.c.b16 %v2639, %v2638
          %v2655 = vpack.c.b16 %v2641, %v2640
          %v2656 = vpack.c.b16 %v2643, %v2642
          %v2657 = vpack.c.b16 %v2645, %v2644
          %v2658 = vpack.c.b16 %v2647, %v2646
          %v2659 = vpack.c.b16 %v2649, %v2648
          %v2660 = vpack.c.b16 %v2651, %v2650
          %v2661 = vpack.c.b16 %v2653, %v2652
          %v2663 = vsel %vm607, %v2654, 0
          %v2666 = vsel %vm607, %v2655, 0
          %v2669 = vsel %vm607, %v2656, 0
          %v2672 = vsel %vm607, %v2657, 0
          %v2675 = vsel %vm607, %v2658, 0
          %v2678 = vsel %vm607, %v2659, 0
          %v2681 = vsel %vm607, %v2660, 0
          %v2684 = vsel %vm607, %v2661, 0
          %2686 = vmatprep.subr.bf16.mxu0 %v2621
          %2687 = vmatpush1.bf16.msra.mxu0 %v2620
          %2688 = vmatprep.subr.bf16.mxu0 0
          %2689 = vmatpush1.bf16.msra.mxu0 0
          %2690 = vmatprep.subr.bf16.mxu0 0
          %2691 = vmatpush1.bf16.msra.mxu0 0
          %2692 = vmatprep.subr.bf16.mxu0 0
          %2693 = vmatpush1.bf16.msra.mxu0 0
          %2694 = vmatprep.subr.bf16.mxu0 0
          %2695 = vmatpush1.bf16.msra.mxu0 0
          %2696 = vmatprep.subr.bf16.mxu0 0
          %2697 = vmatpush1.bf16.msra.mxu0 0
          %2698 = vmatprep.subr.bf16.mxu0 0
          %2699 = vmatpush1.bf16.msra.mxu0 0
          %2700 = vmatprep.subr.bf16.mxu0 0
          %2701 = vmatpush1.bf16.msra.mxu0 0
          %2702 = vmatprep.subr.bf16.mxu0 0
          %2703 = vmatpush1.bf16.msra.mxu0 0
          %2704 = vmatprep.subr.bf16.mxu0 0
          %2705 = vmatpush1.bf16.msra.mxu0 0
          %2706 = vmatprep.subr.bf16.mxu0 0
          %2707 = vmatpush1.bf16.msra.mxu0 0
          %2708 = vmatprep.subr.bf16.mxu0 0
          %2709 = vmatpush1.bf16.msra.mxu0 0
          %2710 = vmatprep.subr.bf16.mxu0 0
          %2711 = vmatpush1.bf16.msra.mxu0 0
          %2712 = vmatprep.subr.bf16.mxu0 0
          %2713 = vmatpush1.bf16.msra.mxu0 0
          %2714 = vmatprep.subr.bf16.mxu0 0
          %2715 = vmatpush1.bf16.msra.mxu0 0
          %2716 = vmatprep.subr.bf16.mxu0 0
          %2717 = vmatpush1.bf16.msra.mxu0 0
          %2718 = vmatprep.mubr.bf16.mxu0 0
          %2719 = vmatmul.mubr.bf16.gmra.mrb[0].mxu0 %v2663
          %v2720 = vpop.f32.mrb[0].mxu0
          %v2721 = vadd.f32 0.0, %v2720
          %v2722 = vpop.f32.mrb[0].mxu0
          %v2723 = vadd.f32 0.0, %v2722
          %v2724 = vpop.f32.mrb[0].mxu0
          %v2725 = vadd.f32 0.0, %v2724
          %v2726 = vpop.f32.mrb[0].mxu0
          %v2727 = vadd.f32 0.0, %v2726
          %2728 = vmatprep.mubr.bf16.mxu0 0
          %2729 = vmatmul.mubr.bf16.gmra.mrb[0].mxu0 %v2666
          %v2730 = vpop.f32.mrb[0].mxu0
          %v2731 = vadd.f32 0.0, %v2730
          %v2732 = vpop.f32.mrb[0].mxu0
          %v2733 = vadd.f32 0.0, %v2732
          %v2734 = vpop.f32.mrb[0].mxu0
          %v2735 = vadd.f32 0.0, %v2734
          %v2736 = vpop.f32.mrb[0].mxu0
          %v2737 = vadd.f32 0.0, %v2736
          %2738 = vmatprep.mubr.bf16.mxu0 0
          %2739 = vmatmul.mubr.bf16.gmra.mrb[0].mxu0 %v2669
          %v2740 = vpop.f32.mrb[0].mxu0
          %v2741 = vadd.f32 0.0, %v2740
          %v2742 = vpop.f32.mrb[0].mxu0
          %v2743 = vadd.f32 0.0, %v2742
          %v2744 = vpop.f32.mrb[0].mxu0
          %v2745 = vadd.f32 0.0, %v2744
          %v2746 = vpop.f32.mrb[0].mxu0
          %v2747 = vadd.f32 0.0, %v2746
          %2748 = vmatprep.mubr.bf16.mxu0 0
          %2749 = vmatmul.mubr.bf16.gmra.mrb[0].mxu0 %v2672
          %v2750 = vpop.f32.mrb[0].mxu0
          %v2751 = vadd.f32 0.0, %v2750
          %v2752 = vpop.f32.mrb[0].mxu0
          %v2753 = vadd.f32 0.0, %v2752
          %v2754 = vpop.f32.mrb[0].mxu0
          %v2755 = vadd.f32 0.0, %v2754
          %v2756 = vpop.f32.mrb[0].mxu0
          %v2757 = vadd.f32 0.0, %v2756
          %2758 = vmatprep.mubr.bf16.mxu0 0
          %2759 = vmatmul.mubr.bf16.gmra.mrb[0].mxu0 %v2675
          %v2760 = vpop.f32.mrb[0].mxu0
          %v2761 = vadd.f32 0.0, %v2760
          %v2762 = vpop.f32.mrb[0].mxu0
          %v2763 = vadd.f32 0.0, %v2762
          %v2764 = vpop.f32.mrb[0].mxu0
          %v2765 = vadd.f32 0.0, %v2764
          %v2766 = vpop.f32.mrb[0].mxu0
          %v2767 = vadd.f32 0.0, %v2766
          %2768 = vmatprep.mubr.bf16.mxu0 0
          %2769 = vmatmul.mubr.bf16.gmra.mrb[0].mxu0 %v2678
          %v2770 = vpop.f32.mrb[0].mxu0
          %v2771 = vadd.f32 0.0, %v2770
          %v2772 = vpop.f32.mrb[0].mxu0
          %v2773 = vadd.f32 0.0, %v2772
          %v2774 = vpop.f32.mrb[0].mxu0
          %v2775 = vadd.f32 0.0, %v2774
          %v2776 = vpop.f32.mrb[0].mxu0
          %v2777 = vadd.f32 0.0, %v2776
          %2778 = vmatprep.mubr.bf16.mxu0 0
          %2779 = vmatmul.mubr.bf16.gmra.mrb[0].mxu0 %v2681
          %v2780 = vpop.f32.mrb[0].mxu0
          %v2781 = vadd.f32 0.0, %v2780
          %v2782 = vpop.f32.mrb[0].mxu0
          %v2783 = vadd.f32 0.0, %v2782
          %v2784 = vpop.f32.mrb[0].mxu0
          %v2785 = vadd.f32 0.0, %v2784
          %v2786 = vpop.f32.mrb[0].mxu0
          %v2787 = vadd.f32 0.0, %v2786
          %2788 = vmatprep.mubr.bf16.mxu0 0
          %2789 = vmatmul.mubr.bf16.gmra.mrb[0].mxu0 %v2684
          %v2790 = vpop.f32.mrb[0].mxu0
          %v2791 = vadd.f32 0.0, %v2790
          %v2792 = vpop.f32.mrb[0].mxu0
          %v2793 = vadd.f32 0.0, %v2792
          %v2794 = vpop.f32.mrb[0].mxu0
          %v2795 = vadd.f32 0.0, %v2794
          %v2796 = vpop.f32.mrb[0].mxu0
          %v2797 = vadd.f32 0.0, %v2796
          %2798 = vdwg.mxu0
          %v2799 = vpack.c.bf16 %v2725, %v2721
          %v2800 = vpack.c.bf16 %v2727, %v2723
          %v2801 = vpack.c.bf16 %v2735, %v2731
          %v2802 = vpack.c.bf16 %v2737, %v2733
          %v2803 = vpack.c.bf16 %v2745, %v2741
          %v2804 = vpack.c.bf16 %v2747, %v2743
          %v2805 = vpack.c.bf16 %v2755, %v2751
          %v2806 = vpack.c.bf16 %v2757, %v2753
          %v2807 = vpack.c.bf16 %v2765, %v2761
          %v2808 = vpack.c.bf16 %v2767, %v2763
          %v2809 = vpack.c.bf16 %v2775, %v2771
          %v2810 = vpack.c.bf16 %v2777, %v2773
          %v2811 = vpack.c.bf16 %v2785, %v2781
          %v2812 = vpack.c.bf16 %v2787, %v2783
          %v2813 = vpack.c.bf16 %v2795, %v2791
          %v2814 = vpack.c.bf16 %v2797, %v2793
          %v2815 = vpack.c.bf16 %v2605, %v2604
          %v2816 = vpack.c.bf16 %v2607, %v2606
          %v2817 = vpack.c.bf16 %v2609, %v2608
          %v2818 = vpack.c.bf16 %v2611, %v2610
          %v2819 = vpack.c.bf16 %v2613, %v2612
          %v2820 = vpack.c.bf16 %v2615, %v2614
          %v2821 = vpack.c.bf16 %v2617, %v2616
          %v2822 = vpack.c.bf16 %v2619, %v2618
          %2824 = vset.pattern.permute.xlu0 0
          %2825 = vperm.xlu0 %2824, %v2815
          %v2826 = vpop.permute.xlu0 %2825
          %2829 = vset.pattern.permute.xlu0 0
          %2830 = vperm.xlu0 %2829, %v2816
          %v2831 = vpop.permute.xlu0 %2830
          %2834 = vset.pattern.permute.xlu0 0
          %2835 = vperm.xlu0 %2834, %v2817
          %v2836 = vpop.permute.xlu0 %2835
          %2839 = vset.pattern.permute.xlu0 0
          %2840 = vperm.xlu0 %2839, %v2818
          %v2841 = vpop.permute.xlu0 %2840
          %2844 = vset.pattern.permute.xlu0 0
          %2845 = vperm.xlu0 %2844, %v2819
          %v2846 = vpop.permute.xlu0 %2845
          %2849 = vset.pattern.permute.xlu0 0
          %2850 = vperm.xlu0 %2849, %v2820
          %v2851 = vpop.permute.xlu0 %2850
          %2854 = vset.pattern.permute.xlu0 0
          %2855 = vperm.xlu0 %2854, %v2821
          %v2856 = vpop.permute.xlu0 %2855
          %2859 = vset.pattern.permute.xlu0 0
          %2860 = vperm.xlu0 %2859, %v2822
          %v2861 = vpop.permute.xlu0 %2860
          %v2863 = vadd.bf16 %v2799, %v2826
          %v2864 = vadd.bf16 %v2800, %v2826
          %v2865 = vadd.bf16 %v2801, %v2831
          %v2866 = vadd.bf16 %v2802, %v2831
          %v2867 = vadd.bf16 %v2803, %v2836
          %v2868 = vadd.bf16 %v2804, %v2836
          %v2869 = vadd.bf16 %v2805, %v2841
          %v2870 = vadd.bf16 %v2806, %v2841
          %v2871 = vadd.bf16 %v2807, %v2846
          %v2872 = vadd.bf16 %v2808, %v2846
          %v2873 = vadd.bf16 %v2809, %v2851
          %v2874 = vadd.bf16 %v2810, %v2851
          %v2875 = vadd.bf16 %v2811, %v2856
          %v2876 = vadd.bf16 %v2812, %v2856
          %v2877 = vadd.bf16 %v2813, %v2861
          %v2878 = vadd.bf16 %v2814, %v2861
          %v2879 = vxor.u32 %v2871, 2147516416
          %v2880 = vxor.u32 %v2872, 2147516416
          %v2881 = vxor.u32 %v2873, 2147516416
          %v2882 = vxor.u32 %v2874, 2147516416
          %v2883 = vxor.u32 %v2875, 2147516416
          %v2884 = vxor.u32 %v2876, 2147516416
          %v2885 = vxor.u32 %v2877, 2147516416
          %v2886 = vxor.u32 %v2878, 2147516416
          %v2888 = vmul.bf16 %v2879, 1069105081
          %v2889 = vpow.bf16.pop %v2888
          %v2891 = vmul.bf16 %v2880, 1069105081
          %v2892 = vpow.bf16.pop %v2891
          %v2894 = vmul.bf16 %v2881, 1069105081
          %v2895 = vpow.bf16.pop %v2894
          %v2897 = vmul.bf16 %v2882, 1069105081
          %v2898 = vpow.bf16.pop %v2897
          %v2900 = vmul.bf16 %v2883, 1069105081
          %v2901 = vpow.bf16.pop %v2900
          %v2903 = vmul.bf16 %v2884, 1069105081
          %v2904 = vpow.bf16.pop %v2903
          %v2906 = vmul.bf16 %v2885, 1069105081
          %v2907 = vpow.bf16.pop %v2906
          %v2909 = vmul.bf16 %v2886, 1069105081
          %v2910 = vpow.bf16.pop %v2909
          %v2911 = vadd.bf16 %v2889, 1065369472
          %v2912 = vadd.bf16 %v2892, 1065369472
          %v2913 = vadd.bf16 %v2895, 1065369472
          %v2914 = vadd.bf16 %v2898, 1065369472
          %v2915 = vadd.bf16 %v2901, 1065369472
          %v2916 = vadd.bf16 %v2904, 1065369472
          %v2917 = vadd.bf16 %v2907, 1065369472
          %v2918 = vadd.bf16 %v2910, 1065369472
          %v2919 = vrcp.bf16.pop %v2911
          %v2920 = vmul.bf16 1065369472, %v2919
          %v2921 = vrcp.bf16.pop %v2912
          %v2922 = vmul.bf16 1065369472, %v2921
          %v2923 = vrcp.bf16.pop %v2913
          %v2924 = vmul.bf16 1065369472, %v2923
          %v2925 = vrcp.bf16.pop %v2914
          %v2926 = vmul.bf16 1065369472, %v2925
          %v2927 = vrcp.bf16.pop %v2915
          %v2928 = vmul.bf16 1065369472, %v2927
          %v2929 = vrcp.bf16.pop %v2916
          %v2930 = vmul.bf16 1065369472, %v2929
          %v2931 = vrcp.bf16.pop %v2917
          %v2932 = vmul.bf16 1065369472, %v2931
          %v2933 = vrcp.bf16.pop %v2918
          %v2934 = vmul.bf16 1065369472, %v2933
          %v2935 = vmul.bf16 %v2863, %v2920
          %v2936 = vmul.bf16 %v2864, %v2922
          %v2937 = vmul.bf16 %v2865, %v2924
          %v2938 = vmul.bf16 %v2866, %v2926
          %v2939 = vmul.bf16 %v2867, %v2928
          %v2940 = vmul.bf16 %v2868, %v2930
          %v2941 = vmul.bf16 %v2869, %v2932
          %v2942 = vmul.bf16 %v2870, %v2934
          %s2943 = smul.addr %s2583, 4
          %s2944 = scalar_lea.vmem %s5, %s2943
          %v2945 = vld [vmem:[%s2944] sm:$0xf]
          %v2946 = vld [vmem:[%s2944 + $0x4] sm:$0xf]
          %v2947 = vld [vmem:[%s2944 + $0x8] sm:$0xf]
          %v2948 = vld [vmem:[%s2944 + $0xc] sm:$0xf]
          %v2949 = vld [vmem:[%s2944 + $0x10] sm:$0xf]
          %v2950 = vld [vmem:[%s2944 + $0x14] sm:$0xf]
          %v2951 = vld [vmem:[%s2944 + $0x18] sm:$0xf]
          %v2952 = vld [vmem:[%s2944 + $0x1c] sm:$0xf]
          %v2953 = vld [vmem:[%s2944 + $0x20] sm:$0xf]
          %v2954 = vld [vmem:[%s2944 + $0x24] sm:$0xf]
          %v2955 = vld [vmem:[%s2944 + $0x28] sm:$0xf]
          %v2956 = vld [vmem:[%s2944 + $0x2c] sm:$0xf]
          %v2957 = vld [vmem:[%s2944 + $0x30] sm:$0xf]
          %v2958 = vld [vmem:[%s2944 + $0x34] sm:$0xf]
          %v2959 = vld [vmem:[%s2944 + $0x38] sm:$0xf]
          %v2960 = vld [vmem:[%s2944 + $0x3c] sm:$0xf]
          %s2961 = scalar_lea.vmem %s6, %s2602
          %v2962 = vld [vmem:[%s2961] sm:$0xff]
          %v2963 = vld [vmem:[%s2961 + $0x8] sm:$0xff]
          %v2964 = vld [vmem:[%s2961 + $0x10] sm:$0xff]
          %v2965 = vld [vmem:[%s2961 + $0x18] sm:$0xff]
          %v2966 = vld [vmem:[%s2961 + $0x20] sm:$0xff]
          %v2967 = vld [vmem:[%s2961 + $0x28] sm:$0xff]
          %v2968 = vld [vmem:[%s2961 + $0x30] sm:$0xff]
          %v2969 = vld [vmem:[%s2961 + $0x38] sm:$0xff]
          %v2970 = vld [vmem:[%s2961 + $0x40] sm:$0xff]
          %v2971 = vld [vmem:[%s2961 + $0x48] sm:$0xff]
          %v2972 = vld [vmem:[%s2961 + $0x50] sm:$0xff]
          %v2973 = vld [vmem:[%s2961 + $0x58] sm:$0xff]
          %v2974 = vld [vmem:[%s2961 + $0x60] sm:$0xff]
          %v2975 = vld [vmem:[%s2961 + $0x68] sm:$0xff]
          %v2976 = vld [vmem:[%s2961 + $0x70] sm:$0xff]
          %v2977 = vld [vmem:[%s2961 + $0x78] sm:$0xff]
          %v2994 = vunpack.c.l.b16 %v2945
          %v2995 = vunpack.c.l.b16 %v2946
          %v2996 = vunpack.c.l.b16 %v2947
          %v2997 = vunpack.c.l.b16 %v2948
          %v2998 = vunpack.c.l.b16 %v2949
          %v2999 = vunpack.c.l.b16 %v2950
          %v3000 = vunpack.c.l.b16 %v2951
          %v3001 = vunpack.c.l.b16 %v2952
          %v3002 = vunpack.c.l.b16 %v2953
          %v3003 = vunpack.c.l.b16 %v2954
          %v3004 = vunpack.c.l.b16 %v2955
          %v3005 = vunpack.c.l.b16 %v2956
          %v3006 = vunpack.c.l.b16 %v2957
          %v3007 = vunpack.c.l.b16 %v2958
          %v3008 = vunpack.c.l.b16 %v2959
          %v3009 = vunpack.c.l.b16 %v2960
          %v3010 = vpack.c.b16 %v2995, %v2994
          %v3011 = vpack.c.b16 %v2997, %v2996
          %v3012 = vpack.c.b16 %v2999, %v2998
          %v3013 = vpack.c.b16 %v3001, %v3000
          %v3014 = vpack.c.b16 %v3003, %v3002
          %v3015 = vpack.c.b16 %v3005, %v3004
          %v3016 = vpack.c.b16 %v3007, %v3006
          %v3017 = vpack.c.b16 %v3009, %v3008
          %v3019 = vsel %vm961, %v3010, 0
          %v3022 = vsel %vm961, %v3011, 0
          %v3025 = vsel %vm961, %v3012, 0
          %v3028 = vsel %vm961, %v3013, 0
          %v3031 = vsel %vm961, %v3014, 0
          %v3034 = vsel %vm961, %v3015, 0
          %v3037 = vsel %vm961, %v3016, 0
          %v3040 = vsel %vm961, %v3017, 0
          %3042 = vmatprep.subr.bf16.mxu0 %v2936
          %3043 = vmatpush1.bf16.msra.mxu0 %v2935
          %3044 = vmatprep.subr.bf16.mxu0 %v2938
          %3045 = vmatpush1.bf16.msra.mxu0 %v2937
          %3046 = vmatprep.subr.bf16.mxu0 %v2940
          %3047 = vmatpush1.bf16.msra.mxu0 %v2939
          %3048 = vmatprep.subr.bf16.mxu0 %v2942
          %3049 = vmatpush1.bf16.msra.mxu0 %v2941
          %3050 = vmatprep.subr.bf16.mxu0 0
          %3051 = vmatpush1.bf16.msra.mxu0 0
          %3052 = vmatprep.subr.bf16.mxu0 0
          %3053 = vmatpush1.bf16.msra.mxu0 0
          %3054 = vmatprep.subr.bf16.mxu0 0
          %3055 = vmatpush1.bf16.msra.mxu0 0
          %3056 = vmatprep.subr.bf16.mxu0 0
          %3057 = vmatpush1.bf16.msra.mxu0 0
          %3058 = vmatprep.subr.bf16.mxu0 0
          %3059 = vmatpush1.bf16.msra.mxu0 0
          %3060 = vmatprep.subr.bf16.mxu0 0
          %3061 = vmatpush1.bf16.msra.mxu0 0
          %3062 = vmatprep.subr.bf16.mxu0 0
          %3063 = vmatpush1.bf16.msra.mxu0 0
          %3064 = vmatprep.subr.bf16.mxu0 0
          %3065 = vmatpush1.bf16.msra.mxu0 0
          %3066 = vmatprep.subr.bf16.mxu0 0
          %3067 = vmatpush1.bf16.msra.mxu0 0
          %3068 = vmatprep.subr.bf16.mxu0 0
          %3069 = vmatpush1.bf16.msra.mxu0 0
          %3070 = vmatprep.subr.bf16.mxu0 0
          %3071 = vmatpush1.bf16.msra.mxu0 0
          %3072 = vmatprep.subr.bf16.mxu0 0
          %3073 = vmatpush1.bf16.msra.mxu0 0
          %3074 = vmatprep.mubr.bf16.mxu0 0
          %3075 = vmatmul.mubr.bf16.gmra.mrb[0].mxu0 %v3019
          %v3076 = vpop.f32.mrb[0].mxu0
          %v3077 = vadd.f32 0.0, %v3076
          %v3078 = vpop.f32.mrb[0].mxu0
          %v3079 = vadd.f32 0.0, %v3078
          %v3080 = vpop.f32.mrb[0].mxu0
          %v3081 = vadd.f32 0.0, %v3080
          %v3082 = vpop.f32.mrb[0].mxu0
          %v3083 = vadd.f32 0.0, %v3082
          %3084 = vmatprep.mubr.bf16.mxu0 0
          %3085 = vmatmul.mubr.bf16.gmra.mrb[0].mxu0 %v3022
          %v3086 = vpop.f32.mrb[0].mxu0
          %v3087 = vadd.f32 0.0, %v3086
          %v3088 = vpop.f32.mrb[0].mxu0
          %v3089 = vadd.f32 0.0, %v3088
          %v3090 = vpop.f32.mrb[0].mxu0
          %v3091 = vadd.f32 0.0, %v3090
          %v3092 = vpop.f32.mrb[0].mxu0
          %v3093 = vadd.f32 0.0, %v3092
          %3094 = vmatprep.mubr.bf16.mxu0 0
          %3095 = vmatmul.mubr.bf16.gmra.mrb[0].mxu0 %v3025
          %v3096 = vpop.f32.mrb[0].mxu0
          %v3097 = vadd.f32 0.0, %v3096
          %v3098 = vpop.f32.mrb[0].mxu0
          %v3099 = vadd.f32 0.0, %v3098
          %v3100 = vpop.f32.mrb[0].mxu0
          %v3101 = vadd.f32 0.0, %v3100
          %v3102 = vpop.f32.mrb[0].mxu0
          %v3103 = vadd.f32 0.0, %v3102
          %3104 = vmatprep.mubr.bf16.mxu0 0
          %3105 = vmatmul.mubr.bf16.gmra.mrb[0].mxu0 %v3028
          %v3106 = vpop.f32.mrb[0].mxu0
          %v3107 = vadd.f32 0.0, %v3106
          %v3108 = vpop.f32.mrb[0].mxu0
          %v3109 = vadd.f32 0.0, %v3108
          %v3110 = vpop.f32.mrb[0].mxu0
          %v3111 = vadd.f32 0.0, %v3110
          %v3112 = vpop.f32.mrb[0].mxu0
          %v3113 = vadd.f32 0.0, %v3112
          %3114 = vmatprep.mubr.bf16.mxu0 0
          %3115 = vmatmul.mubr.bf16.gmra.mrb[0].mxu0 %v3031
          %v3116 = vpop.f32.mrb[0].mxu0
          %v3117 = vadd.f32 0.0, %v3116
          %v3118 = vpop.f32.mrb[0].mxu0
          %v3119 = vadd.f32 0.0, %v3118
          %v3120 = vpop.f32.mrb[0].mxu0
          %v3121 = vadd.f32 0.0, %v3120
          %v3122 = vpop.f32.mrb[0].mxu0
          %v3123 = vadd.f32 0.0, %v3122
          %3124 = vmatprep.mubr.bf16.mxu0 0
          %3125 = vmatmul.mubr.bf16.gmra.mrb[0].mxu0 %v3034
          %v3126 = vpop.f32.mrb[0].mxu0
          %v3127 = vadd.f32 0.0, %v3126
          %v3128 = vpop.f32.mrb[0].mxu0
          %v3129 = vadd.f32 0.0, %v3128
          %v3130 = vpop.f32.mrb[0].mxu0
          %v3131 = vadd.f32 0.0, %v3130
          %v3132 = vpop.f32.mrb[0].mxu0
          %v3133 = vadd.f32 0.0, %v3132
          %3134 = vmatprep.mubr.bf16.mxu0 0
          %3135 = vmatmul.mubr.bf16.gmra.mrb[0].mxu0 %v3037
          %v3136 = vpop.f32.mrb[0].mxu0
          %v3137 = vadd.f32 0.0, %v3136
          %v3138 = vpop.f32.mrb[0].mxu0
          %v3139 = vadd.f32 0.0, %v3138
          %v3140 = vpop.f32.mrb[0].mxu0
          %v3141 = vadd.f32 0.0, %v3140
          %v3142 = vpop.f32.mrb[0].mxu0
          %v3143 = vadd.f32 0.0, %v3142
          %3144 = vmatprep.mubr.bf16.mxu0 0
          %3145 = vmatmul.mubr.bf16.gmra.mrb[0].mxu0 %v3040
          %v3146 = vpop.f32.mrb[0].mxu0
          %v3147 = vadd.f32 0.0, %v3146
          %v3148 = vpop.f32.mrb[0].mxu0
          %v3149 = vadd.f32 0.0, %v3148
          %v3150 = vpop.f32.mrb[0].mxu0
          %v3151 = vadd.f32 0.0, %v3150
          %v3152 = vpop.f32.mrb[0].mxu0
          %v3153 = vadd.f32 0.0, %v3152
          %3154 = vdwg.mxu0
          %v3155 = vpack.c.bf16 %v3081, %v3077
          %v3156 = vpack.c.bf16 %v3083, %v3079
          %v3157 = vpack.c.bf16 %v3091, %v3087
          %v3158 = vpack.c.bf16 %v3093, %v3089
          %v3159 = vpack.c.bf16 %v3101, %v3097
          %v3160 = vpack.c.bf16 %v3103, %v3099
          %v3161 = vpack.c.bf16 %v3111, %v3107
          %v3162 = vpack.c.bf16 %v3113, %v3109
          %v3163 = vpack.c.bf16 %v3121, %v3117
          %v3164 = vpack.c.bf16 %v3123, %v3119
          %v3165 = vpack.c.bf16 %v3131, %v3127
          %v3166 = vpack.c.bf16 %v3133, %v3129
          %v3167 = vpack.c.bf16 %v3141, %v3137
          %v3168 = vpack.c.bf16 %v3143, %v3139
          %v3169 = vpack.c.bf16 %v3151, %v3147
          %v3170 = vpack.c.bf16 %v3153, %v3149
          %v3171 = vpack.c.bf16 %v2963, %v2962
          %v3172 = vpack.c.bf16 %v2965, %v2964
          %v3173 = vpack.c.bf16 %v2967, %v2966
          %v3174 = vpack.c.bf16 %v2969, %v2968
          %v3175 = vpack.c.bf16 %v2971, %v2970
          %v3176 = vpack.c.bf16 %v2973, %v2972
          %v3177 = vpack.c.bf16 %v2975, %v2974
          %v3178 = vpack.c.bf16 %v2977, %v2976
          %3180 = vset.pattern.permute.xlu0 0
          %3181 = vperm.xlu0 %3180, %v3171
          %v3182 = vpop.permute.xlu0 %3181
          %3185 = vset.pattern.permute.xlu0 0
          %3186 = vperm.xlu0 %3185, %v3172
          %v3187 = vpop.permute.xlu0 %3186
          %3190 = vset.pattern.permute.xlu0 0
          %3191 = vperm.xlu0 %3190, %v3173
          %v3192 = vpop.permute.xlu0 %3191
          %3195 = vset.pattern.permute.xlu0 0
          %3196 = vperm.xlu0 %3195, %v3174
          %v3197 = vpop.permute.xlu0 %3196
          %3200 = vset.pattern.permute.xlu0 0
          %3201 = vperm.xlu0 %3200, %v3175
          %v3202 = vpop.permute.xlu0 %3201
          %3205 = vset.pattern.permute.xlu0 0
          %3206 = vperm.xlu0 %3205, %v3176
          %v3207 = vpop.permute.xlu0 %3206
          %3210 = vset.pattern.permute.xlu0 0
          %3211 = vperm.xlu0 %3210, %v3177
          %v3212 = vpop.permute.xlu0 %3211
          %3215 = vset.pattern.permute.xlu0 0
          %3216 = vperm.xlu0 %3215, %v3178
          %v3217 = vpop.permute.xlu0 %3216
          %v3219 = vadd.bf16 %v3155, %v3182
          %v3220 = vadd.bf16 %v3156, %v3182
          %v3221 = vadd.bf16 %v3157, %v3187
          %v3222 = vadd.bf16 %v3158, %v3187
          %v3223 = vadd.bf16 %v3159, %v3192
          %v3224 = vadd.bf16 %v3160, %v3192
          %v3225 = vadd.bf16 %v3161, %v3197
          %v3226 = vadd.bf16 %v3162, %v3197
          %v3227 = vadd.bf16 %v3163, %v3202
          %v3228 = vadd.bf16 %v3164, %v3202
          %v3229 = vadd.bf16 %v3165, %v3207
          %v3230 = vadd.bf16 %v3166, %v3207
          %v3231 = vadd.bf16 %v3167, %v3212
          %v3232 = vadd.bf16 %v3168, %v3212
          %v3233 = vadd.bf16 %v3169, %v3217
          %v3234 = vadd.bf16 %v3170, %v3217
          %v3235 = vxor.u32 %v3227, 2147516416
          %v3236 = vxor.u32 %v3228, 2147516416
          %v3237 = vxor.u32 %v3229, 2147516416
          %v3238 = vxor.u32 %v3230, 2147516416
          %v3239 = vxor.u32 %v3231, 2147516416
          %v3240 = vxor.u32 %v3232, 2147516416
          %v3241 = vxor.u32 %v3233, 2147516416
          %v3242 = vxor.u32 %v3234, 2147516416
          %v3244 = vmul.bf16 %v3235, 1069105081
          %v3245 = vpow.bf16.pop %v3244
          %v3247 = vmul.bf16 %v3236, 1069105081
          %v3248 = vpow.bf16.pop %v3247
          %v3250 = vmul.bf16 %v3237, 1069105081
          %v3251 = vpow.bf16.pop %v3250
          %v3253 = vmul.bf16 %v3238, 1069105081
          %v3254 = vpow.bf16.pop %v3253
          %v3256 = vmul.bf16 %v3239, 1069105081
          %v3257 = vpow.bf16.pop %v3256
          %v3259 = vmul.bf16 %v3240, 1069105081
          %v3260 = vpow.bf16.pop %v3259
          %v3262 = vmul.bf16 %v3241, 1069105081
          %v3263 = vpow.bf16.pop %v3262
          %v3265 = vmul.bf16 %v3242, 1069105081
          %v3266 = vpow.bf16.pop %v3265
          %v3267 = vadd.bf16 %v3245, 1065369472
          %v3268 = vadd.bf16 %v3248, 1065369472
          %v3269 = vadd.bf16 %v3251, 1065369472
          %v3270 = vadd.bf16 %v3254, 1065369472
          %v3271 = vadd.bf16 %v3257, 1065369472
          %v3272 = vadd.bf16 %v3260, 1065369472
          %v3273 = vadd.bf16 %v3263, 1065369472
          %v3274 = vadd.bf16 %v3266, 1065369472
          %v3275 = vrcp.bf16.pop %v3267
          %v3276 = vmul.bf16 1065369472, %v3275
          %v3277 = vrcp.bf16.pop %v3268
          %v3278 = vmul.bf16 1065369472, %v3277
          %v3279 = vrcp.bf16.pop %v3269
          %v3280 = vmul.bf16 1065369472, %v3279
          %v3281 = vrcp.bf16.pop %v3270
          %v3282 = vmul.bf16 1065369472, %v3281
          %v3283 = vrcp.bf16.pop %v3271
          %v3284 = vmul.bf16 1065369472, %v3283
          %v3285 = vrcp.bf16.pop %v3272
          %v3286 = vmul.bf16 1065369472, %v3285
          %v3287 = vrcp.bf16.pop %v3273
          %v3288 = vmul.bf16 1065369472, %v3287
          %v3289 = vrcp.bf16.pop %v3274
          %v3290 = vmul.bf16 1065369472, %v3289
          %v3291 = vmul.bf16 %v3219, %v3276
          %v3292 = vmul.bf16 %v3220, %v3278
          %v3293 = vmul.bf16 %v3221, %v3280
          %v3294 = vmul.bf16 %v3222, %v3282
          %v3295 = vmul.bf16 %v3223, %v3284
          %v3296 = vmul.bf16 %v3224, %v3286
          %v3297 = vmul.bf16 %v3225, %v3288
          %v3298 = vmul.bf16 %v3226, %v3290
          %v3299 = vadd.bf16 %v2935, %v3291
          %v3300 = vadd.bf16 %v2936, %v3292
          %v3301 = vadd.bf16 %v2937, %v3293
          %v3302 = vadd.bf16 %v2938, %v3294
          %v3303 = vadd.bf16 %v2939, %v3295
          %v3304 = vadd.bf16 %v2940, %v3296
          %v3305 = vadd.bf16 %v2941, %v3297
          %v3306 = vadd.bf16 %v2942, %v3298
          %v3307 = vmul.bf16 %v3299, 1060454197
          %v3308 = vmul.bf16 %v3300, 1060454197
          %v3309 = vmul.bf16 %v3301, 1060454197
          %v3310 = vmul.bf16 %v3302, 1060454197
          %v3311 = vmul.bf16 %v3303, 1060454197
          %v3312 = vmul.bf16 %v3304, 1060454197
          %v3313 = vmul.bf16 %v3305, 1060454197
          %v3314 = vmul.bf16 %v3306, 1060454197
          %s3315 = smul.u32 %s2582, 2
          %s3316 = smul.u32 %s3315, 16
          %s3317 = smul.addr %s3316, 4
          %s3318 = scalar_lea.vmem %s7, %s3317
          %v3319 = vld [vmem:[%s3318] sm:$0xf]
          %v3320 = vld [vmem:[%s3318 + $0x4] sm:$0xf]
          %v3321 = vld [vmem:[%s3318 + $0x8] sm:$0xf]
          %v3322 = vld [vmem:[%s3318 + $0xc] sm:$0xf]
          %v3323 = vld [vmem:[%s3318 + $0x10] sm:$0xf]
          %v3324 = vld [vmem:[%s3318 + $0x14] sm:$0xf]
          %v3325 = vld [vmem:[%s3318 + $0x18] sm:$0xf]
          %v3326 = vld [vmem:[%s3318 + $0x1c] sm:$0xf]
          %v3327 = vld [vmem:[%s3318 + $0x20] sm:$0xf]
          %v3328 = vld [vmem:[%s3318 + $0x24] sm:$0xf]
          %v3329 = vld [vmem:[%s3318 + $0x28] sm:$0xf]
          %v3330 = vld [vmem:[%s3318 + $0x2c] sm:$0xf]
          %v3331 = vld [vmem:[%s3318 + $0x30] sm:$0xf]
          %v3332 = vld [vmem:[%s3318 + $0x34] sm:$0xf]
          %v3333 = vld [vmem:[%s3318 + $0x38] sm:$0xf]
          %v3334 = vld [vmem:[%s3318 + $0x3c] sm:$0xf]
          %s3335 = smul.u32 %s3315, 128
          %s3336 = scalar_lea.vmem %s8, %s3335
          %v3337 = vld [vmem:[%s3336] sm:$0xff]
          %v3338 = vld [vmem:[%s3336 + $0x8] sm:$0xff]
          %v3339 = vld [vmem:[%s3336 + $0x10] sm:$0xff]
          %v3340 = vld [vmem:[%s3336 + $0x18] sm:$0xff]
          %v3341 = vld [vmem:[%s3336 + $0x20] sm:$0xff]
          %v3342 = vld [vmem:[%s3336 + $0x28] sm:$0xff]
          %v3343 = vld [vmem:[%s3336 + $0x30] sm:$0xff]
          %v3344 = vld [vmem:[%s3336 + $0x38] sm:$0xff]
          %v3345 = vld [vmem:[%s3336 + $0x40] sm:$0xff]
          %v3346 = vld [vmem:[%s3336 + $0x48] sm:$0xff]
          %v3347 = vld [vmem:[%s3336 + $0x50] sm:$0xff]
          %v3348 = vld [vmem:[%s3336 + $0x58] sm:$0xff]
          %v3349 = vld [vmem:[%s3336 + $0x60] sm:$0xff]
          %v3350 = vld [vmem:[%s3336 + $0x68] sm:$0xff]
          %v3351 = vld [vmem:[%s3336 + $0x70] sm:$0xff]
          %v3352 = vld [vmem:[%s3336 + $0x78] sm:$0xff]
          %v3369 = vunpack.c.l.b16 %v3319
          %v3370 = vunpack.c.l.b16 %v3320
          %v3371 = vunpack.c.l.b16 %v3321
          %v3372 = vunpack.c.l.b16 %v3322
          %v3373 = vunpack.c.l.b16 %v3323
          %v3374 = vunpack.c.l.b16 %v3324
          %v3375 = vunpack.c.l.b16 %v3325
          %v3376 = vunpack.c.l.b16 %v3326
          %v3377 = vunpack.c.l.b16 %v3327
          %v3378 = vunpack.c.l.b16 %v3328
          %v3379 = vunpack.c.l.b16 %v3329
          %v3380 = vunpack.c.l.b16 %v3330
          %v3381 = vunpack.c.l.b16 %v3331
          %v3382 = vunpack.c.l.b16 %v3332
          %v3383 = vunpack.c.l.b16 %v3333
          %v3384 = vunpack.c.l.b16 %v3334
          %v3385 = vpack.c.b16 %v3370, %v3369
          %v3386 = vpack.c.b16 %v3372, %v3371
          %v3387 = vpack.c.b16 %v3374, %v3373
          %v3388 = vpack.c.b16 %v3376, %v3375
          %v3389 = vpack.c.b16 %v3378, %v3377
          %v3390 = vpack.c.b16 %v3380, %v3379
          %v3391 = vpack.c.b16 %v3382, %v3381
          %v3392 = vpack.c.b16 %v3384, %v3383
          %v3394 = vsel %vm961, %v3385, 0
          %v3397 = vsel %vm961, %v3386, 0
          %v3400 = vsel %vm961, %v3387, 0
          %v3403 = vsel %vm961, %v3388, 0
          %v3406 = vsel %vm961, %v3389, 0
          %v3409 = vsel %vm961, %v3390, 0
          %v3412 = vsel %vm961, %v3391, 0
          %v3415 = vsel %vm961, %v3392, 0
          %3417 = vmatprep.subr.bf16.mxu0 %v3308
          %3418 = vmatpush1.bf16.msra.mxu0 %v3307
          %3419 = vmatprep.subr.bf16.mxu0 %v3310
          %3420 = vmatpush1.bf16.msra.mxu0 %v3309
          %3421 = vmatprep.subr.bf16.mxu0 %v3312
          %3422 = vmatpush1.bf16.msra.mxu0 %v3311
          %3423 = vmatprep.subr.bf16.mxu0 %v3314
          %3424 = vmatpush1.bf16.msra.mxu0 %v3313
          %3425 = vmatprep.subr.bf16.mxu0 0
          %3426 = vmatpush1.bf16.msra.mxu0 0
          %3427 = vmatprep.subr.bf16.mxu0 0
          %3428 = vmatpush1.bf16.msra.mxu0 0
          %3429 = vmatprep.subr.bf16.mxu0 0
          %3430 = vmatpush1.bf16.msra.mxu0 0
          %3431 = vmatprep.subr.bf16.mxu0 0
          %3432 = vmatpush1.bf16.msra.mxu0 0
          %3433 = vmatprep.subr.bf16.mxu0 0
          %3434 = vmatpush1.bf16.msra.mxu0 0
          %3435 = vmatprep.subr.bf16.mxu0 0
          %3436 = vmatpush1.bf16.msra.mxu0 0
          %3437 = vmatprep.subr.bf16.mxu0 0
          %3438 = vmatpush1.bf16.msra.mxu0 0
          %3439 = vmatprep.subr.bf16.mxu0 0
          %3440 = vmatpush1.bf16.msra.mxu0 0
          %3441 = vmatprep.subr.bf16.mxu0 0
          %3442 = vmatpush1.bf16.msra.mxu0 0
          %3443 = vmatprep.subr.bf16.mxu0 0
          %3444 = vmatpush1.bf16.msra.mxu0 0
          %3445 = vmatprep.subr.bf16.mxu0 0
          %3446 = vmatpush1.bf16.msra.mxu0 0
          %3447 = vmatprep.subr.bf16.mxu0 0
          %3448 = vmatpush1.bf16.msra.mxu0 0
          %3449 = vmatprep.mubr.bf16.mxu0 0
          %3450 = vmatmul.mubr.bf16.gmra.mrb[0].mxu0 %v3394
          %v3451 = vpop.f32.mrb[0].mxu0
          %v3452 = vadd.f32 0.0, %v3451
          %v3453 = vpop.f32.mrb[0].mxu0
          %v3454 = vadd.f32 0.0, %v3453
          %v3455 = vpop.f32.mrb[0].mxu0
          %v3456 = vadd.f32 0.0, %v3455
          %v3457 = vpop.f32.mrb[0].mxu0
          %v3458 = vadd.f32 0.0, %v3457
          %3459 = vmatprep.mubr.bf16.mxu0 0
          %3460 = vmatmul.mubr.bf16.gmra.mrb[0].mxu0 %v3397
          %v3461 = vpop.f32.mrb[0].mxu0
          %v3462 = vadd.f32 0.0, %v3461
          %v3463 = vpop.f32.mrb[0].mxu0
          %v3464 = vadd.f32 0.0, %v3463
          %v3465 = vpop.f32.mrb[0].mxu0
          %v3466 = vadd.f32 0.0, %v3465
          %v3467 = vpop.f32.mrb[0].mxu0
          %v3468 = vadd.f32 0.0, %v3467
          %3469 = vmatprep.mubr.bf16.mxu0 0
          %3470 = vmatmul.mubr.bf16.gmra.mrb[0].mxu0 %v3400
          %v3471 = vpop.f32.mrb[0].mxu0
          %v3472 = vadd.f32 0.0, %v3471
          %v3473 = vpop.f32.mrb[0].mxu0
          %v3474 = vadd.f32 0.0, %v3473
          %v3475 = vpop.f32.mrb[0].mxu0
          %v3476 = vadd.f32 0.0, %v3475
          %v3477 = vpop.f32.mrb[0].mxu0
          %v3478 = vadd.f32 0.0, %v3477
          %3479 = vmatprep.mubr.bf16.mxu0 0
          %3480 = vmatmul.mubr.bf16.gmra.mrb[0].mxu0 %v3403
          %v3481 = vpop.f32.mrb[0].mxu0
          %v3482 = vadd.f32 0.0, %v3481
          %v3483 = vpop.f32.mrb[0].mxu0
          %v3484 = vadd.f32 0.0, %v3483
          %v3485 = vpop.f32.mrb[0].mxu0
          %v3486 = vadd.f32 0.0, %v3485
          %v3487 = vpop.f32.mrb[0].mxu0
          %v3488 = vadd.f32 0.0, %v3487
          %3489 = vmatprep.mubr.bf16.mxu0 0
          %3490 = vmatmul.mubr.bf16.gmra.mrb[0].mxu0 %v3406
          %v3491 = vpop.f32.mrb[0].mxu0
          %v3492 = vadd.f32 0.0, %v3491
          %v3493 = vpop.f32.mrb[0].mxu0
          %v3494 = vadd.f32 0.0, %v3493
          %v3495 = vpop.f32.mrb[0].mxu0
          %v3496 = vadd.f32 0.0, %v3495
          %v3497 = vpop.f32.mrb[0].mxu0
          %v3498 = vadd.f32 0.0, %v3497
          %3499 = vmatprep.mubr.bf16.mxu0 0
          %3500 = vmatmul.mubr.bf16.gmra.mrb[0].mxu0 %v3409
          %v3501 = vpop.f32.mrb[0].mxu0
          %v3502 = vadd.f32 0.0, %v3501
          %v3503 = vpop.f32.mrb[0].mxu0
          %v3504 = vadd.f32 0.0, %v3503
          %v3505 = vpop.f32.mrb[0].mxu0
          %v3506 = vadd.f32 0.0, %v3505
          %v3507 = vpop.f32.mrb[0].mxu0
          %v3508 = vadd.f32 0.0, %v3507
          %3509 = vmatprep.mubr.bf16.mxu0 0
          %3510 = vmatmul.mubr.bf16.gmra.mrb[0].mxu0 %v3412
          %v3511 = vpop.f32.mrb[0].mxu0
          %v3512 = vadd.f32 0.0, %v3511
          %v3513 = vpop.f32.mrb[0].mxu0
          %v3514 = vadd.f32 0.0, %v3513
          %v3515 = vpop.f32.mrb[0].mxu0
          %v3516 = vadd.f32 0.0, %v3515
          %v3517 = vpop.f32.mrb[0].mxu0
          %v3518 = vadd.f32 0.0, %v3517
          %3519 = vmatprep.mubr.bf16.mxu0 0
          %3520 = vmatmul.mubr.bf16.gmra.mrb[0].mxu0 %v3415
          %v3521 = vpop.f32.mrb[0].mxu0
          %v3522 = vadd.f32 0.0, %v3521
          %v3523 = vpop.f32.mrb[0].mxu0
          %v3524 = vadd.f32 0.0, %v3523
          %v3525 = vpop.f32.mrb[0].mxu0
          %v3526 = vadd.f32 0.0, %v3525
          %v3527 = vpop.f32.mrb[0].mxu0
          %v3528 = vadd.f32 0.0, %v3527
          %3529 = vdwg.mxu0
          %v3530 = vpack.c.bf16 %v3456, %v3452
          %v3531 = vpack.c.bf16 %v3458, %v3454
          %v3532 = vpack.c.bf16 %v3466, %v3462
          %v3533 = vpack.c.bf16 %v3468, %v3464
          %v3534 = vpack.c.bf16 %v3476, %v3472
          %v3535 = vpack.c.bf16 %v3478, %v3474
          %v3536 = vpack.c.bf16 %v3486, %v3482
          %v3537 = vpack.c.bf16 %v3488, %v3484
          %v3538 = vpack.c.bf16 %v3496, %v3492
          %v3539 = vpack.c.bf16 %v3498, %v3494
          %v3540 = vpack.c.bf16 %v3506, %v3502
          %v3541 = vpack.c.bf16 %v3508, %v3504
          %v3542 = vpack.c.bf16 %v3516, %v3512
          %v3543 = vpack.c.bf16 %v3518, %v3514
          %v3544 = vpack.c.bf16 %v3526, %v3522
          %v3545 = vpack.c.bf16 %v3528, %v3524
          %v3546 = vpack.c.bf16 %v3338, %v3337
          %v3547 = vpack.c.bf16 %v3340, %v3339
          %v3548 = vpack.c.bf16 %v3342, %v3341
          %v3549 = vpack.c.bf16 %v3344, %v3343
          %v3550 = vpack.c.bf16 %v3346, %v3345
          %v3551 = vpack.c.bf16 %v3348, %v3347
          %v3552 = vpack.c.bf16 %v3350, %v3349
          %v3553 = vpack.c.bf16 %v3352, %v3351
          %3555 = vset.pattern.permute.xlu0 0
          %3556 = vperm.xlu0 %3555, %v3546
          %v3557 = vpop.permute.xlu0 %3556
          %3560 = vset.pattern.permute.xlu0 0
          %3561 = vperm.xlu0 %3560, %v3547
          %v3562 = vpop.permute.xlu0 %3561
          %3565 = vset.pattern.permute.xlu0 0
          %3566 = vperm.xlu0 %3565, %v3548
          %v3567 = vpop.permute.xlu0 %3566
          %3570 = vset.pattern.permute.xlu0 0
          %3571 = vperm.xlu0 %3570, %v3549
          %v3572 = vpop.permute.xlu0 %3571
          %3575 = vset.pattern.permute.xlu0 0
          %3576 = vperm.xlu0 %3575, %v3550
          %v3577 = vpop.permute.xlu0 %3576
          %3580 = vset.pattern.permute.xlu0 0
          %3581 = vperm.xlu0 %3580, %v3551
          %v3582 = vpop.permute.xlu0 %3581
          %3585 = vset.pattern.permute.xlu0 0
          %3586 = vperm.xlu0 %3585, %v3552
          %v3587 = vpop.permute.xlu0 %3586
          %3590 = vset.pattern.permute.xlu0 0
          %3591 = vperm.xlu0 %3590, %v3553
          %v3592 = vpop.permute.xlu0 %3591
          %v3594 = vadd.bf16 %v3530, %v3557
          %v3595 = vadd.bf16 %v3531, %v3557
          %v3596 = vadd.bf16 %v3532, %v3562
          %v3597 = vadd.bf16 %v3533, %v3562
          %v3598 = vadd.bf16 %v3534, %v3567
          %v3599 = vadd.bf16 %v3535, %v3567
          %v3600 = vadd.bf16 %v3536, %v3572
          %v3601 = vadd.bf16 %v3537, %v3572
          %v3602 = vadd.bf16 %v3538, %v3577
          %v3603 = vadd.bf16 %v3539, %v3577
          %v3604 = vadd.bf16 %v3540, %v3582
          %v3605 = vadd.bf16 %v3541, %v3582
          %v3606 = vadd.bf16 %v3542, %v3587
          %v3607 = vadd.bf16 %v3543, %v3587
          %v3608 = vadd.bf16 %v3544, %v3592
          %v3609 = vadd.bf16 %v3545, %v3592
          %v3610 = vxor.u32 %v3602, 2147516416
          %v3611 = vxor.u32 %v3603, 2147516416
          %v3612 = vxor.u32 %v3604, 2147516416
          %v3613 = vxor.u32 %v3605, 2147516416
          %v3614 = vxor.u32 %v3606, 2147516416
          %v3615 = vxor.u32 %v3607, 2147516416
          %v3616 = vxor.u32 %v3608, 2147516416
          %v3617 = vxor.u32 %v3609, 2147516416
          %v3619 = vmul.bf16 %v3610, 1069105081
          %v3620 = vpow.bf16.pop %v3619
          %v3622 = vmul.bf16 %v3611, 1069105081
          %v3623 = vpow.bf16.pop %v3622
          %v3625 = vmul.bf16 %v3612, 1069105081
          %v3626 = vpow.bf16.pop %v3625
          %v3628 = vmul.bf16 %v3613, 1069105081
          %v3629 = vpow.bf16.pop %v3628
          %v3631 = vmul.bf16 %v3614, 1069105081
          %v3632 = vpow.bf16.pop %v3631
          %v3634 = vmul.bf16 %v3615, 1069105081
          %v3635 = vpow.bf16.pop %v3634
          %v3637 = vmul.bf16 %v3616, 1069105081
          %v3638 = vpow.bf16.pop %v3637
          %v3640 = vmul.bf16 %v3617, 1069105081
          %v3641 = vpow.bf16.pop %v3640
          %v3642 = vadd.bf16 %v3620, 1065369472
          %v3643 = vadd.bf16 %v3623, 1065369472
          %v3644 = vadd.bf16 %v3626, 1065369472
          %v3645 = vadd.bf16 %v3629, 1065369472
          %v3646 = vadd.bf16 %v3632, 1065369472
          %v3647 = vadd.bf16 %v3635, 1065369472
          %v3648 = vadd.bf16 %v3638, 1065369472
          %v3649 = vadd.bf16 %v3641, 1065369472
          %v3650 = vrcp.bf16.pop %v3642
          %v3651 = vmul.bf16 1065369472, %v3650
          %v3652 = vrcp.bf16.pop %v3643
          %v3653 = vmul.bf16 1065369472, %v3652
          %v3654 = vrcp.bf16.pop %v3644
          %v3655 = vmul.bf16 1065369472, %v3654
          %v3656 = vrcp.bf16.pop %v3645
          %v3657 = vmul.bf16 1065369472, %v3656
          %v3658 = vrcp.bf16.pop %v3646
          %v3659 = vmul.bf16 1065369472, %v3658
          %v3660 = vrcp.bf16.pop %v3647
          %v3661 = vmul.bf16 1065369472, %v3660
          %v3662 = vrcp.bf16.pop %v3648
          %v3663 = vmul.bf16 1065369472, %v3662
          %v3664 = vrcp.bf16.pop %v3649
          %v3665 = vmul.bf16 1065369472, %v3664
          %v3666 = vmul.bf16 %v3594, %v3651
          %v3667 = vmul.bf16 %v3595, %v3653
          %v3668 = vmul.bf16 %v3596, %v3655
          %v3669 = vmul.bf16 %v3597, %v3657
          %v3670 = vmul.bf16 %v3598, %v3659
          %v3671 = vmul.bf16 %v3599, %v3661
          %v3672 = vmul.bf16 %v3600, %v3663
          %v3673 = vmul.bf16 %v3601, %v3665
          %v3674 = vadd.bf16 %v3307, %v3666
          %v3675 = vadd.bf16 %v3308, %v3667
          %v3676 = vadd.bf16 %v3309, %v3668
          %v3677 = vadd.bf16 %v3310, %v3669
          %v3678 = vadd.bf16 %v3311, %v3670
          %v3679 = vadd.bf16 %v3312, %v3671
          %v3680 = vadd.bf16 %v3313, %v3672
          %v3681 = vadd.bf16 %v3314, %v3673
          %v3682 = vmul.bf16 %v3674, 1060454197
          %v3683 = vmul.bf16 %v3675, 1060454197
          %v3684 = vmul.bf16 %v3676, 1060454197
          %v3685 = vmul.bf16 %v3677, 1060454197
          %v3686 = vmul.bf16 %v3678, 1060454197
          %v3687 = vmul.bf16 %v3679, 1060454197
          %v3688 = vmul.bf16 %v3680, 1060454197
          %v3689 = vmul.bf16 %v3681, 1060454197
          %s3690 = sadd.s32 %s3315, 1
          %s3691 = smul.u32 %s3690, 16
          %s3692 = smul.addr %s3691, 4
          %s3693 = scalar_lea.vmem %s7, %s3692
          %v3694 = vld [vmem:[%s3693] sm:$0xf]
          %v3695 = vld [vmem:[%s3693 + $0x4] sm:$0xf]
          %v3696 = vld [vmem:[%s3693 + $0x8] sm:$0xf]
          %v3697 = vld [vmem:[%s3693 + $0xc] sm:$0xf]
          %v3698 = vld [vmem:[%s3693 + $0x10] sm:$0xf]
          %v3699 = vld [vmem:[%s3693 + $0x14] sm:$0xf]
          %v3700 = vld [vmem:[%s3693 + $0x18] sm:$0xf]
          %v3701 = vld [vmem:[%s3693 + $0x1c] sm:$0xf]
          %v3702 = vld [vmem:[%s3693 + $0x20] sm:$0xf]
          %v3703 = vld [vmem:[%s3693 + $0x24] sm:$0xf]
          %v3704 = vld [vmem:[%s3693 + $0x28] sm:$0xf]
          %v3705 = vld [vmem:[%s3693 + $0x2c] sm:$0xf]
          %v3706 = vld [vmem:[%s3693 + $0x30] sm:$0xf]
          %v3707 = vld [vmem:[%s3693 + $0x34] sm:$0xf]
          %v3708 = vld [vmem:[%s3693 + $0x38] sm:$0xf]
          %v3709 = vld [vmem:[%s3693 + $0x3c] sm:$0xf]
          %s3710 = smul.u32 %s3690, 128
          %s3711 = scalar_lea.vmem %s8, %s3710
          %v3712 = vld [vmem:[%s3711] sm:$0xff]
          %v3713 = vld [vmem:[%s3711 + $0x8] sm:$0xff]
          %v3714 = vld [vmem:[%s3711 + $0x10] sm:$0xff]
          %v3715 = vld [vmem:[%s3711 + $0x18] sm:$0xff]
          %v3716 = vld [vmem:[%s3711 + $0x20] sm:$0xff]
          %v3717 = vld [vmem:[%s3711 + $0x28] sm:$0xff]
          %v3718 = vld [vmem:[%s3711 + $0x30] sm:$0xff]
          %v3719 = vld [vmem:[%s3711 + $0x38] sm:$0xff]
          %v3720 = vld [vmem:[%s3711 + $0x40] sm:$0xff]
          %v3721 = vld [vmem:[%s3711 + $0x48] sm:$0xff]
          %v3722 = vld [vmem:[%s3711 + $0x50] sm:$0xff]
          %v3723 = vld [vmem:[%s3711 + $0x58] sm:$0xff]
          %v3724 = vld [vmem:[%s3711 + $0x60] sm:$0xff]
          %v3725 = vld [vmem:[%s3711 + $0x68] sm:$0xff]
          %v3726 = vld [vmem:[%s3711 + $0x70] sm:$0xff]
          %v3727 = vld [vmem:[%s3711 + $0x78] sm:$0xff]
          %v3744 = vunpack.c.l.b16 %v3694
          %v3745 = vunpack.c.l.b16 %v3695
          %v3746 = vunpack.c.l.b16 %v3696
          %v3747 = vunpack.c.l.b16 %v3697
          %v3748 = vunpack.c.l.b16 %v3698
          %v3749 = vunpack.c.l.b16 %v3699
          %v3750 = vunpack.c.l.b16 %v3700
          %v3751 = vunpack.c.l.b16 %v3701
          %v3752 = vunpack.c.l.b16 %v3702
          %v3753 = vunpack.c.l.b16 %v3703
          %v3754 = vunpack.c.l.b16 %v3704
          %v3755 = vunpack.c.l.b16 %v3705
          %v3756 = vunpack.c.l.b16 %v3706
          %v3757 = vunpack.c.l.b16 %v3707
          %v3758 = vunpack.c.l.b16 %v3708
          %v3759 = vunpack.c.l.b16 %v3709
          %v3760 = vpack.c.b16 %v3745, %v3744
          %v3761 = vpack.c.b16 %v3747, %v3746
          %v3762 = vpack.c.b16 %v3749, %v3748
          %v3763 = vpack.c.b16 %v3751, %v3750
          %v3764 = vpack.c.b16 %v3753, %v3752
          %v3765 = vpack.c.b16 %v3755, %v3754
          %v3766 = vpack.c.b16 %v3757, %v3756
          %v3767 = vpack.c.b16 %v3759, %v3758
          %v3769 = vsel %vm961, %v3760, 0
          %v3772 = vsel %vm961, %v3761, 0
          %v3775 = vsel %vm961, %v3762, 0
          %v3778 = vsel %vm961, %v3763, 0
          %v3781 = vsel %vm961, %v3764, 0
          %v3784 = vsel %vm961, %v3765, 0
          %v3787 = vsel %vm961, %v3766, 0
          %v3790 = vsel %vm961, %v3767, 0
          %3792 = vmatprep.subr.bf16.mxu0 %v3683
          %3793 = vmatpush1.bf16.msra.mxu0 %v3682
          %3794 = vmatprep.subr.bf16.mxu0 %v3685
          %3795 = vmatpush1.bf16.msra.mxu0 %v3684
          %3796 = vmatprep.subr.bf16.mxu0 %v3687
          %3797 = vmatpush1.bf16.msra.mxu0 %v3686
          %3798 = vmatprep.subr.bf16.mxu0 %v3689
          %3799 = vmatpush1.bf16.msra.mxu0 %v3688
          %3800 = vmatprep.subr.bf16.mxu0 0
          %3801 = vmatpush1.bf16.msra.mxu0 0
          %3802 = vmatprep.subr.bf16.mxu0 0
          %3803 = vmatpush1.bf16.msra.mxu0 0
          %3804 = vmatprep.subr.bf16.mxu0 0
          %3805 = vmatpush1.bf16.msra.mxu0 0
          %3806 = vmatprep.subr.bf16.mxu0 0
          %3807 = vmatpush1.bf16.msra.mxu0 0
          %3808 = vmatprep.subr.bf16.mxu0 0
          %3809 = vmatpush1.bf16.msra.mxu0 0
          %3810 = vmatprep.subr.bf16.mxu0 0
          %3811 = vmatpush1.bf16.msra.mxu0 0
          %3812 = vmatprep.subr.bf16.mxu0 0
          %3813 = vmatpush1.bf16.msra.mxu0 0
          %3814 = vmatprep.subr.bf16.mxu0 0
          %3815 = vmatpush1.bf16.msra.mxu0 0
          %3816 = vmatprep.subr.bf16.mxu0 0
          %3817 = vmatpush1.bf16.msra.mxu0 0
          %3818 = vmatprep.subr.bf16.mxu0 0
          %3819 = vmatpush1.bf16.msra.mxu0 0
          %3820 = vmatprep.subr.bf16.mxu0 0
          %3821 = vmatpush1.bf16.msra.mxu0 0
          %3822 = vmatprep.subr.bf16.mxu0 0
          %3823 = vmatpush1.bf16.msra.mxu0 0
          %3824 = vmatprep.mubr.bf16.mxu0 0
          %3825 = vmatmul.mubr.bf16.gmra.mrb[0].mxu0 %v3769
          %v3826 = vpop.f32.mrb[0].mxu0
          %v3827 = vadd.f32 0.0, %v3826
          %v3828 = vpop.f32.mrb[0].mxu0
          %v3829 = vadd.f32 0.0, %v3828
          %v3830 = vpop.f32.mrb[0].mxu0
          %v3831 = vadd.f32 0.0, %v3830
          %v3832 = vpop.f32.mrb[0].mxu0
          %v3833 = vadd.f32 0.0, %v3832
          %3834 = vmatprep.mubr.bf16.mxu0 0
          %3835 = vmatmul.mubr.bf16.gmra.mrb[0].mxu0 %v3772
          %v3836 = vpop.f32.mrb[0].mxu0
          %v3837 = vadd.f32 0.0, %v3836
          %v3838 = vpop.f32.mrb[0].mxu0
          %v3839 = vadd.f32 0.0, %v3838
          %v3840 = vpop.f32.mrb[0].mxu0
          %v3841 = vadd.f32 0.0, %v3840
          %v3842 = vpop.f32.mrb[0].mxu0
          %v3843 = vadd.f32 0.0, %v3842
          %3844 = vmatprep.mubr.bf16.mxu0 0
          %3845 = vmatmul.mubr.bf16.gmra.mrb[0].mxu0 %v3775
          %v3846 = vpop.f32.mrb[0].mxu0
          %v3847 = vadd.f32 0.0, %v3846
          %v3848 = vpop.f32.mrb[0].mxu0
          %v3849 = vadd.f32 0.0, %v3848
          %v3850 = vpop.f32.mrb[0].mxu0
          %v3851 = vadd.f32 0.0, %v3850
          %v3852 = vpop.f32.mrb[0].mxu0
          %v3853 = vadd.f32 0.0, %v3852
          %3854 = vmatprep.mubr.bf16.mxu0 0
          %3855 = vmatmul.mubr.bf16.gmra.mrb[0].mxu0 %v3778
          %v3856 = vpop.f32.mrb[0].mxu0
          %v3857 = vadd.f32 0.0, %v3856
          %v3858 = vpop.f32.mrb[0].mxu0
          %v3859 = vadd.f32 0.0, %v3858
          %v3860 = vpop.f32.mrb[0].mxu0
          %v3861 = vadd.f32 0.0, %v3860
          %v3862 = vpop.f32.mrb[0].mxu0
          %v3863 = vadd.f32 0.0, %v3862
          %3864 = vmatprep.mubr.bf16.mxu0 0
          %3865 = vmatmul.mubr.bf16.gmra.mrb[0].mxu0 %v3781
          %v3866 = vpop.f32.mrb[0].mxu0
          %v3867 = vadd.f32 0.0, %v3866
          %v3868 = vpop.f32.mrb[0].mxu0
          %v3869 = vadd.f32 0.0, %v3868
          %v3870 = vpop.f32.mrb[0].mxu0
          %v3871 = vadd.f32 0.0, %v3870
          %v3872 = vpop.f32.mrb[0].mxu0
          %v3873 = vadd.f32 0.0, %v3872
          %3874 = vmatprep.mubr.bf16.mxu0 0
          %3875 = vmatmul.mubr.bf16.gmra.mrb[0].mxu0 %v3784
          %v3876 = vpop.f32.mrb[0].mxu0
          %v3877 = vadd.f32 0.0, %v3876
          %v3878 = vpop.f32.mrb[0].mxu0
          %v3879 = vadd.f32 0.0, %v3878
          %v3880 = vpop.f32.mrb[0].mxu0
          %v3881 = vadd.f32 0.0, %v3880
          %v3882 = vpop.f32.mrb[0].mxu0
          %v3883 = vadd.f32 0.0, %v3882
          %3884 = vmatprep.mubr.bf16.mxu0 0
          %3885 = vmatmul.mubr.bf16.gmra.mrb[0].mxu0 %v3787
          %v3886 = vpop.f32.mrb[0].mxu0
          %v3887 = vadd.f32 0.0, %v3886
          %v3888 = vpop.f32.mrb[0].mxu0
          %v3889 = vadd.f32 0.0, %v3888
          %v3890 = vpop.f32.mrb[0].mxu0
          %v3891 = vadd.f32 0.0, %v3890
          %v3892 = vpop.f32.mrb[0].mxu0
          %v3893 = vadd.f32 0.0, %v3892
          %3894 = vmatprep.mubr.bf16.mxu0 0
          %3895 = vmatmul.mubr.bf16.gmra.mrb[0].mxu0 %v3790
          %v3896 = vpop.f32.mrb[0].mxu0
          %v3897 = vadd.f32 0.0, %v3896
          %v3898 = vpop.f32.mrb[0].mxu0
          %v3899 = vadd.f32 0.0, %v3898
          %v3900 = vpop.f32.mrb[0].mxu0
          %v3901 = vadd.f32 0.0, %v3900
          %v3902 = vpop.f32.mrb[0].mxu0
          %v3903 = vadd.f32 0.0, %v3902
          %3904 = vdwg.mxu0
          %v3905 = vpack.c.bf16 %v3831, %v3827
          %v3906 = vpack.c.bf16 %v3833, %v3829
          %v3907 = vpack.c.bf16 %v3841, %v3837
          %v3908 = vpack.c.bf16 %v3843, %v3839
          %v3909 = vpack.c.bf16 %v3851, %v3847
          %v3910 = vpack.c.bf16 %v3853, %v3849
          %v3911 = vpack.c.bf16 %v3861, %v3857
          %v3912 = vpack.c.bf16 %v3863, %v3859
          %v3913 = vpack.c.bf16 %v3871, %v3867
          %v3914 = vpack.c.bf16 %v3873, %v3869
          %v3915 = vpack.c.bf16 %v3881, %v3877
          %v3916 = vpack.c.bf16 %v3883, %v3879
          %v3917 = vpack.c.bf16 %v3891, %v3887
          %v3918 = vpack.c.bf16 %v3893, %v3889
          %v3919 = vpack.c.bf16 %v3901, %v3897
          %v3920 = vpack.c.bf16 %v3903, %v3899
          %v3921 = vpack.c.bf16 %v3713, %v3712
          %v3922 = vpack.c.bf16 %v3715, %v3714
          %v3923 = vpack.c.bf16 %v3717, %v3716
          %v3924 = vpack.c.bf16 %v3719, %v3718
          %v3925 = vpack.c.bf16 %v3721, %v3720
          %v3926 = vpack.c.bf16 %v3723, %v3722
          %v3927 = vpack.c.bf16 %v3725, %v3724
          %v3928 = vpack.c.bf16 %v3727, %v3726
          %3930 = vset.pattern.permute.xlu0 0
          %3931 = vperm.xlu0 %3930, %v3921
          %v3932 = vpop.permute.xlu0 %3931
          %3935 = vset.pattern.permute.xlu0 0
          %3936 = vperm.xlu0 %3935, %v3922
          %v3937 = vpop.permute.xlu0 %3936
          %3940 = vset.pattern.permute.xlu0 0
          %3941 = vperm.xlu0 %3940, %v3923
          %v3942 = vpop.permute.xlu0 %3941
          %3945 = vset.pattern.permute.xlu0 0
          %3946 = vperm.xlu0 %3945, %v3924
          %v3947 = vpop.permute.xlu0 %3946
          %3950 = vset.pattern.permute.xlu0 0
          %3951 = vperm.xlu0 %3950, %v3925
          %v3952 = vpop.permute.xlu0 %3951
          %3955 = vset.pattern.permute.xlu0 0
          %3956 = vperm.xlu0 %3955, %v3926
          %v3957 = vpop.permute.xlu0 %3956
          %3960 = vset.pattern.permute.xlu0 0
          %3961 = vperm.xlu0 %3960, %v3927
          %v3962 = vpop.permute.xlu0 %3961
          %3965 = vset.pattern.permute.xlu0 0
          %3966 = vperm.xlu0 %3965, %v3928
          %v3967 = vpop.permute.xlu0 %3966
          %v3969 = vadd.bf16 %v3905, %v3932
          %v3970 = vadd.bf16 %v3906, %v3932
          %v3971 = vadd.bf16 %v3907, %v3937
          %v3972 = vadd.bf16 %v3908, %v3937
          %v3973 = vadd.bf16 %v3909, %v3942
          %v3974 = vadd.bf16 %v3910, %v3942
          %v3975 = vadd.bf16 %v3911, %v3947
          %v3976 = vadd.bf16 %v3912, %v3947
          %v3977 = vadd.bf16 %v3913, %v3952
          %v3978 = vadd.bf16 %v3914, %v3952
          %v3979 = vadd.bf16 %v3915, %v3957
          %v3980 = vadd.bf16 %v3916, %v3957
          %v3981 = vadd.bf16 %v3917, %v3962
          %v3982 = vadd.bf16 %v3918, %v3962
          %v3983 = vadd.bf16 %v3919, %v3967
          %v3984 = vadd.bf16 %v3920, %v3967
          %v3985 = vxor.u32 %v3977, 2147516416
          %v3986 = vxor.u32 %v3978, 2147516416
          %v3987 = vxor.u32 %v3979, 2147516416
          %v3988 = vxor.u32 %v3980, 2147516416
          %v3989 = vxor.u32 %v3981, 2147516416
          %v3990 = vxor.u32 %v3982, 2147516416
          %v3991 = vxor.u32 %v3983, 2147516416
          %v3992 = vxor.u32 %v3984, 2147516416
          %v3994 = vmul.bf16 %v3985, 1069105081
          %v3995 = vpow.bf16.pop %v3994
          %v3997 = vmul.bf16 %v3986, 1069105081
          %v3998 = vpow.bf16.pop %v3997
          %v4000 = vmul.bf16 %v3987, 1069105081
          %v4001 = vpow.bf16.pop %v4000
          %v4003 = vmul.bf16 %v3988, 1069105081
          %v4004 = vpow.bf16.pop %v4003
          %v4006 = vmul.bf16 %v3989, 1069105081
          %v4007 = vpow.bf16.pop %v4006
          %v4009 = vmul.bf16 %v3990, 1069105081
          %v4010 = vpow.bf16.pop %v4009
          %v4012 = vmul.bf16 %v3991, 1069105081
          %v4013 = vpow.bf16.pop %v4012
          %v4015 = vmul.bf16 %v3992, 1069105081
          %v4016 = vpow.bf16.pop %v4015
          %v4017 = vadd.bf16 %v3995, 1065369472
          %v4018 = vadd.bf16 %v3998, 1065369472
          %v4019 = vadd.bf16 %v4001, 1065369472
          %v4020 = vadd.bf16 %v4004, 1065369472
          %v4021 = vadd.bf16 %v4007, 1065369472
          %v4022 = vadd.bf16 %v4010, 1065369472
          %v4023 = vadd.bf16 %v4013, 1065369472
          %v4024 = vadd.bf16 %v4016, 1065369472
          %v4025 = vrcp.bf16.pop %v4017
          %v4026 = vmul.bf16 1065369472, %v4025
          %v4027 = vrcp.bf16.pop %v4018
          %v4028 = vmul.bf16 1065369472, %v4027
          %v4029 = vrcp.bf16.pop %v4019
          %v4030 = vmul.bf16 1065369472, %v4029
          %v4031 = vrcp.bf16.pop %v4020
          %v4032 = vmul.bf16 1065369472, %v4031
          %v4033 = vrcp.bf16.pop %v4021
          %v4034 = vmul.bf16 1065369472, %v4033
          %v4035 = vrcp.bf16.pop %v4022
          %v4036 = vmul.bf16 1065369472, %v4035
          %v4037 = vrcp.bf16.pop %v4023
          %v4038 = vmul.bf16 1065369472, %v4037
          %v4039 = vrcp.bf16.pop %v4024
          %v4040 = vmul.bf16 1065369472, %v4039
          %v4041 = vmul.bf16 %v3969, %v4026
          %v4042 = vmul.bf16 %v3970, %v4028
          %v4043 = vmul.bf16 %v3971, %v4030
          %v4044 = vmul.bf16 %v3972, %v4032
          %v4045 = vmul.bf16 %v3973, %v4034
          %v4046 = vmul.bf16 %v3974, %v4036
          %v4047 = vmul.bf16 %v3975, %v4038
          %v4048 = vmul.bf16 %v3976, %v4040
          %v4049 = vadd.bf16 %v3682, %v4041
          %v4050 = vadd.bf16 %v3683, %v4042
          %v4051 = vadd.bf16 %v3684, %v4043
          %v4052 = vadd.bf16 %v3685, %v4044
          %v4053 = vadd.bf16 %v3686, %v4045
          %v4054 = vadd.bf16 %v3687, %v4046
          %v4055 = vadd.bf16 %v3688, %v4047
          %v4056 = vadd.bf16 %v3689, %v4048
          %v4057 = vmul.bf16 %v4049, 1060454197
          %v4058 = vmul.bf16 %v4050, 1060454197
          %v4059 = vmul.bf16 %v4051, 1060454197
          %v4060 = vmul.bf16 %v4052, 1060454197
          %v4061 = vmul.bf16 %v4053, 1060454197
          %v4062 = vmul.bf16 %v4054, 1060454197
          %v4063 = vmul.bf16 %v4055, 1060454197
          %v4064 = vmul.bf16 %v4056, 1060454197
          %v4065 = vmax.bf16 %v4057, 0
          %v4066 = vmax.bf16 %v4058, 0
          %v4067 = vmax.bf16 %v4059, 0
          %v4068 = vmax.bf16 %v4060, 0
          %v4069 = vunpack.c.l.bf16 %v4065
          %v4070 = vunpack.c.l.bf16 %v4066
          %v4071 = vunpack.c.h.bf16 %v4065
          %v4072 = vunpack.c.h.bf16 %v4066
          %v4073 = vunpack.c.l.bf16 %v4067
          %v4074 = vunpack.c.l.bf16 %v4068
          %v4075 = vunpack.c.h.bf16 %v4067
          %v4076 = vunpack.c.h.bf16 %v4068
          %v4077 = vadd.f32 %v1905, %v4069
          %v4078 = vadd.f32 %v1906, %v4070
          %v4079 = vadd.f32 %v1907, %v4071
          %v4080 = vadd.f32 %v1908, %v4072
          %v4081 = vadd.f32 %v1909, %v4073
          %v4082 = vadd.f32 %v1910, %v4074
          %v4083 = vadd.f32 %v1911, %v4075
          %v4084 = vadd.f32 %v1912, %v4076
        $region104: #{tpu_custom_call.1} parent=94 // loop_footer
          %s1900 = sadd.s32 1, %s1896
        $region105: #{tpu_custom_call.1} parent=94 // loop_footer_branch
          %1895 = sbr.rel target = $region101
        $region106: #{tpu_custom_call.1} parent=94 // loop_exit
          _
        %v4085 = vld [vmem:[%s11] sm:$0xf]
        %v4086 = vld [vmem:[%s11 + $0x4] sm:$0xf]
        %v4087 = vld [vmem:[%s11 + $0x8] sm:$0xf]
        %v4088 = vld [vmem:[%s11 + $0xc] sm:$0xf]
        %v4089 = vpack.c.bf16 %v1907, %v1905
        %v4090 = vpack.c.bf16 %v1908, %v1906
        %v4091 = vpack.c.bf16 %v1911, %v1909
        %v4092 = vpack.c.bf16 %v1912, %v1910
        %v4097 = vunpack.c.l.b16 %v4085
        %v4098 = vunpack.c.l.b16 %v4086
        %v4099 = vunpack.c.l.b16 %v4087
        %v4100 = vunpack.c.l.b16 %v4088
        %v4101 = vpack.c.b16 %v4098, %v4097
        %v4102 = vpack.c.b16 %v4100, %v4099
        %vm4103 = vcmask 261120
        %v4105 = vsel %vm4103, %v4101, 0
        %v4108 = vsel %vm4103, %v4102, 0
        %4110 = vmatprep.subr.bf16.mxu0 %v4090
        %4111 = vmatpush1.bf16.msra.mxu0 %v4089
        %4112 = vmatprep.subr.bf16.mxu0 %v4092
        %4113 = vmatpush1.bf16.msra.mxu0 %v4091
        %4114 = vmatprep.subr.bf16.mxu0 0
        %4115 = vmatpush1.bf16.msra.mxu0 0
        %4116 = vmatprep.subr.bf16.mxu0 0
        %4117 = vmatpush1.bf16.msra.mxu0 0
        %4118 = vmatprep.subr.bf16.mxu0 0
        %4119 = vmatpush1.bf16.msra.mxu0 0
        %4120 = vmatprep.subr.bf16.mxu0 0
        %4121 = vmatpush1.bf16.msra.mxu0 0
        %4122 = vmatprep.subr.bf16.mxu0 0
        %4123 = vmatpush1.bf16.msra.mxu0 0
        %4124 = vmatprep.subr.bf16.mxu0 0
        %4125 = vmatpush1.bf16.msra.mxu0 0
        %4126 = vmatprep.subr.bf16.mxu0 0
        %4127 = vmatpush1.bf16.msra.mxu0 0
        %4128 = vmatprep.subr.bf16.mxu0 0
        %4129 = vmatpush1.bf16.msra.mxu0 0
        %4130 = vmatprep.subr.bf16.mxu0 0
        %4131 = vmatpush1.bf16.msra.mxu0 0
        %4132 = vmatprep.subr.bf16.mxu0 0
        %4133 = vmatpush1.bf16.msra.mxu0 0
        %4134 = vmatprep.subr.bf16.mxu0 0
        %4135 = vmatpush1.bf16.msra.mxu0 0
        %4136 = vmatprep.subr.bf16.mxu0 0
        %4137 = vmatpush1.bf16.msra.mxu0 0
        %4138 = vmatprep.subr.bf16.mxu0 0
        %4139 = vmatpush1.bf16.msra.mxu0 0
        %4140 = vmatprep.subr.bf16.mxu0 0
        %4141 = vmatpush1.bf16.msra.mxu0 0
        %4142 = vmatprep.mubr.bf16.mxu0 0
        %4143 = vmatmul.mubr.bf16.gmra.mrb[0].mxu0 %v4105
        %v4144 = vpop.f32.mrb[0].mxu0
        %v4145 = vadd.f32 0.0, %v4144
        %v4146 = vpop.f32.mrb[0].mxu0
        %v4147 = vadd.f32 0.0, %v4146
        %v4148 = vpop.f32.mrb[0].mxu0
        %v4149 = vadd.f32 0.0, %v4148
        %v4150 = vpop.f32.mrb[0].mxu0
        %v4151 = vadd.f32 0.0, %v4150
        %4152 = vmatprep.mubr.bf16.mxu0 0
        %4153 = vmatmul.mubr.bf16.gmra.mrb[0].mxu0 %v4108
        %v4154 = vpop.f32.mrb[0].mxu0
        %v4155 = vadd.f32 0.0, %v4154
        %v4156 = vpop.f32.mrb[0].mxu0
        %v4157 = vadd.f32 0.0, %v4156
        %v4158 = vpop.f32.mrb[0].mxu0
        %v4159 = vadd.f32 0.0, %v4158
        %v4160 = vpop.f32.mrb[0].mxu0
        %v4161 = vadd.f32 0.0, %v4160
        %4162 = vdwg.mxu0
        %v4163 = vld [vmem:[%s12] sm:$0xf]
        %v4164 = vld [vmem:[%s12 + $0x4] sm:$0xf]
        %v4165 = vld [vmem:[%s12 + $0x8] sm:$0xf]
        %v4166 = vld [vmem:[%s12 + $0xc] sm:$0xf]
        %v4167 = vld [vmem:[%s12 + $0x10] sm:$0xf]
        %v4168 = vld [vmem:[%s12 + $0x14] sm:$0xf]
        %v4169 = vld [vmem:[%s12 + $0x18] sm:$0xf]
        %v4170 = vld [vmem:[%s12 + $0x1c] sm:$0xf]
        %v4171 = vld [vmem:[%s12 + $0x20] sm:$0xf]
        %v4172 = vld [vmem:[%s12 + $0x24] sm:$0xf]
        %v4173 = vld [vmem:[%s12 + $0x28] sm:$0xf]
        %v4174 = vld [vmem:[%s12 + $0x2c] sm:$0xf]
        %v4175 = vld [vmem:[%s12 + $0x30] sm:$0xf]
        %v4176 = vld [vmem:[%s12 + $0x34] sm:$0xf]
        %v4177 = vld [vmem:[%s12 + $0x38] sm:$0xf]
        %v4178 = vld [vmem:[%s12 + $0x3c] sm:$0xf]
        %v4179 = vpack.c.bf16 %v4149, %v4145
        %v4180 = vpack.c.bf16 %v4151, %v4147
        %v4181 = vpack.c.bf16 %v4159, %v4155
        %v4182 = vpack.c.bf16 %v4161, %v4157
        %v4183 = vld [vmem:[%s13] sm:$0xff]
        %v4184 = vld [vmem:[%s13 + $0x8] sm:$0xff]
        %v4185 = vld [vmem:[%s13 + $0x10] sm:$0xff]
        %v4186 = vld [vmem:[%s13 + $0x18] sm:$0xff]
        %v4187 = vld [vmem:[%s13 + $0x20] sm:$0xff]
        %v4188 = vld [vmem:[%s13 + $0x28] sm:$0xff]
        %v4189 = vld [vmem:[%s13 + $0x30] sm:$0xff]
        %v4190 = vld [vmem:[%s13 + $0x38] sm:$0xff]
        %v4191 = vld [vmem:[%s13 + $0x40] sm:$0xff]
        %v4192 = vld [vmem:[%s13 + $0x48] sm:$0xff]
        %v4193 = vld [vmem:[%s13 + $0x50] sm:$0xff]
        %v4194 = vld [vmem:[%s13 + $0x58] sm:$0xff]
        %v4195 = vld [vmem:[%s13 + $0x60] sm:$0xff]
        %v4196 = vld [vmem:[%s13 + $0x68] sm:$0xff]
        %v4197 = vld [vmem:[%s13 + $0x70] sm:$0xff]
        %v4198 = vld [vmem:[%s13 + $0x78] sm:$0xff]
        %4200 = vset.pattern.permute.xlu0 0
        %4201 = vperm.xlu0 %4200, %v4183
        %v4202 = vpop.permute.xlu0 %4201
        %4205 = vset.pattern.permute.xlu0 0
        %4206 = vperm.xlu0 %4205, %v4184
        %v4207 = vpop.permute.xlu0 %4206
        %4210 = vset.pattern.permute.xlu0 0
        %4211 = vperm.xlu0 %4210, %v4185
        %v4212 = vpop.permute.xlu0 %4211
        %4215 = vset.pattern.permute.xlu0 0
        %4216 = vperm.xlu0 %4215, %v4186
        %v4217 = vpop.permute.xlu0 %4216
        %4220 = vset.pattern.permute.xlu0 0
        %4221 = vperm.xlu0 %4220, %v4187
        %v4222 = vpop.permute.xlu0 %4221
        %4225 = vset.pattern.permute.xlu0 0
        %4226 = vperm.xlu0 %4225, %v4188
        %v4227 = vpop.permute.xlu0 %4226
        %4230 = vset.pattern.permute.xlu0 0
        %4231 = vperm.xlu0 %4230, %v4189
        %v4232 = vpop.permute.xlu0 %4231
        %4235 = vset.pattern.permute.xlu0 0
        %4236 = vperm.xlu0 %4235, %v4190
        %v4237 = vpop.permute.xlu0 %4236
        %4240 = vset.pattern.permute.xlu0 0
        %4241 = vperm.xlu0 %4240, %v4191
        %v4242 = vpop.permute.xlu0 %4241
        %4245 = vset.pattern.permute.xlu0 0
        %4246 = vperm.xlu0 %4245, %v4192
        %v4247 = vpop.permute.xlu0 %4246
        %4250 = vset.pattern.permute.xlu0 0
        %4251 = vperm.xlu0 %4250, %v4193
        %v4252 = vpop.permute.xlu0 %4251
        %4255 = vset.pattern.permute.xlu0 0
        %4256 = vperm.xlu0 %4255, %v4194
        %v4257 = vpop.permute.xlu0 %4256
        %4260 = vset.pattern.permute.xlu0 0
        %4261 = vperm.xlu0 %4260, %v4195
        %v4262 = vpop.permute.xlu0 %4261
        %4265 = vset.pattern.permute.xlu0 0
        %4266 = vperm.xlu0 %4265, %v4196
        %v4267 = vpop.permute.xlu0 %4266
        %4270 = vset.pattern.permute.xlu0 0
        %4271 = vperm.xlu0 %4270, %v4197
        %v4272 = vpop.permute.xlu0 %4271
        %4275 = vset.pattern.permute.xlu0 0
        %4276 = vperm.xlu0 %4275, %v4198
        %v4277 = vpop.permute.xlu0 %4276
        %v4295 = vunpack.c.l.b16 %v4163
        %v4296 = vunpack.c.l.b16 %v4164
        %v4297 = vunpack.c.l.b16 %v4165
        %v4298 = vunpack.c.l.b16 %v4166
        %v4299 = vunpack.c.l.b16 %v4167
        %v4300 = vunpack.c.l.b16 %v4168
        %v4301 = vunpack.c.l.b16 %v4169
        %v4302 = vunpack.c.l.b16 %v4170
        %v4303 = vunpack.c.l.b16 %v4171
        %v4304 = vunpack.c.l.b16 %v4172
        %v4305 = vunpack.c.l.b16 %v4173
        %v4306 = vunpack.c.l.b16 %v4174
        %v4307 = vunpack.c.l.b16 %v4175
        %v4308 = vunpack.c.l.b16 %v4176
        %v4309 = vunpack.c.l.b16 %v4177
        %v4310 = vunpack.c.l.b16 %v4178
        %v4311 = vpack.c.b16 %v4296, %v4295
        %v4312 = vpack.c.b16 %v4298, %v4297
        %v4313 = vpack.c.b16 %v4300, %v4299
        %v4314 = vpack.c.b16 %v4302, %v4301
        %v4315 = vpack.c.b16 %v4304, %v4303
        %v4316 = vpack.c.b16 %v4306, %v4305
        %v4317 = vpack.c.b16 %v4308, %v4307
        %v4318 = vpack.c.b16 %v4310, %v4309
        %v4320 = vsel %vm4103, %v4311, 0
        %v4323 = vsel %vm4103, %v4312, 0
        %v4326 = vsel %vm4103, %v4313, 0
        %v4329 = vsel %vm4103, %v4314, 0
        %v4332 = vsel %vm4103, %v4315, 0
        %v4335 = vsel %vm4103, %v4316, 0
        %v4338 = vsel %vm4103, %v4317, 0
        %v4341 = vsel %vm4103, %v4318, 0
        %4343 = vmatprep.subr.bf16.mxu0 %v4180
        %4344 = vmatpush1.bf16.msra.mxu0 %v4179
        %4345 = vmatprep.subr.bf16.mxu0 %v4182
        %4346 = vmatpush1.bf16.msra.mxu0 %v4181
        %4347 = vmatprep.subr.bf16.mxu0 0
        %4348 = vmatpush1.bf16.msra.mxu0 0
        %4349 = vmatprep.subr.bf16.mxu0 0
        %4350 = vmatpush1.bf16.msra.mxu0 0
        %4351 = vmatprep.subr.bf16.mxu0 0
        %4352 = vmatpush1.bf16.msra.mxu0 0
        %4353 = vmatprep.subr.bf16.mxu0 0
        %4354 = vmatpush1.bf16.msra.mxu0 0
        %4355 = vmatprep.subr.bf16.mxu0 0
        %4356 = vmatpush1.bf16.msra.mxu0 0
        %4357 = vmatprep.subr.bf16.mxu0 0
        %4358 = vmatpush1.bf16.msra.mxu0 0
        %4359 = vmatprep.subr.bf16.mxu0 0
        %4360 = vmatpush1.bf16.msra.mxu0 0
        %4361 = vmatprep.subr.bf16.mxu0 0
        %4362 = vmatpush1.bf16.msra.mxu0 0
        %4363 = vmatprep.subr.bf16.mxu0 0
        %4364 = vmatpush1.bf16.msra.mxu0 0
        %4365 = vmatprep.subr.bf16.mxu0 0
        %4366 = vmatpush1.bf16.msra.mxu0 0
        %4367 = vmatprep.subr.bf16.mxu0 0
        %4368 = vmatpush1.bf16.msra.mxu0 0
        %4369 = vmatprep.subr.bf16.mxu0 0
        %4370 = vmatpush1.bf16.msra.mxu0 0
        %4371 = vmatprep.subr.bf16.mxu0 0
        %4372 = vmatpush1.bf16.msra.mxu0 0
        %4373 = vmatprep.subr.bf16.mxu0 0
        %4374 = vmatpush1.bf16.msra.mxu0 0
        %4375 = vmatprep.mubr.bf16.mxu0 0
        %4376 = vmatmul.mubr.bf16.gmra.mrb[0].mxu0 %v4320
        %v4377 = vpop.f32.mrb[0].mxu0
        %v4378 = vadd.f32 %v4202, %v4377
        %v4379 = vpop.f32.mrb[0].mxu0
        %v4380 = vadd.f32 %v4202, %v4379
        %v4381 = vpop.f32.mrb[0].mxu0
        %v4382 = vadd.f32 %v4207, %v4381
        %v4383 = vpop.f32.mrb[0].mxu0
        %v4384 = vadd.f32 %v4207, %v4383
        %4385 = vmatprep.mubr.bf16.mxu0 0
        %4386 = vmatmul.mubr.bf16.gmra.mrb[0].mxu0 %v4323
        %v4387 = vpop.f32.mrb[0].mxu0
        %v4388 = vadd.f32 %v4212, %v4387
        %v4389 = vpop.f32.mrb[0].mxu0
        %v4390 = vadd.f32 %v4212, %v4389
        %v4391 = vpop.f32.mrb[0].mxu0
        %v4392 = vadd.f32 %v4217, %v4391
        %v4393 = vpop.f32.mrb[0].mxu0
        %v4394 = vadd.f32 %v4217, %v4393
        %4395 = vmatprep.mubr.bf16.mxu0 0
        %4396 = vmatmul.mubr.bf16.gmra.mrb[0].mxu0 %v4326
        %v4397 = vpop.f32.mrb[0].mxu0
        %v4398 = vadd.f32 %v4222, %v4397
        %v4399 = vpop.f32.mrb[0].mxu0
        %v4400 = vadd.f32 %v4222, %v4399
        %v4401 = vpop.f32.mrb[0].mxu0
        %v4402 = vadd.f32 %v4227, %v4401
        %v4403 = vpop.f32.mrb[0].mxu0
        %v4404 = vadd.f32 %v4227, %v4403
        %4405 = vmatprep.mubr.bf16.mxu0 0
        %4406 = vmatmul.mubr.bf16.gmra.mrb[0].mxu0 %v4329
        %v4407 = vpop.f32.mrb[0].mxu0
        %v4408 = vadd.f32 %v4232, %v4407
        %v4409 = vpop.f32.mrb[0].mxu0
        %v4410 = vadd.f32 %v4232, %v4409
        %v4411 = vpop.f32.mrb[0].mxu0
        %v4412 = vadd.f32 %v4237, %v4411
        %v4413 = vpop.f32.mrb[0].mxu0
        %v4414 = vadd.f32 %v4237, %v4413
        %4415 = vmatprep.mubr.bf16.mxu0 0
        %4416 = vmatmul.mubr.bf16.gmra.mrb[0].mxu0 %v4332
        %v4417 = vpop.f32.mrb[0].mxu0
        %v4418 = vadd.f32 %v4242, %v4417
        %v4419 = vpop.f32.mrb[0].mxu0
        %v4420 = vadd.f32 %v4242, %v4419
        %v4421 = vpop.f32.mrb[0].mxu0
        %v4422 = vadd.f32 %v4247, %v4421
        %v4423 = vpop.f32.mrb[0].mxu0
        %v4424 = vadd.f32 %v4247, %v4423
        %4425 = vmatprep.mubr.bf16.mxu0 0
        %4426 = vmatmul.mubr.bf16.gmra.mrb[0].mxu0 %v4335
        %v4427 = vpop.f32.mrb[0].mxu0
        %v4428 = vadd.f32 %v4252, %v4427
        %v4429 = vpop.f32.mrb[0].mxu0
        %v4430 = vadd.f32 %v4252, %v4429
        %v4431 = vpop.f32.mrb[0].mxu0
        %v4432 = vadd.f32 %v4257, %v4431
        %v4433 = vpop.f32.mrb[0].mxu0
        %v4434 = vadd.f32 %v4257, %v4433
        %4435 = vmatprep.mubr.bf16.mxu0 0
        %4436 = vmatmul.mubr.bf16.gmra.mrb[0].mxu0 %v4338
        %v4437 = vpop.f32.mrb[0].mxu0
        %v4438 = vadd.f32 %v4262, %v4437
        %v4439 = vpop.f32.mrb[0].mxu0
        %v4440 = vadd.f32 %v4262, %v4439
        %v4441 = vpop.f32.mrb[0].mxu0
        %v4442 = vadd.f32 %v4267, %v4441
        %v4443 = vpop.f32.mrb[0].mxu0
        %v4444 = vadd.f32 %v4267, %v4443
        %4445 = vmatprep.mubr.bf16.mxu0 0
        %4446 = vmatmul.mubr.bf16.gmra.mrb[0].mxu0 %v4341
        %v4447 = vpop.f32.mrb[0].mxu0
        %v4448 = vadd.f32 %v4272, %v4447
        %v4449 = vpop.f32.mrb[0].mxu0
        %v4450 = vadd.f32 %v4272, %v4449
        %v4451 = vpop.f32.mrb[0].mxu0
        %v4452 = vadd.f32 %v4277, %v4451
        %v4453 = vpop.f32.mrb[0].mxu0
        %v4454 = vadd.f32 %v4277, %v4453
        %4455 = vdwg.mxu0
        %4456 = vst [vmem:[%s491] sm:$0xff] %v4378
        %4457 = vst [vmem:[%s491 + $0x8] sm:$0xff] %v4380
        %4458 = vst [vmem:[%s491 + $0x10] sm:$0xff] %v4382
        %4459 = vst [vmem:[%s491 + $0x18] sm:$0xff] %v4384
        %4460 = vst [vmem:[%s491 + $0x20] sm:$0xff] %v4388
        %4461 = vst [vmem:[%s491 + $0x28] sm:$0xff] %v4390
        %4462 = vst [vmem:[%s491 + $0x30] sm:$0xff] %v4392
        %4463 = vst [vmem:[%s491 + $0x38] sm:$0xff] %v4394
        %4464 = vst [vmem:[%s491 + $0x40] sm:$0xff] %v4398
        %4465 = vst [vmem:[%s491 + $0x48] sm:$0xff] %v4400
        %4466 = vst [vmem:[%s491 + $0x50] sm:$0xff] %v4402
        %4467 = vst [vmem:[%s491 + $0x58] sm:$0xff] %v4404
        %4468 = vst [vmem:[%s491 + $0x60] sm:$0xff] %v4408
        %4469 = vst [vmem:[%s491 + $0x68] sm:$0xff] %v4410
        %4470 = vst [vmem:[%s491 + $0x70] sm:$0xff] %v4412
        %4471 = vst [vmem:[%s491 + $0x78] sm:$0xff] %v4414
        %4472 = vst [vmem:[%s491 + $0x80] sm:$0xff] %v4418
        %4473 = vst [vmem:[%s491 + $0x88] sm:$0xff] %v4420
        %4474 = vst [vmem:[%s491 + $0x90] sm:$0xff] %v4422
        %4475 = vst [vmem:[%s491 + $0x98] sm:$0xff] %v4424
        %4476 = vst [vmem:[%s491 + $0xa0] sm:$0xff] %v4428
        %4477 = vst [vmem:[%s491 + $0xa8] sm:$0xff] %v4430
        %4478 = vst [vmem:[%s491 + $0xb0] sm:$0xff] %v4432
        %4479 = vst [vmem:[%s491 + $0xb8] sm:$0xff] %v4434
        %4480 = vst [vmem:[%s491 + $0xc0] sm:$0xff] %v4438
        %4481 = vst [vmem:[%s491 + $0xc8] sm:$0xff] %v4440
        %4482 = vst [vmem:[%s491 + $0xd0] sm:$0xff] %v4442
        %4483 = vst [vmem:[%s491 + $0xd8] sm:$0xff] %v4444
        %4484 = vst [vmem:[%s491 + $0xe0] sm:$0xff] %v4448
        %4485 = vst [vmem:[%s491 + $0xe8] sm:$0xff] %v4450
        %4486 = vst [vmem:[%s491 + $0xf0] sm:$0xff] %v4452
        %4487 = vst [vmem:[%s491 + $0xf8] sm:$0xff] %v4454
        %s4488 = sand.u32 %s335, 1
        %s4489 = scalar_lea.sflag [#allocation4], %s4488
        %s4490 = sand.u32 %s335, 1
        %s4491 = smul.addr %s4490, 256
        %s4492 = scalar_lea.vmem [#allocation3], %s4491
        // Predicated region
        $region107: #{tpu_custom_call.1} parent=94 // pred_check
          %p4493 = pneg %p345
        $region108: #{tpu_custom_call.1} parent=94 // pred_check_branch
          %4495 = sbr.rel (%p4493) target = $region110
        $region109: #{tpu_custom_call.1} parent=94 // pred_region
          %s4496 = smul.u32 2, %s28
          %s4498 = ssub.s32 4096, 4096
          %4499 = vsyncadd %s4489, %s4498
          %s4500 = smul.addr %s4496, 128
          %s4501 = scalar_lea.hbm %s14, %s4500
          %s4502 = sshll.u32 %s4492, 4
          %s4503 = int_to_ptr.vmem [resolvable:$true] %s4502
          %4508 = dma.vmem_to_hbm [thread:$0]  %s4503, 4096, %s4501, %s4489, 256, 512, 16
        $region110: #{tpu_custom_call.1} parent=94 // pred_fallthru
          _
      $region95: #{tpu_custom_call.1} parent=5 // pred_fallthru
        _
      %p4509 = scmp.le.s32.totalorder 2, %s23
      // Predicated region
      $region111: #{tpu_custom_call.1} parent=5 // pred_check
        %p4510 = pneg %p4509
      $region112: #{tpu_custom_call.1} parent=5 // pred_check_branch
        %4512 = sbr.rel (%p4510) target = $region114
      $region113: #{tpu_custom_call.1} parent=5 // pred_region
        %s4513 = ssub.s32 %s23, 2
        // Predicated region
        $region115: #{tpu_custom_call.1} parent=113 // pred_check
          %p4514 = pneg %p351
        $region116: #{tpu_custom_call.1} parent=113 // pred_check_branch
          %4516 = sbr.rel (%p4514) target = $region118
        $region117: #{tpu_custom_call.1} parent=113 // pred_region
          %s4517 = sand.u32 %s336, 1
          %s4518 = scalar_lea.sflag [#allocation4], %s4517
          %s4519 = sand.u32 %s336, 1
          %s4520 = smul.addr %s4519, 256
          %s4521 = scalar_lea.vmem [#allocation3], %s4520
          %4522 = dma.done %s4518, 4096
        $region118: #{tpu_custom_call.1} parent=113 // pred_fallthru
          _
      $region114: #{tpu_custom_call.1} parent=5 // pred_fallthru
        _
    $region6: #{tpu_custom_call.1} parent=1 // loop_footer
      %s27 = sadd.s32 1, %s23
    $region7: #{tpu_custom_call.1} parent=1 // loop_footer_branch
      %22 = sbr.rel target = $region3
    $region8: #{tpu_custom_call.1} parent=1 // loop_exit
      _
    %4523 = vsyncpa [#allocation4], 1
    %s4524 = scalar_lea.sflag [#allocation4], 1
    %4525 = vsyncpa %s4524, 1

</llo_original>
